<compile_context>
chip_gen: v7x
topology: tpu7x:2x2x1
jax: 0.10.0
libtpu: 0.0.40
codegen_flags: <defaults>
</compile_context>

<pallas_src>
import functools

import jax
import jax.numpy as jnp
import numpy as np
from jax.experimental import pallas as pl
from jax.experimental.pallas import tpu as pltpu

FP16_HUGE = 65504.0  # torch.finfo(torch.float16).max


def _template_attention_kernel(mask_sref, q_ref, t_ref, qw_ref, kvw_ref,
                               ow_ref, ob_ref, out_ref, wa_ref, *, num_head,
                               key_dim, value_dim):
  """One (batch, pixel-tile) block of template pointwise attention.

  mask_sref : (B, T) int32 in SMEM (scalar prefetch), 0/1 template mask
  q_ref     : (1, P, QC)       flattened pair-query pixels (query length == 1)
  t_ref     : (1, T, P, C)     template pair representation, pixels on sublanes
  qw_ref    : (QC, H*KD)       query projection
  kvw_ref   : (C, H*(KD+VD))   fused key+value projection, per-head [K_h | V_h]
  ow_ref    : (H*VD, QC)       output projection
  ob_ref    : (1, QC)          output bias (f32)
  out_ref   : (1, P, QC)
  wa_ref    : (P, H*VD) f32    VMEM scratch for per-head attention outputs
  """
  T = t_ref.shape[1]
  P = t_ref.shape[2]
  C = t_ref.shape[3]
  H, KD, VD = num_head, key_dim, value_dim
  GD = KD + VD
  scale = KD ** -0.5
  b = pl.program_id(0)

  # Number of valid templates for this batch element (cheap SMEM scalar reads).
  nt = mask_sref[b, 0]
  for t in range(1, T):
    nt = nt + mask_sref[b, t]
  has_templates = nt > 0

  @pl.when(has_templates)
  def _compute():
    # (T, 1, 1) additive bias built from SMEM scalars (no VMEM mask block).
    tidx = jax.lax.broadcasted_iota(jnp.int32, (T, 1, 1), 0)
    bias = jnp.zeros((T, 1, 1), jnp.float32)
    for t in range(T):
      mt = mask_sref[b, t].astype(jnp.float32)
      bias = jnp.where(tidx == t, FP16_HUGE * (mt - 1.0), bias)

    # Native (bf16-ready) activations straight into the MXU; accumulate in f32.
    q = q_ref[0]                                   # (P, QC)
    t2 = t_ref[0].reshape(T * P, C)                # free leading-dim collapse

    qh = jnp.dot(q, qw_ref[...], preferred_element_type=jnp.float32) * scale
    kv = jnp.dot(t2, kvw_ref[...], preferred_element_type=jnp.float32)

    # Static unroll over heads (H is small).
    for h in range(H):
      q_h = qh[:, h * KD:(h + 1) * KD]             # (P, KD)
      grp = kv[:, h * GD:(h + 1) * GD]             # per-head contiguous lanes
      k_h = grp[:, :KD].reshape(T, P, KD)          # (T, P, KD)
      v_h = grp[:, KD:].reshape(T, P, VD)          # (T, P, VD)

      # (T, P, 1) layout throughout the softmax: no relayout between the lane
      # reduce over KD and the w*v weighted sum.
      logits = jnp.sum(q_h[None, :, :] * k_h, axis=-1, keepdims=True) + bias
      m = jnp.max(logits, axis=0, keepdims=True)   # (1, P, 1)
      e = jnp.exp(logits - m)                      # (T, P, 1)
      denom = jnp.sum(e, axis=0, keepdims=True)    # (1, P, 1)
      # EUP approximate reciprocal + one Newton step (divide-free, f32 accurate).
      inv = pl.reciprocal(denom, approx=True)
      inv = inv * (2.0 - denom * inv)
      w = e * inv                                  # softmax over templates
      wa_ref[:, h * VD:(h + 1) * VD] = jnp.sum(w * v_h, axis=0)   # (P, VD)

    # Single output projection for all heads (one MXU call instead of H tiny ones).
    out = jnp.dot(wa_ref[...].astype(ow_ref.dtype), ow_ref[...],
                  preferred_element_type=jnp.float32) + ob_ref[0]
    out_ref[0] = out.astype(out_ref.dtype)

  @pl.when(jnp.logical_not(has_templates))
  def _zero():
    # Batches with no templates at all: skip all MXU/VPU work, store zeros
    # (matches the PyTorch module's tmask multiply).
    out_ref[...] = jnp.zeros_like(out_ref)


def _default_vmem_limit_bytes():
  """Generation-aware VMEM limit: ~100 MiB on 128 MiB chips, <=48 MiB on v7x."""
  phys = None
  try:
    phys = int(pltpu.get_tpu_info().vmem_capacity_bytes)
  except Exception:
    phys = None
  if phys is None:
    phys = 64 << 20            # conservative: assume a 64 MiB (v7x-class) chip
  if phys >= (128 << 20):
    return 100 << 20           # v5e / v6e
  return min(48 << 20, int(phys * 3 // 4))


def _estimate_vmem_bytes(P, *, T, C, QC, HKD, HVD, act_bytes, out_bytes,
                         tpl_buffers):
  """Rough per-step VMEM footprint (blocks + f32 intermediates)."""
  blocks = (tpl_buffers * T * P * C * act_bytes      # template tiles (buffered)
            + 2 * P * QC * act_bytes                 # query tiles
            + 2 * P * QC * out_bytes)                # output tiles
  weights = 2 * (QC * HKD + C * (HKD + HVD) + HVD * QC) * act_bytes + 2 * QC * 4
  interm = 4 * (T * P * (HKD + HVD)                  # f32 kv projection (dominant)
                + P * HKD + P * HVD + P * QC
                + 4 * T * P)                         # logits / exp / weights slack
  return blocks + weights + interm


def _pick_pixel_tile(NP, budget_bytes, est_fn, *, max_tile=4096, min_steps=1):
  """Largest multiple-of-8 divisor of NP (NP % 8 == 0) whose footprint fits."""
  cands = [d for d in range(8, min(NP, max_tile) + 1, 8) if NP % d == 0]
  if NP <= max_tile and NP not in cands:
    cands.append(NP)           # full extent is always a legal block
  cands = sorted(set(cands), reverse=True)
  if not cands:
    return NP
  stepped = [p for p in cands if NP // p >= min_steps]
  search = stepped if stepped else cands
  for p in search:
    if est_fn(p) <= budget_bytes:
      return p
  return search[-1]


def template_attention_pallas(query_embedding, template_pair_representation,
                              template_mask, params, *, num_head, key_dim,
                              value_dim, compute_dtype=jnp.bfloat16,
                              pixel_tile=None, vmem_limit_bytes=None,
                              template_buffer_count=2, max_pixel_tile=4096):
  B, N, _, QC = query_embedding.shape
  T = template_mask.shape[-1]
  C = template_pair_representation.shape[-1]
  NP = N * N
  out_dtype = query_embedding.dtype
  compute_dtype = (jnp.dtype(compute_dtype)
                   if compute_dtype is not None else jnp.dtype(out_dtype))

  HKD = num_head * key_dim
  HVD = num_head * value_dim
  GD = key_dim + value_dim

  if vmem_limit_bytes is None:
    vmem_limit_bytes = _default_vmem_limit_bytes()

  act_bytes = jnp.dtype(compute_dtype).itemsize
  out_bytes = jnp.dtype(out_dtype).itemsize
  est = functools.partial(_estimate_vmem_bytes, T=T, C=C, QC=QC, HKD=HKD,
                          HVD=HVD, act_bytes=act_bytes, out_bytes=out_bytes,
                          tpl_buffers=max(2, template_buffer_count))

  # Pad the flattened pixel axis to a multiple of 8 so a legal sub-image tile
  # always exists (never fall back to the whole image for awkward N).
  NP_pad = ((NP + 7) // 8) * 8

  if pixel_tile is None:
    P = _pick_pixel_tile(NP_pad, int(0.8 * vmem_limit_bytes), est,
                         max_tile=max_pixel_tile,
                         min_steps=2 if B == 1 else 1)
  else:
    P = pixel_tile
  assert NP_pad % P == 0 and (P % 8 == 0 or P == NP_pad), (P, NP_pad)

  # Free reshapes only; activations fed to the MXU in compute_dtype (bf16 by
  # default) — no HBM transpose of the dominant template tensor.
  flat_q = query_embedding.reshape(B, NP, QC).astype(compute_dtype)
  flat_t = template_pair_representation.reshape(B, T, NP, C).astype(compute_dtype)
  if NP_pad != NP:
    flat_q = jnp.pad(flat_q, ((0, 0), (0, NP_pad - NP), (0, 0)))
    flat_t = jnp.pad(flat_t, ((0, 0), (0, 0), (0, NP_pad - NP), (0, 0)))

  # Binary template mask as int32 scalars in SMEM via scalar prefetch: no VMEM
  # mask block / per-step DMA, and all-masked batches skip the compute entirely.
  mask_i = (template_mask.reshape(B, T) > 0).astype(jnp.int32)

  qw = params["query_w"].reshape(QC, HKD).astype(compute_dtype)
  # Fused K/V projection with per-head [K_h | V_h] column groups so each head
  # slices one contiguous lane group of the projected activations.
  kv_w = jnp.concatenate([params["key_w"], params["value_w"]],
                         axis=-1).reshape(C, num_head * GD).astype(compute_dtype)
  ow = params["output_w"].reshape(HVD, QC).astype(compute_dtype)
  ob = params["output_b"].reshape(1, QC).astype(jnp.float32)

  kernel = functools.partial(_template_attention_kernel, num_head=num_head,
                             key_dim=key_dim, value_dim=value_dim)

  tpl_spec_kwargs = {}
  if template_buffer_count > 2:
    # Optional third buffer on the template stream (v5e, DMA-exposed cases).
    tpl_spec_kwargs["pipeline_mode"] = pl.Buffered(template_buffer_count)

  # TODO(synk): if QC < 128, a lane-dense fused (P*QC) output slab would avoid
  # masked partial stores; QC is typically 128 in production.
  grid = (B, NP_pad // P)
  out = pl.pallas_call(
      kernel,
      out_shape=jax.ShapeDtypeStruct((B, NP_pad, QC), out_dtype),
      grid_spec=pltpu.PrefetchScalarGridSpec(
          num_scalar_prefetch=1,
          grid=grid,
          in_specs=[
              pl.BlockSpec((1, P, QC), lambda b, i, m: (b, i, 0)),   # query pixels
              pl.BlockSpec((1, T, P, C), lambda b, i, m: (b, 0, i, 0),
                           **tpl_spec_kwargs),                        # templates
              pl.BlockSpec((QC, HKD), lambda b, i, m: (0, 0)),        # query_w
              pl.BlockSpec((C, num_head * GD), lambda b, i, m: (0, 0)),  # kv_w
              pl.BlockSpec((HVD, QC), lambda b, i, m: (0, 0)),        # output_w
              pl.BlockSpec((1, QC), lambda b, i, m: (0, 0)),          # output_b
          ],
          out_specs=pl.BlockSpec((1, P, QC), lambda b, i, m: (b, i, 0)),
          scratch_shapes=[pltpu.VMEM((P, HVD), jnp.float32)],
      ),
      compiler_params=pltpu.CompilerParams(
          dimension_semantics=("parallel", "parallel"),
          vmem_limit_bytes=int(vmem_limit_bytes)),
  )(mask_i, flat_q, flat_t, qw, kv_w, ow, ob)

  if NP_pad != NP:
    out = out[:, :NP]
  return out.reshape(B, N, N, QC)


def template_attention_reference(query_embedding, tpr, template_mask, params,
                                 *, num_head, key_dim, value_dim):
  """Pure-JAX mirror of the PyTorch forward (gating=False, as in AF2 config)."""
  B, N, _, QC = query_embedding.shape
  T = template_mask.shape[-1]
  C = tpr.shape[-1]
  flat_q = query_embedding.reshape(B, N * N, 1, QC)
  flat_t = jnp.transpose(tpr, (0, 2, 3, 1, 4)).reshape(B, N * N, T, C)
  bias = FP16_HUGE * (template_mask[:, None, None, None, :] - 1.0)

  q = jnp.einsum("bpqa,ahc->bpqhc", flat_q, params["query_w"]) * key_dim ** -0.5
  k = jnp.einsum("bpka,ahc->bpkhc", flat_t, params["key_w"])
  v = jnp.einsum("bpka,ahc->bpkhc", flat_t, params["value_w"])
  logits = jnp.einsum("bpqhc,bpkhc->bphqk", q, k) + bias
  w = jax.nn.softmax(logits, axis=-1)
  wa = jnp.einsum("bphqk,bpkhc->bpqhc", w, v)
  out = jnp.einsum("bpqhc,hco->bpqo", wa, params["output_w"]) + params["output_b"]
  out = out.reshape(B, N, N, QC)
  tmask = (jnp.sum(template_mask.reshape(B, -1), axis=1) > 0.0).astype(out.dtype)
  return out * tmask[:, None, None, None]


if __name__ == "__main__":
  # Small shapes consistent with the module's forward.
  B, N, T = 2, 8, 4          # batch, num_res, num_templates
  QC = 32                    # query_num_channels (pair channels)
  C = 16                     # template pair channels
  H = 4                      # attention num_head
  KD, VD = 8, 4              # per-head key / value dims

  key = jax.random.PRNGKey(0)
  kq, kt, k1, k2, k3, k4 = jax.random.split(key, 6)

  query_embedding = jax.random.normal(kq, (B, N, N, QC), jnp.float32)
  template_pair_representation = jax.random.normal(kt, (B, T, N, N, C), jnp.float32)
  template_mask = jnp.array([[1.0, 1.0, 0.0, 1.0],
                             [0.0, 1.0, 1.0, 1.0]], jnp.float32)

  params = {
      "query_w": 0.1 * jax.random.normal(k1, (QC, H, KD), jnp.float32),
      "key_w": 0.1 * jax.random.normal(k2, (C, H, KD), jnp.float32),
      "value_w": 0.1 * jax.random.normal(k3, (C, H, VD), jnp.float32),
      "output_w": 0.1 * jax.random.normal(k4, (H, VD, QC), jnp.float32),
      "output_b": jnp.zeros((QC,), jnp.float32),
  }
  # TODO(synk): config.attention.gating is False for template pointwise attention
  # in AlphaFold; the gating branch is therefore intentionally not implemented.

  ref = template_attention_reference(
      query_embedding, template_pair_representation, template_mask, params,
      num_head=H, key_dim=KD, value_dim=VD)

  # 1) f32 MXU path: tight check against the f32 reference.
  out_f32 = template_attention_pallas(
      query_embedding, template_pair_representation, template_mask, params,
      num_head=H, key_dim=KD, value_dim=VD, compute_dtype=jnp.float32)
  out_f32 = jax.block_until_ready(out_f32)
  np.testing.assert_allclose(np.asarray(out_f32), np.asarray(ref),
                             rtol=1e-3, atol=1e-3)

  # 2) default bf16 MXU path (activations + weights cast in the wrapper): looser check.
  out_bf16 = template_attention_pallas(
      query_embedding.astype(jnp.bfloat16),
      template_pair_representation.astype(jnp.bfloat16),
      template_mask, params, num_head=H, key_dim=KD, value_dim=VD)
  out_bf16 = jax.block_until_ready(out_bf16)
  np.testing.assert_allclose(np.asarray(out_bf16.astype(jnp.float32)),
                             np.asarray(ref), rtol=5e-2, atol=5e-2)

  print("KERNEL_OK")
</pallas_src>

<mosaic_0001>
module attributes {stable_mosaic.version = 11 : i64} {
  func.func @_template_attention_kernel(%arg0: i32, %arg1: i32, %arg2: memref<2x4xi32, #tpu.memory_space<smem>>, %arg3: memref<1x64x32xf32, #tpu.memory_space<vmem>>, %arg4: memref<1x4x64x16xf32, #tpu.memory_space<vmem>>, %arg5: memref<32x32xf32, #tpu.memory_space<vmem>>, %arg6: memref<16x48xf32, #tpu.memory_space<vmem>>, %arg7: memref<16x32xf32, #tpu.memory_space<vmem>>, %arg8: memref<1x32xf32, #tpu.memory_space<vmem>>, %arg9: memref<1x64x32xf32, #tpu.memory_space<vmem>>, %arg10: memref<64x16xf32, #tpu.memory_space<vmem>>) attributes {dimension_semantics = [#tpu.dimension_semantics<parallel>, #tpu.dimension_semantics<parallel>], iteration_bounds = array<i64: 2, 1>, scalar_prefetch = 1 : i64, scratch_operands = 1 : i64, tpu.core_type = #tpu.core_type<tc>, window_params = [{transform_indices = @transform_0, window_bounds = array<i64: 1, 64, 32>}, {transform_indices = @transform_1, window_bounds = array<i64: 1, 4, 64, 16>}, {pipeline_mode = #tpu.pipeline_mode<synchronous>, transform_indices = @transform_2, window_bounds = array<i64: 32, 32>}, {pipeline_mode = #tpu.pipeline_mode<synchronous>, transform_indices = @transform_3, window_bounds = array<i64: 16, 48>}, {pipeline_mode = #tpu.pipeline_mode<synchronous>, transform_indices = @transform_4, window_bounds = array<i64: 16, 32>}, {pipeline_mode = #tpu.pipeline_mode<synchronous>, transform_indices = @transform_5, window_bounds = array<i64: 1, 32>}, {transform_indices = @transform_6, window_bounds = array<i64: 1, 64, 32>}]} {
    %0 = arith.index_cast %arg0 : i32 to index
    %c0 = arith.constant 0 : index
    %1 = memref.load %arg2[%0, %c0] : memref<2x4xi32, #tpu.memory_space<smem>>
    %2 = arith.index_cast %arg0 : i32 to index
    %c1 = arith.constant 1 : index
    %3 = memref.load %arg2[%2, %c1] : memref<2x4xi32, #tpu.memory_space<smem>>
    %4 = arith.addi %1, %3 : i32
    %5 = arith.index_cast %arg0 : i32 to index
    %c2 = arith.constant 2 : index
    %6 = memref.load %arg2[%5, %c2] : memref<2x4xi32, #tpu.memory_space<smem>>
    %7 = arith.addi %4, %6 : i32
    %8 = arith.index_cast %arg0 : i32 to index
    %c3 = arith.constant 3 : index
    %9 = memref.load %arg2[%8, %c3] : memref<2x4xi32, #tpu.memory_space<smem>>
    %10 = arith.addi %7, %9 : i32
    %c0_i32 = arith.constant 0 : i32
    %11 = arith.cmpi sgt, %10, %c0_i32 : i32
    %12 = arith.extui %11 : i1 to i32
    %c0_i32_0 = arith.constant 0 : i32
    %13 = arith.cmpi ne, %12, %c0_i32_0 : i32
    scf.if %13 {
      %17 = tpu.iota {dimensions = array<i32: 0>} : vector<4x1x1xi32>
      %cst = arith.constant 0.000000e+00 : f32
      %18 = vector.broadcast %cst : f32 to vector<4x1x1xf32>
      %19 = arith.index_cast %arg0 : i32 to index
      %c0_2 = arith.constant 0 : index
      %20 = memref.load %arg2[%19, %c0_2] : memref<2x4xi32, #tpu.memory_space<smem>>
      %21 = arith.sitofp %20 : i32 to f32
      %c0_i32_3 = arith.constant 0 : i32
      %22 = vector.broadcast %c0_i32_3 : i32 to vector<4x1x1xi32>
      %23 = arith.cmpi eq, %17, %22 : vector<4x1x1xi32>
      %cst_4 = arith.constant 1.000000e+00 : f32
      %24 = arith.subf %21, %cst_4 : f32
      %cst_5 = arith.constant 6.550400e+04 : f32
      %25 = arith.mulf %cst_5, %24 : f32
      %26 = vector.broadcast %25 : f32 to vector<4x1x1xf32>
      %27 = arith.select %23, %26, %18 : vector<4x1x1xi1>, vector<4x1x1xf32>
      %28 = arith.index_cast %arg0 : i32 to index
      %c1_6 = arith.constant 1 : index
      %29 = memref.load %arg2[%28, %c1_6] : memref<2x4xi32, #tpu.memory_space<smem>>
      %30 = arith.sitofp %29 : i32 to f32
      %c1_i32 = arith.constant 1 : i32
      %31 = vector.broadcast %c1_i32 : i32 to vector<4x1x1xi32>
      %32 = arith.cmpi eq, %17, %31 : vector<4x1x1xi32>
      %cst_7 = arith.constant 1.000000e+00 : f32
      %33 = arith.subf %30, %cst_7 : f32
      %cst_8 = arith.constant 6.550400e+04 : f32
      %34 = arith.mulf %cst_8, %33 : f32
      %35 = vector.broadcast %34 : f32 to vector<4x1x1xf32>
      %36 = arith.select %32, %35, %27 : vector<4x1x1xi1>, vector<4x1x1xf32>
      %37 = arith.index_cast %arg0 : i32 to index
      %c2_9 = arith.constant 2 : index
      %38 = memref.load %arg2[%37, %c2_9] : memref<2x4xi32, #tpu.memory_space<smem>>
      %39 = arith.sitofp %38 : i32 to f32
      %c2_i32 = arith.constant 2 : i32
      %40 = vector.broadcast %c2_i32 : i32 to vector<4x1x1xi32>
      %41 = arith.cmpi eq, %17, %40 : vector<4x1x1xi32>
      %cst_10 = arith.constant 1.000000e+00 : f32
      %42 = arith.subf %39, %cst_10 : f32
      %cst_11 = arith.constant 6.550400e+04 : f32
      %43 = arith.mulf %cst_11, %42 : f32
      %44 = vector.broadcast %43 : f32 to vector<4x1x1xf32>
      %45 = arith.select %41, %44, %36 : vector<4x1x1xi1>, vector<4x1x1xf32>
      %46 = arith.index_cast %arg0 : i32 to index
      %c3_12 = arith.constant 3 : index
      %47 = memref.load %arg2[%46, %c3_12] : memref<2x4xi32, #tpu.memory_space<smem>>
      %48 = arith.sitofp %47 : i32 to f32
      %c3_i32 = arith.constant 3 : i32
      %49 = vector.broadcast %c3_i32 : i32 to vector<4x1x1xi32>
      %50 = arith.cmpi eq, %17, %49 : vector<4x1x1xi32>
      %cst_13 = arith.constant 1.000000e+00 : f32
      %51 = arith.subf %48, %cst_13 : f32
      %cst_14 = arith.constant 6.550400e+04 : f32
      %52 = arith.mulf %cst_14, %51 : f32
      %53 = vector.broadcast %52 : f32 to vector<4x1x1xf32>
      %54 = arith.select %50, %53, %45 : vector<4x1x1xi1>, vector<4x1x1xf32>
      %c0_15 = arith.constant 0 : index
      %c0_16 = arith.constant 0 : index
      %c0_17 = arith.constant 0 : index
      %55 = vector.load %arg3[%c0_15, %c0_16, %c0_17] : memref<1x64x32xf32, #tpu.memory_space<vmem>>, vector<1x64x32xf32>
      %56 = vector.shape_cast %55 : vector<1x64x32xf32> to vector<64x32xf32>
      %c0_18 = arith.constant 0 : index
      %c0_19 = arith.constant 0 : index
      %c0_20 = arith.constant 0 : index
      %c0_21 = arith.constant 0 : index
      %57 = vector.load %arg4[%c0_18, %c0_19, %c0_20, %c0_21] : memref<1x4x64x16xf32, #tpu.memory_space<vmem>>, vector<1x4x64x16xf32>
      %58 = vector.shape_cast %57 : vector<1x4x64x16xf32> to vector<4x64x16xf32>
      %59 = vector.shape_cast %58 : vector<4x64x16xf32> to vector<256x16xf32>
      %c0_22 = arith.constant 0 : index
      %c0_23 = arith.constant 0 : index
      %60 = vector.load %arg5[%c0_22, %c0_23] : memref<32x32xf32, #tpu.memory_space<vmem>>, vector<32x32xf32>
      %cst_24 = arith.constant dense<0.000000e+00> : vector<64x32xf32>
      %61 = tpu.matmul %56, %60, %cst_24 {dimension_numbers = #tpu.dot_dimension_numbers<[1], [0], [0], [1], [0, 0, 1, 1], [], []>} : vector<64x32xf32>, vector<32x32xf32>, vector<64x32xf32> -> vector<64x32xf32>
      %cst_25 = arith.constant 0.353553385 : f32
      %62 = vector.broadcast %cst_25 : f32 to vector<64x32xf32>
      %63 = arith.mulf %61, %62 : vector<64x32xf32>
      %c0_26 = arith.constant 0 : index
      %c0_27 = arith.constant 0 : index
      %64 = vector.load %arg6[%c0_26, %c0_27] : memref<16x48xf32, #tpu.memory_space<vmem>>, vector<16x48xf32>
      %cst_28 = arith.constant dense<0.000000e+00> : vector<256x48xf32>
      %65 = tpu.matmul %59, %64, %cst_28 {dimension_numbers = #tpu.dot_dimension_numbers<[1], [0], [0], [1], [0, 0, 1, 1], [], []>} : vector<256x16xf32>, vector<16x48xf32>, vector<256x48xf32> -> vector<256x48xf32>
      %66 = vector.extract_strided_slice %63 {offsets = [0, 0], sizes = [64, 8], strides = [1, 1]} : vector<64x32xf32> to vector<64x8xf32>
      %67 = vector.extract_strided_slice %65 {offsets = [0, 0], sizes = [256, 12], strides = [1, 1]} : vector<256x48xf32> to vector<256x12xf32>
      %68 = vector.extract_strided_slice %67 {offsets = [0, 0], sizes = [256, 8], strides = [1, 1]} : vector<256x12xf32> to vector<256x8xf32>
      %69 = vector.shape_cast %68 : vector<256x8xf32> to vector<4x64x8xf32>
      %70 = vector.extract_strided_slice %67 {offsets = [0, 8], sizes = [256, 4], strides = [1, 1]} : vector<256x12xf32> to vector<256x4xf32>
      %71 = vector.shape_cast %70 : vector<256x4xf32> to vector<4x64x4xf32>
      %72 = vector.shape_cast %66 : vector<64x8xf32> to vector<1x64x8xf32>
      %73 = vector.broadcast %72 : vector<1x64x8xf32> to vector<4x64x8xf32>
      %74 = arith.mulf %73, %69 : vector<4x64x8xf32>
      %cst_29 = arith.constant dense<0.000000e+00> : vector<4x64xf32>
      %75 = vector.multi_reduction <add>, %74, %cst_29 [2] : vector<4x64x8xf32> to vector<4x64xf32>
      %76 = vector.shape_cast %75 : vector<4x64xf32> to vector<4x64x1xf32>
      %77 = vector.broadcast %54 : vector<4x1x1xf32> to vector<4x64x1xf32>
      %78 = arith.addf %76, %77 : vector<4x64x1xf32>
      %cst_30 = arith.constant dense<0xFF800000> : vector<64x1xf32>
      %79 = vector.multi_reduction <maximumf>, %78, %cst_30 [0] : vector<4x64x1xf32> to vector<64x1xf32>
      %80 = vector.shape_cast %79 : vector<64x1xf32> to vector<1x64x1xf32>
      %81 = vector.broadcast %80 : vector<1x64x1xf32> to vector<4x64x1xf32>
      %82 = arith.subf %78, %81 : vector<4x64x1xf32>
      %83 = math.exp %82 : vector<4x64x1xf32>
      %cst_31 = arith.constant dense<0.000000e+00> : vector<64x1xf32>
      %84 = vector.multi_reduction <add>, %83, %cst_31 [0] : vector<4x64x1xf32> to vector<64x1xf32>
      %85 = vector.shape_cast %84 : vector<64x1xf32> to vector<1x64x1xf32>
      %86 = tpu.reciprocal %85 {approx = true} : vector<1x64x1xf32> -> vector<1x64x1xf32>
      %87 = arith.mulf %85, %86 : vector<1x64x1xf32>
      %cst_32 = arith.constant 2.000000e+00 : f32
      %88 = vector.broadcast %cst_32 : f32 to vector<1x64x1xf32>
      %89 = arith.subf %88, %87 : vector<1x64x1xf32>
      %90 = arith.mulf %86, %89 : vector<1x64x1xf32>
      %91 = vector.broadcast %90 : vector<1x64x1xf32> to vector<4x64x1xf32>
      %92 = arith.mulf %83, %91 : vector<4x64x1xf32>
      %93 = vector.broadcast %92 : vector<4x64x1xf32> to vector<4x64x4xf32>
      %94 = arith.mulf %93, %71 : vector<4x64x4xf32>
      %cst_33 = arith.constant dense<0.000000e+00> : vector<64x4xf32>
      %95 = vector.multi_reduction <add>, %94, %cst_33 [0] : vector<4x64x4xf32> to vector<64x4xf32>
      %c0_34 = arith.constant 0 : index
      %c0_35 = arith.constant 0 : index
      %96 = vector.load %arg10[%c0_34, %c0_35] : memref<64x16xf32, #tpu.memory_space<vmem>>, vector<64x4xf32>
      tpu.vector_store %arg10[%c0_34, %c0_35], %95 {strides = array<i32>} : memref<64x16xf32, #tpu.memory_space<vmem>>, vector<64x4xf32>,
      %97 = vector.extract_strided_slice %63 {offsets = [0, 8], sizes = [64, 8], strides = [1, 1]} : vector<64x32xf32> to vector<64x8xf32>
      %98 = vector.extract_strided_slice %65 {offsets = [0, 12], sizes = [256, 12], strides = [1, 1]} : vector<256x48xf32> to vector<256x12xf32>
      %99 = vector.extract_strided_slice %98 {offsets = [0, 0], sizes = [256, 8], strides = [1, 1]} : vector<256x12xf32> to vector<256x8xf32>
      %100 = vector.shape_cast %99 : vector<256x8xf32> to vector<4x64x8xf32>
      %101 = vector.extract_strided_slice %98 {offsets = [0, 8], sizes = [256, 4], strides = [1, 1]} : vector<256x12xf32> to vector<256x4xf32>
      %102 = vector.shape_cast %101 : vector<256x4xf32> to vector<4x64x4xf32>
      %103 = vector.shape_cast %97 : vector<64x8xf32> to vector<1x64x8xf32>
      %104 = vector.broadcast %103 : vector<1x64x8xf32> to vector<4x64x8xf32>
      %105 = arith.mulf %104, %100 : vector<4x64x8xf32>
      %cst_36 = arith.constant dense<0.000000e+00> : vector<4x64xf32>
      %106 = vector.multi_reduction <add>, %105, %cst_36 [2] : vector<4x64x8xf32> to vector<4x64xf32>
      %107 = vector.shape_cast %106 : vector<4x64xf32> to vector<4x64x1xf32>
      %108 = vector.broadcast %54 : vector<4x1x1xf32> to vector<4x64x1xf32>
      %109 = arith.addf %107, %108 : vector<4x64x1xf32>
      %cst_37 = arith.constant dense<0xFF800000> : vector<64x1xf32>
      %110 = vector.multi_reduction <maximumf>, %109, %cst_37 [0] : vector<4x64x1xf32> to vector<64x1xf32>
      %111 = vector.shape_cast %110 : vector<64x1xf32> to vector<1x64x1xf32>
      %112 = vector.broadcast %111 : vector<1x64x1xf32> to vector<4x64x1xf32>
      %113 = arith.subf %109, %112 : vector<4x64x1xf32>
      %114 = math.exp %113 : vector<4x64x1xf32>
      %cst_38 = arith.constant dense<0.000000e+00> : vector<64x1xf32>
      %115 = vector.multi_reduction <add>, %114, %cst_38 [0] : vector<4x64x1xf32> to vector<64x1xf32>
      %116 = vector.shape_cast %115 : vector<64x1xf32> to vector<1x64x1xf32>
      %117 = tpu.reciprocal %116 {approx = true} : vector<1x64x1xf32> -> vector<1x64x1xf32>
      %118 = arith.mulf %116, %117 : vector<1x64x1xf32>
      %cst_39 = arith.constant 2.000000e+00 : f32
      %119 = vector.broadcast %cst_39 : f32 to vector<1x64x1xf32>
      %120 = arith.subf %119, %118 : vector<1x64x1xf32>
      %121 = arith.mulf %117, %120 : vector<1x64x1xf32>
      %122 = vector.broadcast %121 : vector<1x64x1xf32> to vector<4x64x1xf32>
      %123 = arith.mulf %114, %122 : vector<4x64x1xf32>
      %124 = vector.broadcast %123 : vector<4x64x1xf32> to vector<4x64x4xf32>
      %125 = arith.mulf %124, %102 : vector<4x64x4xf32>
      %cst_40 = arith.constant dense<0.000000e+00> : vector<64x4xf32>
      %126 = vector.multi_reduction <add>, %125, %cst_40 [0] : vector<4x64x4xf32> to vector<64x4xf32>
      %c0_41 = arith.constant 0 : index
      %c4 = arith.constant 4 : index
      %127 = vector.load %arg10[%c0_41, %c4] : memref<64x16xf32, #tpu.memory_space<vmem>>, vector<64x4xf32>
      tpu.vector_store %arg10[%c0_41, %c4], %126 {strides = array<i32>} : memref<64x16xf32, #tpu.memory_space<vmem>>, vector<64x4xf32>,
      %128 = vector.extract_strided_slice %63 {offsets = [0, 16], sizes = [64, 8], strides = [1, 1]} : vector<64x32xf32> to vector<64x8xf32>
      %129 = vector.extract_strided_slice %65 {offsets = [0, 24], sizes = [256, 12], strides = [1, 1]} : vector<256x48xf32> to vector<256x12xf32>
      %130 = vector.extract_strided_slice %129 {offsets = [0, 0], sizes = [256, 8], strides = [1, 1]} : vector<256x12xf32> to vector<256x8xf32>
      %131 = vector.shape_cast %130 : vector<256x8xf32> to vector<4x64x8xf32>
      %132 = vector.extract_strided_slice %129 {offsets = [0, 8], sizes = [256, 4], strides = [1, 1]} : vector<256x12xf32> to vector<256x4xf32>
      %133 = vector.shape_cast %132 : vector<256x4xf32> to vector<4x64x4xf32>
      %134 = vector.shape_cast %128 : vector<64x8xf32> to vector<1x64x8xf32>
      %135 = vector.broadcast %134 : vector<1x64x8xf32> to vector<4x64x8xf32>
      %136 = arith.mulf %135, %131 : vector<4x64x8xf32>
      %cst_42 = arith.constant dense<0.000000e+00> : vector<4x64xf32>
      %137 = vector.multi_reduction <add>, %136, %cst_42 [2] : vector<4x64x8xf32> to vector<4x64xf32>
      %138 = vector.shape_cast %137 : vector<4x64xf32> to vector<4x64x1xf32>
      %139 = vector.broadcast %54 : vector<4x1x1xf32> to vector<4x64x1xf32>
      %140 = arith.addf %138, %139 : vector<4x64x1xf32>
      %cst_43 = arith.constant dense<0xFF800000> : vector<64x1xf32>
      %141 = vector.multi_reduction <maximumf>, %140, %cst_43 [0] : vector<4x64x1xf32> to vector<64x1xf32>
      %142 = vector.shape_cast %141 : vector<64x1xf32> to vector<1x64x1xf32>
      %143 = vector.broadcast %142 : vector<1x64x1xf32> to vector<4x64x1xf32>
      %144 = arith.subf %140, %143 : vector<4x64x1xf32>
      %145 = math.exp %144 : vector<4x64x1xf32>
      %cst_44 = arith.constant dense<0.000000e+00> : vector<64x1xf32>
      %146 = vector.multi_reduction <add>, %145, %cst_44 [0] : vector<4x64x1xf32> to vector<64x1xf32>
      %147 = vector.shape_cast %146 : vector<64x1xf32> to vector<1x64x1xf32>
      %148 = tpu.reciprocal %147 {approx = true} : vector<1x64x1xf32> -> vector<1x64x1xf32>
      %149 = arith.mulf %147, %148 : vector<1x64x1xf32>
      %cst_45 = arith.constant 2.000000e+00 : f32
      %150 = vector.broadcast %cst_45 : f32 to vector<1x64x1xf32>
      %151 = arith.subf %150, %149 : vector<1x64x1xf32>
      %152 = arith.mulf %148, %151 : vector<1x64x1xf32>
      %153 = vector.broadcast %152 : vector<1x64x1xf32> to vector<4x64x1xf32>
      %154 = arith.mulf %145, %153 : vector<4x64x1xf32>
      %155 = vector.broadcast %154 : vector<4x64x1xf32> to vector<4x64x4xf32>
      %156 = arith.mulf %155, %133 : vector<4x64x4xf32>
      %cst_46 = arith.constant dense<0.000000e+00> : vector<64x4xf32>
      %157 = vector.multi_reduction <add>, %156, %cst_46 [0] : vector<4x64x4xf32> to vector<64x4xf32>
      %c0_47 = arith.constant 0 : index
      %c8 = arith.constant 8 : index
      %158 = vector.load %arg10[%c0_47, %c8] : memref<64x16xf32, #tpu.memory_space<vmem>>, vector<64x4xf32>
      tpu.vector_store %arg10[%c0_47, %c8], %157 {strides = array<i32>} : memref<64x16xf32, #tpu.memory_space<vmem>>, vector<64x4xf32>,
      %159 = vector.extract_strided_slice %63 {offsets = [0, 24], sizes = [64, 8], strides = [1, 1]} : vector<64x32xf32> to vector<64x8xf32>
      %160 = vector.extract_strided_slice %65 {offsets = [0, 36], sizes = [256, 12], strides = [1, 1]} : vector<256x48xf32> to vector<256x12xf32>
      %161 = vector.extract_strided_slice %160 {offsets = [0, 0], sizes = [256, 8], strides = [1, 1]} : vector<256x12xf32> to vector<256x8xf32>
      %162 = vector.shape_cast %161 : vector<256x8xf32> to vector<4x64x8xf32>
      %163 = vector.extract_strided_slice %160 {offsets = [0, 8], sizes = [256, 4], strides = [1, 1]} : vector<256x12xf32> to vector<256x4xf32>
      %164 = vector.shape_cast %163 : vector<256x4xf32> to vector<4x64x4xf32>
      %165 = vector.shape_cast %159 : vector<64x8xf32> to vector<1x64x8xf32>
      %166 = vector.broadcast %165 : vector<1x64x8xf32> to vector<4x64x8xf32>
      %167 = arith.mulf %166, %162 : vector<4x64x8xf32>
      %cst_48 = arith.constant dense<0.000000e+00> : vector<4x64xf32>
      %168 = vector.multi_reduction <add>, %167, %cst_48 [2] : vector<4x64x8xf32> to vector<4x64xf32>
      %169 = vector.shape_cast %168 : vector<4x64xf32> to vector<4x64x1xf32>
      %170 = vector.broadcast %54 : vector<4x1x1xf32> to vector<4x64x1xf32>
      %171 = arith.addf %169, %170 : vector<4x64x1xf32>
      %cst_49 = arith.constant dense<0xFF800000> : vector<64x1xf32>
      %172 = vector.multi_reduction <maximumf>, %171, %cst_49 [0] : vector<4x64x1xf32> to vector<64x1xf32>
      %173 = vector.shape_cast %172 : vector<64x1xf32> to vector<1x64x1xf32>
      %174 = vector.broadcast %173 : vector<1x64x1xf32> to vector<4x64x1xf32>
      %175 = arith.subf %171, %174 : vector<4x64x1xf32>
      %176 = math.exp %175 : vector<4x64x1xf32>
      %cst_50 = arith.constant dense<0.000000e+00> : vector<64x1xf32>
      %177 = vector.multi_reduction <add>, %176, %cst_50 [0] : vector<4x64x1xf32> to vector<64x1xf32>
      %178 = vector.shape_cast %177 : vector<64x1xf32> to vector<1x64x1xf32>
      %179 = tpu.reciprocal %178 {approx = true} : vector<1x64x1xf32> -> vector<1x64x1xf32>
      %180 = arith.mulf %178, %179 : vector<1x64x1xf32>
      %cst_51 = arith.constant 2.000000e+00 : f32
      %181 = vector.broadcast %cst_51 : f32 to vector<1x64x1xf32>
      %182 = arith.subf %181, %180 : vector<1x64x1xf32>
      %183 = arith.mulf %179, %182 : vector<1x64x1xf32>
      %184 = vector.broadcast %183 : vector<1x64x1xf32> to vector<4x64x1xf32>
      %185 = arith.mulf %176, %184 : vector<4x64x1xf32>
      %186 = vector.broadcast %185 : vector<4x64x1xf32> to vector<4x64x4xf32>
      %187 = arith.mulf %186, %164 : vector<4x64x4xf32>
      %cst_52 = arith.constant dense<0.000000e+00> : vector<64x4xf32>
      %188 = vector.multi_reduction <add>, %187, %cst_52 [0] : vector<4x64x4xf32> to vector<64x4xf32>
      %c0_53 = arith.constant 0 : index
      %c12 = arith.constant 12 : index
      %189 = vector.load %arg10[%c0_53, %c12] : memref<64x16xf32, #tpu.memory_space<vmem>>, vector<64x4xf32>
      tpu.vector_store %arg10[%c0_53, %c12], %188 {strides = array<i32>} : memref<64x16xf32, #tpu.memory_space<vmem>>, vector<64x4xf32>,
      %c0_54 = arith.constant 0 : index
      %c0_55 = arith.constant 0 : index
      %190 = vector.load %arg10[%c0_54, %c0_55] : memref<64x16xf32, #tpu.memory_space<vmem>>, vector<64x16xf32>
      %c0_56 = arith.constant 0 : index
      %c0_57 = arith.constant 0 : index
      %191 = vector.load %arg7[%c0_56, %c0_57] : memref<16x32xf32, #tpu.memory_space<vmem>>, vector<16x32xf32>
      %cst_58 = arith.constant dense<0.000000e+00> : vector<64x32xf32>
      %192 = tpu.matmul %190, %191, %cst_58 {dimension_numbers = #tpu.dot_dimension_numbers<[1], [0], [0], [1], [0, 0, 1, 1], [], []>} : vector<64x16xf32>, vector<16x32xf32>, vector<64x32xf32> -> vector<64x32xf32>
      %c0_59 = arith.constant 0 : index
      %c0_60 = arith.constant 0 : index
      %193 = vector.load %arg8[%c0_59, %c0_60] : memref<1x32xf32, #tpu.memory_space<vmem>>, vector<1x32xf32>
      %194 = vector.shape_cast %193 : vector<1x32xf32> to vector<32xf32>
      %195 = vector.shape_cast %194 : vector<32xf32> to vector<1x32xf32>
      %196 = vector.broadcast %195 : vector<1x32xf32> to vector<64x32xf32>
      %197 = arith.addf %192, %196 : vector<64x32xf32>
      %c0_61 = arith.constant 0 : index
      %c0_62 = arith.constant 0 : index
      %c0_63 = arith.constant 0 : index
      %198 = vector.load %arg9[%c0_61, %c0_62, %c0_63] : memref<1x64x32xf32, #tpu.memory_space<vmem>>, vector<1x64x32xf32>
      %199 = vector.shape_cast %198 : vector<1x64x32xf32> to vector<64x32xf32>
      %200 = vector.shape_cast %197 : vector<64x32xf32> to vector<1x64x32xf32>
      tpu.vector_store %arg9[%c0_61, %c0_62, %c0_63], %200 {strides = array<i32>} : memref<1x64x32xf32, #tpu.memory_space<vmem>>, vector<1x64x32xf32>,
    } else {
    }
    %true = arith.constant true
    %14 = arith.xori %11, %true : i1
    %15 = arith.extui %14 : i1 to i32
    %c0_i32_1 = arith.constant 0 : i32
    %16 = arith.cmpi ne, %15, %c0_i32_1 : i32
    scf.if %16 {
      %cst = arith.constant 0.000000e+00 : f32
      %17 = vector.broadcast %cst : f32 to vector<1x64x32xf32>
      %c0_2 = arith.constant 0 : index
      %c0_3 = arith.constant 0 : index
      %c0_4 = arith.constant 0 : index
      %18 = vector.load %arg9[%c0_2, %c0_3, %c0_4] : memref<1x64x32xf32, #tpu.memory_space<vmem>>, vector<1x64x32xf32>
      tpu.vector_store %arg9[%c0_2, %c0_3, %c0_4], %17 {strides = array<i32>} : memref<1x64x32xf32, #tpu.memory_space<vmem>>, vector<1x64x32xf32>,
    } else {
    }
    return
  }
  func.func @transform_0(%arg0: i32, %arg1: i32, %arg2: memref<2x4xi32, #tpu.memory_space<smem>>) -> (i32, i32, i32) {
    %c0_i32 = arith.constant 0 : i32
    %c0_i32_0 = arith.constant 0 : i32
    return %arg0, %arg1, %c0_i32 : i32, i32, i32
  }
  func.func @transform_1(%arg0: i32, %arg1: i32, %arg2: memref<2x4xi32, #tpu.memory_space<smem>>) -> (i32, i32, i32, i32) {
    %c0_i32 = arith.constant 0 : i32
    %c0_i32_0 = arith.constant 0 : i32
    %c0_i32_1 = arith.constant 0 : i32
    return %arg0, %c0_i32, %arg1, %c0_i32_0 : i32, i32, i32, i32
  }
  func.func @transform_2(%arg0: i32, %arg1: i32, %arg2: memref<2x4xi32, #tpu.memory_space<smem>>) -> (i32, i32) {
    %c0_i32 = arith.constant 0 : i32
    %c0_i32_0 = arith.constant 0 : i32
    %c0_i32_1 = arith.constant 0 : i32
    return %c0_i32, %c0_i32_0 : i32, i32
  }
  func.func @transform_3(%arg0: i32, %arg1: i32, %arg2: memref<2x4xi32, #tpu.memory_space<smem>>) -> (i32, i32) {
    %c0_i32 = arith.constant 0 : i32
    %c0_i32_0 = arith.constant 0 : i32
    %c0_i32_1 = arith.constant 0 : i32
    return %c0_i32, %c0_i32_0 : i32, i32
  }
  func.func @transform_4(%arg0: i32, %arg1: i32, %arg2: memref<2x4xi32, #tpu.memory_space<smem>>) -> (i32, i32) {
    %c0_i32 = arith.constant 0 : i32
    %c0_i32_0 = arith.constant 0 : i32
    %c0_i32_1 = arith.constant 0 : i32
    return %c0_i32, %c0_i32_0 : i32, i32
  }
  func.func @transform_5(%arg0: i32, %arg1: i32, %arg2: memref<2x4xi32, #tpu.memory_space<smem>>) -> (i32, i32) {
    %c0_i32 = arith.constant 0 : i32
    %c0_i32_0 = arith.constant 0 : i32
    %c0_i32_1 = arith.constant 0 : i32
    return %c0_i32, %c0_i32_0 : i32, i32
  }
  func.func @transform_6(%arg0: i32, %arg1: i32, %arg2: memref<2x4xi32, #tpu.memory_space<smem>>) -> (i32, i32, i32) {
    %c0_i32 = arith.constant 0 : i32
    %c0_i32_0 = arith.constant 0 : i32
    return %arg0, %arg1, %c0_i32 : i32, i32, i32
  }
}

</mosaic_0001>

<llo_original>
// kernel: tpu_custom_call.1
$region0: #{tpu_custom_call.1}
  #allocation0 [shape = 'u32[]', space=smem, size = 0x4, offset = 0x4, fixed_abs, tag = 'smem constant byte address 0x4 - core index']
  #allocation1 [shape = 'u32[144,128]{1,0:T(1,128)}', space=vmem, size = 0x12000, scoped, tag = 'internal scratch']
  #allocation2 [shape = 'f32[64,16]{1,0:T(8,128)}', space=vmem, size = 0x8000, scoped, tag = 'scratch operand']
  #allocation3 [shape = 's32[1]{0}', space=sflag, size = 0x4, scoped, tag = 'scoped memory for tpu_custom_call.1']
  #allocation4 [shape = 'u8[1024]{0}', space=smem, size = 0x400, scoped, tag = 'prefetched SMEM operand 0']
  %s0 = inlined_call_operand.vmem [shape: s32[2,4], index: 0, kind: input, shape index: {}]
  %s1 = inlined_call_operand.vmem [shape: f32[2,64,32], index: 1, kind: input, shape index: {}]
  %s2 = inlined_call_operand.vmem [shape: f32[2,4,64,16], index: 2, kind: input, shape index: {}]
  %s3 = inlined_call_operand.vmem [shape: f32[32,32], index: 3, kind: input, shape index: {}]
  %s4 = inlined_call_operand.vmem [shape: f32[16,48], index: 4, kind: input, shape index: {}]
  %s5 = inlined_call_operand.vmem [shape: f32[16,32], index: 5, kind: input, shape index: {}]
  %s6 = inlined_call_operand.vmem [shape: f32[1,32], index: 6, kind: input, shape index: {}]
  %s7 = inlined_call_operand.vmem [shape: f32[2,64,32], index: 7, kind: output, shape index: {}]
  %s8 = sld [smem:[#allocation0]]
  $region65: #{tpu_custom_call.1} parent=0
    _
  %s10 = ssub.s32 1, %s8
  %s11 = scalar_select 0, %s10, %s8
  %s12 = sshll.u32 %s0, 4
  %s13 = int_to_ptr.vmem [resolvable:$true] %s12
  %15 = dma.vmem_to_smem %s13, 32, [#allocation4], [#allocation3]
  %16 = dma.done [#allocation3], 32
  %17 = sfence
  loop: start=0, step=1, limit=4
  $region2: #{tpu_custom_call.1} parent=0 // loop_pre_header
    _
  $region3: #{tpu_custom_call.1} parent=0 // loop_header
    %s19 = sphi 0, %s23
    %p20 = scmp.ge.s32.totalorder %s19, 4
    %s26 = sphi 0, %s38
    %s27 = sphi 0, %s34
    %s28 = sphi 0, %s26
    %s29 = sphi 0, %s27
    %s30 = sphi 0, %s28
    %s31 = sphi 0, %s29
    %s43 = sphi 0, %s45
    %s46 = sphi 0, %s43
    %s47 = sphi 0, %s46
    %s63 = sphi 0, %s47
    %s71 = sphi 0, %s73
    %s74 = sphi 0, %s71
    %s75 = sphi 0, %s74
    %s91 = sphi 0, %s75
    %s95 = sphi 0, %s95
    %s97 = sphi 0, %s95
    %s98 = sphi 0, %s97
    %s112 = sphi 0, %s98
    %s116 = sphi 0, %s116
    %s118 = sphi 0, %s116
    %s119 = sphi 0, %s118
    %s133 = sphi 0, %s119
    %s137 = sphi 0, %s137
    %s139 = sphi 0, %s137
    %s140 = sphi 0, %s139
    %s154 = sphi 0, %s140
    %s158 = sphi 0, %s158
    %s160 = sphi 0, %s158
    %s161 = sphi 0, %s160
    %s175 = sphi 0, %s161
    %s183 = sphi 0, %s185
    %s186 = sphi 0, %s183
    %s187 = sphi 0, %s186
    %s203 = sphi 0, %s187
  $region4: #{tpu_custom_call.1} parent=0 // loop_header_branch
    %22 = sbr.rel (%p20) target = $region8
  $region5: #{tpu_custom_call.1} parent=0 // loop_body
    %s24 = ssub.s32 %s19, 1
    %s25 = ssub.s32 %s19, 2
    %s32 = sadd.s32 1, %s27
    %p33 = scmp.ge.s32.totalorder %s32, 1
    %s34 = scalar_select %p33, 0, %s32
    %s35 = sadd.s32 1, %s26
    %s36 = scalar_select %p33, %s35, %s26
    %p37 = scmp.ge.s32.totalorder %s36, 2
    %s38 = scalar_select %p37, 0, %s36
    %s39 = ssub.s32 %s26, %s38
    %s40 = ssub.s32 %s27, %s34
    %s41 = sor.u32 %s39, %s40
    %p42 = scmp.eq.s32.totalorder %s41, 0
    %s44 = sadd.s32 %s43, 1
    %s45 = scalar_select %p42, %s43, %s44
    %p48 = pneg %p42
    %p49 = scmp.eq.s32.totalorder %s19, 1
    %p50 = por %p48, %p49
    %p51 = scmp.ne.s32.totalorder %s43, %s46
    %p52 = scmp.eq.s32.totalorder %s19, 0
    %p53 = por %p51, %p52
    %p54 = scmp.ne.s32.totalorder %s43, %s46
    %p55 = scmp.eq.s32.totalorder %s24, 1
    %p56 = por %p54, %p55
    %p57 = scmp.ne.s32.totalorder %s46, %s47
    %p58 = scmp.eq.s32.totalorder %s24, 0
    %p59 = por %p57, %p58
    %p60 = scmp.ne.s32.totalorder %s46, %s47
    %p61 = scmp.eq.s32.totalorder %s25, 1
    %p62 = por %p60, %p61
    %p64 = scmp.ne.s32.totalorder %s47, %s63
    %p65 = scmp.eq.s32.totalorder %s25, 0
    %p66 = por %p64, %p65
    %s67 = ssub.s32 %s26, %s38
    %s68 = ssub.s32 %s27, %s34
    %s69 = sor.u32 %s67, %s68
    %p70 = scmp.eq.s32.totalorder %s69, 0
    %s72 = sadd.s32 %s71, 1
    %s73 = scalar_select %p70, %s71, %s72
    %p76 = pneg %p70
    %p77 = scmp.eq.s32.totalorder %s19, 1
    %p78 = por %p76, %p77
    %p79 = scmp.ne.s32.totalorder %s71, %s74
    %p80 = scmp.eq.s32.totalorder %s19, 0
    %p81 = por %p79, %p80
    %p82 = scmp.ne.s32.totalorder %s71, %s74
    %p83 = scmp.eq.s32.totalorder %s24, 1
    %p84 = por %p82, %p83
    %p85 = scmp.ne.s32.totalorder %s74, %s75
    %p86 = scmp.eq.s32.totalorder %s24, 0
    %p87 = por %p85, %p86
    %p88 = scmp.ne.s32.totalorder %s74, %s75
    %p89 = scmp.eq.s32.totalorder %s25, 1
    %p90 = por %p88, %p89
    %p92 = scmp.ne.s32.totalorder %s75, %s91
    %p93 = scmp.eq.s32.totalorder %s25, 0
    %p94 = por %p92, %p93
    %s96 = sadd.s32 %s95, 1
    %p99 = scmp.eq.s32.totalorder %s19, 1
    %p100 = scmp.ne.s32.totalorder %s95, %s97
    %p101 = scmp.eq.s32.totalorder %s19, 0
    %p102 = por %p100, %p101
    %p103 = scmp.ne.s32.totalorder %s95, %s97
    %p104 = scmp.eq.s32.totalorder %s24, 1
    %p105 = por %p103, %p104
    %p106 = scmp.ne.s32.totalorder %s97, %s98
    %p107 = scmp.eq.s32.totalorder %s24, 0
    %p108 = por %p106, %p107
    %p109 = scmp.ne.s32.totalorder %s97, %s98
    %p110 = scmp.eq.s32.totalorder %s25, 1
    %p111 = por %p109, %p110
    %p113 = scmp.ne.s32.totalorder %s98, %s112
    %p114 = scmp.eq.s32.totalorder %s25, 0
    %p115 = por %p113, %p114
    %s117 = sadd.s32 %s116, 1
    %p120 = scmp.eq.s32.totalorder %s19, 1
    %p121 = scmp.ne.s32.totalorder %s116, %s118
    %p122 = scmp.eq.s32.totalorder %s19, 0
    %p123 = por %p121, %p122
    %p124 = scmp.ne.s32.totalorder %s116, %s118
    %p125 = scmp.eq.s32.totalorder %s24, 1
    %p126 = por %p124, %p125
    %p127 = scmp.ne.s32.totalorder %s118, %s119
    %p128 = scmp.eq.s32.totalorder %s24, 0
    %p129 = por %p127, %p128
    %p130 = scmp.ne.s32.totalorder %s118, %s119
    %p131 = scmp.eq.s32.totalorder %s25, 1
    %p132 = por %p130, %p131
    %p134 = scmp.ne.s32.totalorder %s119, %s133
    %p135 = scmp.eq.s32.totalorder %s25, 0
    %p136 = por %p134, %p135
    %s138 = sadd.s32 %s137, 1
    %p141 = scmp.eq.s32.totalorder %s19, 1
    %p142 = scmp.ne.s32.totalorder %s137, %s139
    %p143 = scmp.eq.s32.totalorder %s19, 0
    %p144 = por %p142, %p143
    %p145 = scmp.ne.s32.totalorder %s137, %s139
    %p146 = scmp.eq.s32.totalorder %s24, 1
    %p147 = por %p145, %p146
    %p148 = scmp.ne.s32.totalorder %s139, %s140
    %p149 = scmp.eq.s32.totalorder %s24, 0
    %p150 = por %p148, %p149
    %p151 = scmp.ne.s32.totalorder %s139, %s140
    %p152 = scmp.eq.s32.totalorder %s25, 1
    %p153 = por %p151, %p152
    %p155 = scmp.ne.s32.totalorder %s140, %s154
    %p156 = scmp.eq.s32.totalorder %s25, 0
    %p157 = por %p155, %p156
    %s159 = sadd.s32 %s158, 1
    %p162 = scmp.eq.s32.totalorder %s19, 1
    %p163 = scmp.ne.s32.totalorder %s158, %s160
    %p164 = scmp.eq.s32.totalorder %s19, 0
    %p165 = por %p163, %p164
    %p166 = scmp.ne.s32.totalorder %s158, %s160
    %p167 = scmp.eq.s32.totalorder %s24, 1
    %p168 = por %p166, %p167
    %p169 = scmp.ne.s32.totalorder %s160, %s161
    %p170 = scmp.eq.s32.totalorder %s24, 0
    %p171 = por %p169, %p170
    %p172 = scmp.ne.s32.totalorder %s160, %s161
    %p173 = scmp.eq.s32.totalorder %s25, 1
    %p174 = por %p172, %p173
    %p176 = scmp.ne.s32.totalorder %s161, %s175
    %p177 = scmp.eq.s32.totalorder %s25, 0
    %p178 = por %p176, %p177
    %s179 = ssub.s32 %s26, %s38
    %s180 = ssub.s32 %s27, %s34
    %s181 = sor.u32 %s179, %s180
    %p182 = scmp.eq.s32.totalorder %s181, 0
    %s184 = sadd.s32 %s183, 1
    %s185 = scalar_select %p182, %s183, %s184
    %p188 = pneg %p182
    %p189 = scmp.eq.s32.totalorder %s19, 1
    %p190 = por %p188, %p189
    %p191 = scmp.ne.s32.totalorder %s183, %s186
    %p192 = scmp.eq.s32.totalorder %s19, 0
    %p193 = por %p191, %p192
    %p194 = scmp.ne.s32.totalorder %s183, %s186
    %p195 = scmp.eq.s32.totalorder %s24, 1
    %p196 = por %p194, %p195
    %p197 = scmp.ne.s32.totalorder %s186, %s187
    %p198 = scmp.eq.s32.totalorder %s24, 0
    %p199 = por %p197, %p198
    %p200 = scmp.ne.s32.totalorder %s186, %s187
    %p201 = scmp.eq.s32.totalorder %s25, 1
    %p202 = por %p200, %p201
    %p204 = scmp.ne.s32.totalorder %s187, %s203
    %p205 = scmp.eq.s32.totalorder %s25, 0
    %p206 = por %p204, %p205
    %p207 = scmp.le.s32.totalorder 1, %s19
    %p208 = scmp.lt.s32.totalorder %s19, 3
    %p209 = pnand %p207, %p208
    %p210 = pneg %p209
    // Predicated region
    $region9: #{tpu_custom_call.1} parent=5 // pred_check
      _
    $region10: #{tpu_custom_call.1} parent=5 // pred_check_branch
      %212 = sbr.rel (%p209) target = $region12
    $region11: #{tpu_custom_call.1} parent=5 // pred_region
      %s213 = ssub.s32 %s19, 1
      // Predicated region
      $region13: #{tpu_custom_call.1} parent=11 // pred_check
        %p214 = pneg %p108
      $region14: #{tpu_custom_call.1} parent=11 // pred_check_branch
        %216 = sbr.rel (%p214) target = $region16
      $region15: #{tpu_custom_call.1} parent=11 // pred_region
        _
      $region16: #{tpu_custom_call.1} parent=11 // pred_fallthru
        _
      // Predicated region
      $region17: #{tpu_custom_call.1} parent=11 // pred_check
        %p217 = pneg %p129
      $region18: #{tpu_custom_call.1} parent=11 // pred_check_branch
        %219 = sbr.rel (%p217) target = $region20
      $region19: #{tpu_custom_call.1} parent=11 // pred_region
        _
      $region20: #{tpu_custom_call.1} parent=11 // pred_fallthru
        _
      // Predicated region
      $region21: #{tpu_custom_call.1} parent=11 // pred_check
        %p220 = pneg %p150
      $region22: #{tpu_custom_call.1} parent=11 // pred_check_branch
        %222 = sbr.rel (%p220) target = $region24
      $region23: #{tpu_custom_call.1} parent=11 // pred_region
        _
      $region24: #{tpu_custom_call.1} parent=11 // pred_fallthru
        _
      // Predicated region
      $region25: #{tpu_custom_call.1} parent=11 // pred_check
        %p223 = pneg %p171
      $region26: #{tpu_custom_call.1} parent=11 // pred_check_branch
        %225 = sbr.rel (%p223) target = $region28
      $region27: #{tpu_custom_call.1} parent=11 // pred_region
        _
      $region28: #{tpu_custom_call.1} parent=11 // pred_fallthru
        _
    $region12: #{tpu_custom_call.1} parent=5 // pred_fallthru
      _
    %p226 = scmp.lt.s32.totalorder %s19, 2
    // Predicated region
    $region29: #{tpu_custom_call.1} parent=5 // pred_check
      %p227 = pneg %p226
    $region30: #{tpu_custom_call.1} parent=5 // pred_check_branch
      %229 = sbr.rel (%p227) target = $region32
    $region31: #{tpu_custom_call.1} parent=5 // pred_region
      // Predicated region
      $region33: #{tpu_custom_call.1} parent=31 // pred_check
        %p230 = pneg %p53
      $region34: #{tpu_custom_call.1} parent=31 // pred_check_branch
        %232 = sbr.rel (%p230) target = $region36
      $region35: #{tpu_custom_call.1} parent=31 // pred_region
        %s233 = smul.u32 8, %s27
        %p234 = scmp.lt.s32.totalorder %s26, 1
        %s235 = scalar_select %p234, %s26, 1
        %p236 = scmp.lt.s32.totalorder %s233, 7
        %s237 = scalar_select %p236, %s233, 7
        %s238 = smul.addr %s235, 8
        %s239 = sadd.s32 %s237, %s238
        %s240 = smul.addr %s239, 8
        %s241 = scalar_lea.vmem %s1, %s240
        %s242 = smul.u32 8, %s27
      $region36: #{tpu_custom_call.1} parent=31 // pred_fallthru
        _
      // Predicated region
      $region37: #{tpu_custom_call.1} parent=31 // pred_check
        %p243 = pneg %p81
      $region38: #{tpu_custom_call.1} parent=31 // pred_check_branch
        %245 = sbr.rel (%p243) target = $region40
      $region39: #{tpu_custom_call.1} parent=31 // pred_region
        %s246 = smul.u32 8, %s27
        %p247 = scmp.lt.s32.totalorder %s26, 1
        %s248 = scalar_select %p247, %s26, 1
        %p249 = scmp.lt.s32.totalorder %s246, 7
        %s250 = scalar_select %p249, %s246, 7
        %s251 = smul.addr %s248, 32
        %s252 = sadd.s32 %s250, %s251
        %s253 = smul.addr %s252, 8
        %s254 = scalar_lea.vmem %s2, %s253
        %s255 = smul.u32 8, %s27
      $region40: #{tpu_custom_call.1} parent=31 // pred_fallthru
        _
    $region32: #{tpu_custom_call.1} parent=5 // pred_fallthru
      _
    %p256 = scmp.le.s32.totalorder 1, %s19
    %p257 = scmp.lt.s32.totalorder %s19, 3
    %p258 = pnand %p256, %p257
    %p259 = pneg %p258
    // Predicated region
    $region41: #{tpu_custom_call.1} parent=5 // pred_check
      _
    $region42: #{tpu_custom_call.1} parent=5 // pred_check_branch
      %261 = sbr.rel (%p258) target = $region44
    $region43: #{tpu_custom_call.1} parent=5 // pred_region
      %s262 = ssub.s32 %s19, 1
      %s263 = smul.u32 8, %s29
      %p264 = scmp.lt.s32.totalorder %s28, 1
      %s265 = scalar_select %p264, %s28, 1
      %p266 = scmp.lt.s32.totalorder %s263, 7
      %s267 = scalar_select %p266, %s263, 7
      %s268 = smul.addr %s265, 8
      %s269 = sadd.s32 %s267, %s268
      %s270 = smul.addr %s269, 8
      %s271 = scalar_lea.vmem %s1, %s270
      %p272 = pneg %p59
      %p273 = pneg %p56
      %s274 = smul.u32 8, %s29
      %p275 = scmp.lt.s32.totalorder %s28, 1
      %s276 = scalar_select %p275, %s28, 1
      %p277 = scmp.lt.s32.totalorder %s274, 7
      %s278 = scalar_select %p277, %s274, 7
      %s279 = smul.addr %s276, 32
      %s280 = sadd.s32 %s278, %s279
      %s281 = smul.addr %s280, 8
      %s282 = scalar_lea.vmem %s2, %s281
      %p283 = pneg %p87
      %p284 = pneg %p84
      %p285 = pneg %p108
      %p286 = pneg %p105
      %p287 = pneg %p129
      %p288 = pneg %p126
      %p289 = pneg %p150
      %p290 = pneg %p147
      %p291 = pneg %p171
      %p292 = pneg %p168
      %p293 = pneg %p199
      %p294 = pneg %p196
      %s295 = smul.u32 8, %s29
      %p296 = scmp.lt.s32.totalorder %s28, 1
      %s297 = scalar_select %p296, %s28, 1
      %p298 = scmp.lt.s32.totalorder %s295, 7
      %s299 = scalar_select %p298, %s295, 7
      %s300 = smul.addr %s297, 8
      %s301 = sadd.s32 %s299, %s300
      %s302 = smul.addr %s301, 8
      %s303 = scalar_lea.vmem %s7, %s302
      %s304 = smul.u32 8, %s29
      %p305 = scmp.lt.s32.totalorder %s28, 1
      %s306 = scalar_select %p305, %s28, 1
      %p307 = scmp.lt.s32.totalorder %s304, 7
      %s308 = scalar_select %p307, %s304, 7
      %s309 = smul.addr %s306, 8
      %s310 = sadd.s32 %s308, %s309
      %s311 = smul.addr %s310, 8
      %s312 = scalar_lea.vmem %s1, %s311
      %s313 = smul.u32 8, %s29
      %s314 = smul.u32 8, %s29
      %p315 = scmp.lt.s32.totalorder %s28, 1
      %s316 = scalar_select %p315, %s28, 1
      %p317 = scmp.lt.s32.totalorder %s314, 7
      %s318 = scalar_select %p317, %s314, 7
      %s319 = smul.addr %s316, 32
      %s320 = sadd.s32 %s318, %s319
      %s321 = smul.addr %s320, 8
      %s322 = scalar_lea.vmem %s2, %s321
      %s323 = smul.u32 8, %s29
      %s324 = smul.u32 8, %s29
      %p325 = scmp.lt.s32.totalorder %s28, 1
      %s326 = scalar_select %p325, %s28, 1
      %p327 = scmp.lt.s32.totalorder %s324, 7
      %s328 = scalar_select %p327, %s324, 7
      %s329 = smul.addr %s326, 8
      %s330 = sadd.s32 %s328, %s329
      %s331 = smul.addr %s330, 8
      %s332 = scalar_lea.vmem %s7, %s331
      %s333 = smul.u32 8, %s29
      %s334 = smul.u32 %s28, 128
      %s335 = sld [smem:[#allocation4 + %s334]]
      %s336 = sadd.s32 %s334, 1
      %s337 = sld [smem:[#allocation4 + %s336]]
      %s338 = sadd.s32 %s335, %s337
      %s339 = sadd.s32 %s334, 2
      %s340 = sld [smem:[#allocation4 + %s339]]
      %s341 = sadd.s32 %s338, %s340
      %s342 = sadd.s32 %s334, 3
      %s343 = sld [smem:[#allocation4 + %s342]]
      %s344 = sadd.s32 %s341, %s343
      %p345 = scmp.gt.s32.totalorder %s344, 0
      // Predicated region
      $region45: #{tpu_custom_call.1} parent=43 // pred_check
        %p346 = pneg %p345
      $region46: #{tpu_custom_call.1} parent=43 // pred_check_branch
        %348 = sbr.rel (%p346) target = $region48
      $region47: #{tpu_custom_call.1} parent=43 // pred_region
        %s349 = sld [smem:[#allocation4 + %s334]]
        %s350 = scvt.s32.f32 %s349
        %s351 = ssub.f32 %s350, 1.0
        %s352 = smul.f32 %s351, 65504.0
        %v353 = vstv %s352
        %s354 = sld [smem:[#allocation4 + %s336]]
        %s355 = scvt.s32.f32 %s354
        %s356 = ssub.f32 %s355, 1.0
        %s357 = smul.f32 %s356, 65504.0
        %v358 = vstv %s357
        %s359 = sld [smem:[#allocation4 + %s339]]
        %s360 = scvt.s32.f32 %s359
        %s361 = ssub.f32 %s360, 1.0
        %s362 = smul.f32 %s361, 65504.0
        %v363 = vstv %s362
        %s364 = sld [smem:[#allocation4 + %s342]]
        %s365 = scvt.s32.f32 %s364
        %s366 = ssub.f32 %s365, 1.0
        %s367 = smul.f32 %s366, 65504.0
        %v368 = vstv %s367
        %v369 = vld [vmem:[%s312] sm:$0xff]
        %v370 = vld [vmem:[%s312 + $0x8] sm:$0xff]
        %v371 = vld [vmem:[%s312 + $0x10] sm:$0xff]
        %v372 = vld [vmem:[%s312 + $0x18] sm:$0xff]
        %v373 = vld [vmem:[%s312 + $0x20] sm:$0xff]
        %v374 = vld [vmem:[%s312 + $0x28] sm:$0xff]
        %v375 = vld [vmem:[%s312 + $0x30] sm:$0xff]
        %v376 = vld [vmem:[%s312 + $0x38] sm:$0xff]
        %v377 = vld [vmem:[%s322] sm:$0xff]
        %v378 = vld [vmem:[%s322 + $0x8] sm:$0xff]
        %v379 = vld [vmem:[%s322 + $0x10] sm:$0xff]
        %v380 = vld [vmem:[%s322 + $0x18] sm:$0xff]
        %v381 = vld [vmem:[%s322 + $0x20] sm:$0xff]
        %v382 = vld [vmem:[%s322 + $0x28] sm:$0xff]
        %v383 = vld [vmem:[%s322 + $0x30] sm:$0xff]
        %v384 = vld [vmem:[%s322 + $0x38] sm:$0xff]
        %v385 = vld [vmem:[%s322 + $0x40] sm:$0xff]
        %v386 = vld [vmem:[%s322 + $0x48] sm:$0xff]
        %v387 = vld [vmem:[%s322 + $0x50] sm:$0xff]
        %v388 = vld [vmem:[%s322 + $0x58] sm:$0xff]
        %v389 = vld [vmem:[%s322 + $0x60] sm:$0xff]
        %v390 = vld [vmem:[%s322 + $0x68] sm:$0xff]
        %v391 = vld [vmem:[%s322 + $0x70] sm:$0xff]
        %v392 = vld [vmem:[%s322 + $0x78] sm:$0xff]
        %v393 = vld [vmem:[%s322 + $0x80] sm:$0xff]
        %v394 = vld [vmem:[%s322 + $0x88] sm:$0xff]
        %v395 = vld [vmem:[%s322 + $0x90] sm:$0xff]
        %v396 = vld [vmem:[%s322 + $0x98] sm:$0xff]
        %v397 = vld [vmem:[%s322 + $0xa0] sm:$0xff]
        %v398 = vld [vmem:[%s322 + $0xa8] sm:$0xff]
        %v399 = vld [vmem:[%s322 + $0xb0] sm:$0xff]
        %v400 = vld [vmem:[%s322 + $0xb8] sm:$0xff]
        %v401 = vld [vmem:[%s322 + $0xc0] sm:$0xff]
        %v402 = vld [vmem:[%s322 + $0xc8] sm:$0xff]
        %v403 = vld [vmem:[%s322 + $0xd0] sm:$0xff]
        %v404 = vld [vmem:[%s322 + $0xd8] sm:$0xff]
        %v405 = vld [vmem:[%s322 + $0xe0] sm:$0xff]
        %v406 = vld [vmem:[%s322 + $0xe8] sm:$0xff]
        %v407 = vld [vmem:[%s322 + $0xf0] sm:$0xff]
        %v408 = vld [vmem:[%s322 + $0xf8] sm:$0xff]
        %v409 = vld [vmem:[%s3] sm:$0xff]
        %v410 = vld [vmem:[%s3 + $0x8] sm:$0xff]
        %v411 = vld [vmem:[%s3 + $0x10] sm:$0xff]
        %v412 = vld [vmem:[%s3 + $0x18] sm:$0xff]
        %vm413 = vcmask 261120
        %v415 = vsel %vm413, %v369, 0
        %v418 = vsel %vm413, %v370, 0
        %v421 = vsel %vm413, %v371, 0
        %v424 = vsel %vm413, %v372, 0
        %v427 = vsel %vm413, %v373, 0
        %v430 = vsel %vm413, %v374, 0
        %v433 = vsel %vm413, %v375, 0
        %v436 = vsel %vm413, %v376, 0
        %438 = vmatprep.subr.mxu0 0.0
        %439 = vmatpush1.msra.mxu0 %v409
        %440 = vmatprep.subr.mxu0 0.0
        %441 = vmatpush1.msra.mxu0 %v410
        %442 = vmatprep.subr.mxu0 0.0
        %443 = vmatpush1.msra.mxu0 %v411
        %444 = vmatprep.subr.mxu0 0.0
        %445 = vmatpush1.msra.mxu0 %v412
        %446 = vmatprep.subr.mxu0 0.0
        %447 = vmatpush1.msra.mxu0 0.0
        %448 = vmatprep.subr.mxu0 0.0
        %449 = vmatpush1.msra.mxu0 0.0
        %450 = vmatprep.subr.mxu0 0.0
        %451 = vmatpush1.msra.mxu0 0.0
        %452 = vmatprep.subr.mxu0 0.0
        %453 = vmatpush1.msra.mxu0 0.0
        %454 = vmatprep.subr.mxu0 0.0
        %455 = vmatpush1.msra.mxu0 0.0
        %456 = vmatprep.subr.mxu0 0.0
        %457 = vmatpush1.msra.mxu0 0.0
        %458 = vmatprep.subr.mxu0 0.0
        %459 = vmatpush1.msra.mxu0 0.0
        %460 = vmatprep.subr.mxu0 0.0
        %461 = vmatpush1.msra.mxu0 0.0
        %462 = vmatprep.subr.mxu0 0.0
        %463 = vmatpush1.msra.mxu0 0.0
        %464 = vmatprep.subr.mxu0 0.0
        %465 = vmatpush1.msra.mxu0 0.0
        %466 = vmatprep.subr.mxu0 0.0
        %467 = vmatpush1.msra.mxu0 0.0
        %468 = vmatprep.subr.mxu0 0.0
        %469 = vmatpush1.msra.mxu0 0.0
        %470 = vmatprep.subr.mxu0 0.0
        %471 = vmatpush1.msra.mxu0 0.0
        %472 = vmatprep.subr.mxu0 0.0
        %473 = vmatpush1.msra.mxu0 0.0
        %474 = vmatprep.subr.mxu0 0.0
        %475 = vmatpush1.msra.mxu0 0.0
        %476 = vmatprep.subr.mxu0 0.0
        %477 = vmatpush1.msra.mxu0 0.0
        %478 = vmatprep.subr.mxu0 0.0
        %479 = vmatpush1.msra.mxu0 0.0
        %480 = vmatprep.subr.mxu0 0.0
        %481 = vmatpush1.msra.mxu0 0.0
        %482 = vmatprep.subr.mxu0 0.0
        %483 = vmatpush1.msra.mxu0 0.0
        %484 = vmatprep.subr.mxu0 0.0
        %485 = vmatpush1.msra.mxu0 0.0
        %486 = vmatprep.subr.mxu0 0.0
        %487 = vmatpush1.msra.mxu0 0.0
        %488 = vmatprep.subr.mxu0 0.0
        %489 = vmatpush1.msra.mxu0 0.0
        %490 = vmatprep.subr.mxu0 0.0
        %491 = vmatpush1.msra.mxu0 0.0
        %492 = vmatprep.subr.mxu0 0.0
        %493 = vmatpush1.msra.mxu0 0.0
        %494 = vmatprep.subr.mxu0 0.0
        %495 = vmatpush1.msra.mxu0 0.0
        %496 = vmatprep.subr.mxu0 0.0
        %497 = vmatpush1.msra.mxu0 0.0
        %498 = vmatprep.subr.mxu0 0.0
        %499 = vmatpush1.msra.mxu0 0.0
        %500 = vmatprep.subr.mxu0 0.0
        %501 = vmatpush1.msra.mxu0 0.0
        %502 = vmatprep.mubr.f32.mxu0 0.0
        %503 = vmatmul.mubr.f32.gmra.mrb[0].mxu0 %v415
        %v504 = vpop.f32.mrb[0].mxu0
        %v505 = vadd.f32 0.0, %v504
        %v506 = vpop.f32.mrb[0].mxu0
        %507 = vmatprep.mubr.f32.mxu0 0.0
        %508 = vmatmul.mubr.f32.gmra.mrb[0].mxu0 %v418
        %v509 = vpop.f32.mrb[0].mxu0
        %v510 = vadd.f32 0.0, %v509
        %v511 = vpop.f32.mrb[0].mxu0
        %512 = vmatprep.mubr.f32.mxu0 0.0
        %513 = vmatmul.mubr.f32.gmra.mrb[0].mxu0 %v421
        %v514 = vpop.f32.mrb[0].mxu0
        %v515 = vadd.f32 0.0, %v514
        %v516 = vpop.f32.mrb[0].mxu0
        %517 = vmatprep.mubr.f32.mxu0 0.0
        %518 = vmatmul.mubr.f32.gmra.mrb[0].mxu0 %v424
        %v519 = vpop.f32.mrb[0].mxu0
        %v520 = vadd.f32 0.0, %v519
        %v521 = vpop.f32.mrb[0].mxu0
        %522 = vmatprep.mubr.f32.mxu0 0.0
        %523 = vmatmul.mubr.f32.gmra.mrb[0].mxu0 %v427
        %v524 = vpop.f32.mrb[0].mxu0
        %v525 = vadd.f32 0.0, %v524
        %v526 = vpop.f32.mrb[0].mxu0
        %527 = vmatprep.mubr.f32.mxu0 0.0
        %528 = vmatmul.mubr.f32.gmra.mrb[0].mxu0 %v430
        %v529 = vpop.f32.mrb[0].mxu0
        %v530 = vadd.f32 0.0, %v529
        %v531 = vpop.f32.mrb[0].mxu0
        %532 = vmatprep.mubr.f32.mxu0 0.0
        %533 = vmatmul.mubr.f32.gmra.mrb[0].mxu0 %v433
        %v534 = vpop.f32.mrb[0].mxu0
        %v535 = vadd.f32 0.0, %v534
        %v536 = vpop.f32.mrb[0].mxu0
        %537 = vmatprep.mubr.f32.mxu0 0.0
        %538 = vmatmul.mubr.f32.gmra.mrb[0].mxu0 %v436
        %v539 = vpop.f32.mrb[0].mxu0
        %v540 = vadd.f32 0.0, %v539
        %v541 = vpop.f32.mrb[0].mxu0
        %542 = vdwg.mxu0
        %v543 = vmul.f32 %v505, 0.35355338
        %v544 = vmul.f32 %v510, 0.35355338
        %v545 = vmul.f32 %v515, 0.35355338
        %v546 = vmul.f32 %v520, 0.35355338
        %v547 = vmul.f32 %v525, 0.35355338
        %v548 = vmul.f32 %v530, 0.35355338
        %v549 = vmul.f32 %v535, 0.35355338
        %v550 = vmul.f32 %v540, 0.35355338
        %v551 = vld [vmem:[%s4] sm:$0xff]
        %v552 = vld [vmem:[%s4 + $0x8] sm:$0xff]
        %vm553 = vcmask 130048
        %v555 = vsel %vm553, %v377, 0
        %v558 = vsel %vm553, %v378, 0
        %v561 = vsel %vm553, %v379, 0
        %v564 = vsel %vm553, %v380, 0
        %v567 = vsel %vm553, %v381, 0
        %v570 = vsel %vm553, %v382, 0
        %v573 = vsel %vm553, %v383, 0
        %v576 = vsel %vm553, %v384, 0
        %v579 = vsel %vm553, %v385, 0
        %v582 = vsel %vm553, %v386, 0
        %v585 = vsel %vm553, %v387, 0
        %v588 = vsel %vm553, %v388, 0
        %v591 = vsel %vm553, %v389, 0
        %v594 = vsel %vm553, %v390, 0
        %v597 = vsel %vm553, %v391, 0
        %v600 = vsel %vm553, %v392, 0
        %v603 = vsel %vm553, %v393, 0
        %v606 = vsel %vm553, %v394, 0
        %v609 = vsel %vm553, %v395, 0
        %v612 = vsel %vm553, %v396, 0
        %v615 = vsel %vm553, %v397, 0
        %v618 = vsel %vm553, %v398, 0
        %v621 = vsel %vm553, %v399, 0
        %v624 = vsel %vm553, %v400, 0
        %v627 = vsel %vm553, %v401, 0
        %v630 = vsel %vm553, %v402, 0
        %v633 = vsel %vm553, %v403, 0
        %v636 = vsel %vm553, %v404, 0
        %v639 = vsel %vm553, %v405, 0
        %v642 = vsel %vm553, %v406, 0
        %v645 = vsel %vm553, %v407, 0
        %v648 = vsel %vm553, %v408, 0
        %650 = vmatprep.subr.mxu0 0.0
        %651 = vmatpush1.msra.mxu0 %v551
        %652 = vmatprep.subr.mxu0 0.0
        %653 = vmatpush1.msra.mxu0 %v552
        %654 = vmatprep.subr.mxu0 0.0
        %655 = vmatpush1.msra.mxu0 0.0
        %656 = vmatprep.subr.mxu0 0.0
        %657 = vmatpush1.msra.mxu0 0.0
        %658 = vmatprep.subr.mxu0 0.0
        %659 = vmatpush1.msra.mxu0 0.0
        %660 = vmatprep.subr.mxu0 0.0
        %661 = vmatpush1.msra.mxu0 0.0
        %662 = vmatprep.subr.mxu0 0.0
        %663 = vmatpush1.msra.mxu0 0.0
        %664 = vmatprep.subr.mxu0 0.0
        %665 = vmatpush1.msra.mxu0 0.0
        %666 = vmatprep.subr.mxu0 0.0
        %667 = vmatpush1.msra.mxu0 0.0
        %668 = vmatprep.subr.mxu0 0.0
        %669 = vmatpush1.msra.mxu0 0.0
        %670 = vmatprep.subr.mxu0 0.0
        %671 = vmatpush1.msra.mxu0 0.0
        %672 = vmatprep.subr.mxu0 0.0
        %673 = vmatpush1.msra.mxu0 0.0
        %674 = vmatprep.subr.mxu0 0.0
        %675 = vmatpush1.msra.mxu0 0.0
        %676 = vmatprep.subr.mxu0 0.0
        %677 = vmatpush1.msra.mxu0 0.0
        %678 = vmatprep.subr.mxu0 0.0
        %679 = vmatpush1.msra.mxu0 0.0
        %680 = vmatprep.subr.mxu0 0.0
        %681 = vmatpush1.msra.mxu0 0.0
        %682 = vmatprep.subr.mxu0 0.0
        %683 = vmatpush1.msra.mxu0 0.0
        %684 = vmatprep.subr.mxu0 0.0
        %685 = vmatpush1.msra.mxu0 0.0
        %686 = vmatprep.subr.mxu0 0.0
        %687 = vmatpush1.msra.mxu0 0.0
        %688 = vmatprep.subr.mxu0 0.0
        %689 = vmatpush1.msra.mxu0 0.0
        %690 = vmatprep.subr.mxu0 0.0
        %691 = vmatpush1.msra.mxu0 0.0
        %692 = vmatprep.subr.mxu0 0.0
        %693 = vmatpush1.msra.mxu0 0.0
        %694 = vmatprep.subr.mxu0 0.0
        %695 = vmatpush1.msra.mxu0 0.0
        %696 = vmatprep.subr.mxu0 0.0
        %697 = vmatpush1.msra.mxu0 0.0
        %698 = vmatprep.subr.mxu0 0.0
        %699 = vmatpush1.msra.mxu0 0.0
        %700 = vmatprep.subr.mxu0 0.0
        %701 = vmatpush1.msra.mxu0 0.0
        %702 = vmatprep.subr.mxu0 0.0
        %703 = vmatpush1.msra.mxu0 0.0
        %704 = vmatprep.subr.mxu0 0.0
        %705 = vmatpush1.msra.mxu0 0.0
        %706 = vmatprep.subr.mxu0 0.0
        %707 = vmatpush1.msra.mxu0 0.0
        %708 = vmatprep.subr.mxu0 0.0
        %709 = vmatpush1.msra.mxu0 0.0
        %710 = vmatprep.subr.mxu0 0.0
        %711 = vmatpush1.msra.mxu0 0.0
        %712 = vmatprep.subr.mxu0 0.0
        %713 = vmatpush1.msra.mxu0 0.0
        %714 = vmatprep.mubr.f32.mxu0 0.0
        %715 = vmatmul.mubr.f32.gmra.mrb[0].mxu0 %v555
        %v716 = vpop.f32.mrb[0].mxu0
        %v717 = vadd.f32 0.0, %v716
        %v718 = vpop.f32.mrb[0].mxu0
        %719 = vmatprep.mubr.f32.mxu0 0.0
        %720 = vmatmul.mubr.f32.gmra.mrb[0].mxu0 %v558
        %v721 = vpop.f32.mrb[0].mxu0
        %v722 = vadd.f32 0.0, %v721
        %v723 = vpop.f32.mrb[0].mxu0
        %724 = vmatprep.mubr.f32.mxu0 0.0
        %725 = vmatmul.mubr.f32.gmra.mrb[0].mxu0 %v561
        %v726 = vpop.f32.mrb[0].mxu0
        %v727 = vadd.f32 0.0, %v726
        %v728 = vpop.f32.mrb[0].mxu0
        %729 = vmatprep.mubr.f32.mxu0 0.0
        %730 = vmatmul.mubr.f32.gmra.mrb[0].mxu0 %v564
        %v731 = vpop.f32.mrb[0].mxu0
        %v732 = vadd.f32 0.0, %v731
        %v733 = vpop.f32.mrb[0].mxu0
        %734 = vmatprep.mubr.f32.mxu0 0.0
        %735 = vmatmul.mubr.f32.gmra.mrb[0].mxu0 %v567
        %v736 = vpop.f32.mrb[0].mxu0
        %v737 = vadd.f32 0.0, %v736
        %v738 = vpop.f32.mrb[0].mxu0
        %739 = vmatprep.mubr.f32.mxu0 0.0
        %740 = vmatmul.mubr.f32.gmra.mrb[0].mxu0 %v570
        %v741 = vpop.f32.mrb[0].mxu0
        %v742 = vadd.f32 0.0, %v741
        %v743 = vpop.f32.mrb[0].mxu0
        %744 = vmatprep.mubr.f32.mxu0 0.0
        %745 = vmatmul.mubr.f32.gmra.mrb[0].mxu0 %v573
        %v746 = vpop.f32.mrb[0].mxu0
        %v747 = vadd.f32 0.0, %v746
        %v748 = vpop.f32.mrb[0].mxu0
        %749 = vmatprep.mubr.f32.mxu0 0.0
        %750 = vmatmul.mubr.f32.gmra.mrb[0].mxu0 %v576
        %v751 = vpop.f32.mrb[0].mxu0
        %v752 = vadd.f32 0.0, %v751
        %v753 = vpop.f32.mrb[0].mxu0
        %754 = vmatprep.mubr.f32.mxu0 0.0
        %755 = vmatmul.mubr.f32.gmra.mrb[0].mxu0 %v579
        %v756 = vpop.f32.mrb[0].mxu0
        %v757 = vadd.f32 0.0, %v756
        %v758 = vpop.f32.mrb[0].mxu0
        %759 = vmatprep.mubr.f32.mxu0 0.0
        %760 = vmatmul.mubr.f32.gmra.mrb[0].mxu0 %v582
        %v761 = vpop.f32.mrb[0].mxu0
        %v762 = vadd.f32 0.0, %v761
        %v763 = vpop.f32.mrb[0].mxu0
        %764 = vmatprep.mubr.f32.mxu0 0.0
        %765 = vmatmul.mubr.f32.gmra.mrb[0].mxu0 %v585
        %v766 = vpop.f32.mrb[0].mxu0
        %v767 = vadd.f32 0.0, %v766
        %v768 = vpop.f32.mrb[0].mxu0
        %769 = vmatprep.mubr.f32.mxu0 0.0
        %770 = vmatmul.mubr.f32.gmra.mrb[0].mxu0 %v588
        %v771 = vpop.f32.mrb[0].mxu0
        %v772 = vadd.f32 0.0, %v771
        %v773 = vpop.f32.mrb[0].mxu0
        %774 = vmatprep.mubr.f32.mxu0 0.0
        %775 = vmatmul.mubr.f32.gmra.mrb[0].mxu0 %v591
        %v776 = vpop.f32.mrb[0].mxu0
        %v777 = vadd.f32 0.0, %v776
        %v778 = vpop.f32.mrb[0].mxu0
        %779 = vmatprep.mubr.f32.mxu0 0.0
        %780 = vmatmul.mubr.f32.gmra.mrb[0].mxu0 %v594
        %v781 = vpop.f32.mrb[0].mxu0
        %v782 = vadd.f32 0.0, %v781
        %v783 = vpop.f32.mrb[0].mxu0
        %784 = vmatprep.mubr.f32.mxu0 0.0
        %785 = vmatmul.mubr.f32.gmra.mrb[0].mxu0 %v597
        %v786 = vpop.f32.mrb[0].mxu0
        %v787 = vadd.f32 0.0, %v786
        %v788 = vpop.f32.mrb[0].mxu0
        %789 = vmatprep.mubr.f32.mxu0 0.0
        %790 = vmatmul.mubr.f32.gmra.mrb[0].mxu0 %v600
        %v791 = vpop.f32.mrb[0].mxu0
        %v792 = vadd.f32 0.0, %v791
        %v793 = vpop.f32.mrb[0].mxu0
        %794 = vmatprep.mubr.f32.mxu0 0.0
        %795 = vmatmul.mubr.f32.gmra.mrb[0].mxu0 %v603
        %v796 = vpop.f32.mrb[0].mxu0
        %v797 = vadd.f32 0.0, %v796
        %v798 = vpop.f32.mrb[0].mxu0
        %799 = vmatprep.mubr.f32.mxu0 0.0
        %800 = vmatmul.mubr.f32.gmra.mrb[0].mxu0 %v606
        %v801 = vpop.f32.mrb[0].mxu0
        %v802 = vadd.f32 0.0, %v801
        %v803 = vpop.f32.mrb[0].mxu0
        %804 = vmatprep.mubr.f32.mxu0 0.0
        %805 = vmatmul.mubr.f32.gmra.mrb[0].mxu0 %v609
        %v806 = vpop.f32.mrb[0].mxu0
        %v807 = vadd.f32 0.0, %v806
        %v808 = vpop.f32.mrb[0].mxu0
        %809 = vmatprep.mubr.f32.mxu0 0.0
        %810 = vmatmul.mubr.f32.gmra.mrb[0].mxu0 %v612
        %v811 = vpop.f32.mrb[0].mxu0
        %v812 = vadd.f32 0.0, %v811
        %v813 = vpop.f32.mrb[0].mxu0
        %814 = vmatprep.mubr.f32.mxu0 0.0
        %815 = vmatmul.mubr.f32.gmra.mrb[0].mxu0 %v615
        %v816 = vpop.f32.mrb[0].mxu0
        %v817 = vadd.f32 0.0, %v816
        %v818 = vpop.f32.mrb[0].mxu0
        %819 = vmatprep.mubr.f32.mxu0 0.0
        %820 = vmatmul.mubr.f32.gmra.mrb[0].mxu0 %v618
        %v821 = vpop.f32.mrb[0].mxu0
        %v822 = vadd.f32 0.0, %v821
        %v823 = vpop.f32.mrb[0].mxu0
        %824 = vmatprep.mubr.f32.mxu0 0.0
        %825 = vmatmul.mubr.f32.gmra.mrb[0].mxu0 %v621
        %v826 = vpop.f32.mrb[0].mxu0
        %v827 = vadd.f32 0.0, %v826
        %v828 = vpop.f32.mrb[0].mxu0
        %829 = vmatprep.mubr.f32.mxu0 0.0
        %830 = vmatmul.mubr.f32.gmra.mrb[0].mxu0 %v624
        %v831 = vpop.f32.mrb[0].mxu0
        %v832 = vadd.f32 0.0, %v831
        %v833 = vpop.f32.mrb[0].mxu0
        %834 = vmatprep.mubr.f32.mxu0 0.0
        %835 = vmatmul.mubr.f32.gmra.mrb[0].mxu0 %v627
        %v836 = vpop.f32.mrb[0].mxu0
        %v837 = vadd.f32 0.0, %v836
        %v838 = vpop.f32.mrb[0].mxu0
        %839 = vmatprep.mubr.f32.mxu0 0.0
        %840 = vmatmul.mubr.f32.gmra.mrb[0].mxu0 %v630
        %v841 = vpop.f32.mrb[0].mxu0
        %v842 = vadd.f32 0.0, %v841
        %v843 = vpop.f32.mrb[0].mxu0
        %844 = vmatprep.mubr.f32.mxu0 0.0
        %845 = vmatmul.mubr.f32.gmra.mrb[0].mxu0 %v633
        %v846 = vpop.f32.mrb[0].mxu0
        %v847 = vadd.f32 0.0, %v846
        %v848 = vpop.f32.mrb[0].mxu0
        %849 = vmatprep.mubr.f32.mxu0 0.0
        %850 = vmatmul.mubr.f32.gmra.mrb[0].mxu0 %v636
        %v851 = vpop.f32.mrb[0].mxu0
        %v852 = vadd.f32 0.0, %v851
        %v853 = vpop.f32.mrb[0].mxu0
        %854 = vmatprep.mubr.f32.mxu0 0.0
        %855 = vmatmul.mubr.f32.gmra.mrb[0].mxu0 %v639
        %v856 = vpop.f32.mrb[0].mxu0
        %v857 = vadd.f32 0.0, %v856
        %v858 = vpop.f32.mrb[0].mxu0
        %859 = vmatprep.mubr.f32.mxu0 0.0
        %860 = vmatmul.mubr.f32.gmra.mrb[0].mxu0 %v642
        %v861 = vpop.f32.mrb[0].mxu0
        %v862 = vadd.f32 0.0, %v861
        %v863 = vpop.f32.mrb[0].mxu0
        %864 = vmatprep.mubr.f32.mxu0 0.0
        %865 = vmatmul.mubr.f32.gmra.mrb[0].mxu0 %v645
        %v866 = vpop.f32.mrb[0].mxu0
        %v867 = vadd.f32 0.0, %v866
        %v868 = vpop.f32.mrb[0].mxu0
        %869 = vmatprep.mubr.f32.mxu0 0.0
        %870 = vmatmul.mubr.f32.gmra.mrb[0].mxu0 %v648
        %v871 = vpop.f32.mrb[0].mxu0
        %v872 = vadd.f32 0.0, %v871
        %v873 = vpop.f32.mrb[0].mxu0
        %874 = vdwg.mxu0
        %v875 = vmul.f32 %v543, %v717
        %v876 = vmul.f32 %v544, %v722
        %v877 = vmul.f32 %v545, %v727
        %v878 = vmul.f32 %v546, %v732
        %v879 = vmul.f32 %v547, %v737
        %v880 = vmul.f32 %v548, %v742
        %v881 = vmul.f32 %v549, %v747
        %v882 = vmul.f32 %v550, %v752
        %v883 = vmul.f32 %v543, %v757
        %v884 = vmul.f32 %v544, %v762
        %v885 = vmul.f32 %v545, %v767
        %v886 = vmul.f32 %v546, %v772
        %v887 = vmul.f32 %v547, %v777
        %v888 = vmul.f32 %v548, %v782
        %v889 = vmul.f32 %v549, %v787
        %v890 = vmul.f32 %v550, %v792
        %v891 = vmul.f32 %v543, %v797
        %v892 = vmul.f32 %v544, %v802
        %v893 = vmul.f32 %v545, %v807
        %v894 = vmul.f32 %v546, %v812
        %v895 = vmul.f32 %v547, %v817
        %v896 = vmul.f32 %v548, %v822
        %v897 = vmul.f32 %v549, %v827
        %v898 = vmul.f32 %v550, %v832
        %v899 = vmul.f32 %v543, %v837
        %v900 = vmul.f32 %v544, %v842
        %v901 = vmul.f32 %v545, %v847
        %v902 = vmul.f32 %v546, %v852
        %v903 = vmul.f32 %v547, %v857
        %v904 = vmul.f32 %v548, %v862
        %v905 = vmul.f32 %v549, %v867
        %v906 = vmul.f32 %v550, %v872
        %vm907 = vcmask 64512
        %v908 = vsel %vm907, %v875, 0.0
        %909 = vadd.xlane.f32.xlu0 %v908
        %v910 = vpop.xlane.xlu0 %909
        %v911 = vsel %vm907, %v876, 0.0
        %912 = vadd.xlane.f32.xlu0 %v911
        %v913 = vpop.xlane.xlu0 %912
        %v914 = vsel %vm907, %v877, 0.0
        %915 = vadd.xlane.f32.xlu0 %v914
        %v916 = vpop.xlane.xlu0 %915
        %v917 = vsel %vm907, %v878, 0.0
        %918 = vadd.xlane.f32.xlu0 %v917
        %v919 = vpop.xlane.xlu0 %918
        %v920 = vsel %vm907, %v879, 0.0
        %921 = vadd.xlane.f32.xlu0 %v920
        %v922 = vpop.xlane.xlu0 %921
        %v923 = vsel %vm907, %v880, 0.0
        %924 = vadd.xlane.f32.xlu0 %v923
        %v925 = vpop.xlane.xlu0 %924
        %v926 = vsel %vm907, %v881, 0.0
        %927 = vadd.xlane.f32.xlu0 %v926
        %v928 = vpop.xlane.xlu0 %927
        %v929 = vsel %vm907, %v882, 0.0
        %930 = vadd.xlane.f32.xlu0 %v929
        %v931 = vpop.xlane.xlu0 %930
        %v932 = vsel %vm907, %v883, 0.0
        %933 = vadd.xlane.f32.xlu0 %v932
        %v934 = vpop.xlane.xlu0 %933
        %v935 = vsel %vm907, %v884, 0.0
        %936 = vadd.xlane.f32.xlu0 %v935
        %v937 = vpop.xlane.xlu0 %936
        %v938 = vsel %vm907, %v885, 0.0
        %939 = vadd.xlane.f32.xlu0 %v938
        %v940 = vpop.xlane.xlu0 %939
        %v941 = vsel %vm907, %v886, 0.0
        %942 = vadd.xlane.f32.xlu0 %v941
        %v943 = vpop.xlane.xlu0 %942
        %v944 = vsel %vm907, %v887, 0.0
        %945 = vadd.xlane.f32.xlu0 %v944
        %v946 = vpop.xlane.xlu0 %945
        %v947 = vsel %vm907, %v888, 0.0
        %948 = vadd.xlane.f32.xlu0 %v947
        %v949 = vpop.xlane.xlu0 %948
        %v950 = vsel %vm907, %v889, 0.0
        %951 = vadd.xlane.f32.xlu0 %v950
        %v952 = vpop.xlane.xlu0 %951
        %v953 = vsel %vm907, %v890, 0.0
        %954 = vadd.xlane.f32.xlu0 %v953
        %v955 = vpop.xlane.xlu0 %954
        %v956 = vsel %vm907, %v891, 0.0
        %957 = vadd.xlane.f32.xlu0 %v956
        %v958 = vpop.xlane.xlu0 %957
        %v959 = vsel %vm907, %v892, 0.0
        %960 = vadd.xlane.f32.xlu0 %v959
        %v961 = vpop.xlane.xlu0 %960
        %v962 = vsel %vm907, %v893, 0.0
        %963 = vadd.xlane.f32.xlu0 %v962
        %v964 = vpop.xlane.xlu0 %963
        %v965 = vsel %vm907, %v894, 0.0
        %966 = vadd.xlane.f32.xlu0 %v965
        %v967 = vpop.xlane.xlu0 %966
        %v968 = vsel %vm907, %v895, 0.0
        %969 = vadd.xlane.f32.xlu0 %v968
        %v970 = vpop.xlane.xlu0 %969
        %v971 = vsel %vm907, %v896, 0.0
        %972 = vadd.xlane.f32.xlu0 %v971
        %v973 = vpop.xlane.xlu0 %972
        %v974 = vsel %vm907, %v897, 0.0
        %975 = vadd.xlane.f32.xlu0 %v974
        %v976 = vpop.xlane.xlu0 %975
        %v977 = vsel %vm907, %v898, 0.0
        %978 = vadd.xlane.f32.xlu0 %v977
        %v979 = vpop.xlane.xlu0 %978
        %v980 = vsel %vm907, %v899, 0.0
        %981 = vadd.xlane.f32.xlu0 %v980
        %v982 = vpop.xlane.xlu0 %981
        %v983 = vsel %vm907, %v900, 0.0
        %984 = vadd.xlane.f32.xlu0 %v983
        %v985 = vpop.xlane.xlu0 %984
        %v986 = vsel %vm907, %v901, 0.0
        %987 = vadd.xlane.f32.xlu0 %v986
        %v988 = vpop.xlane.xlu0 %987
        %v989 = vsel %vm907, %v902, 0.0
        %990 = vadd.xlane.f32.xlu0 %v989
        %v991 = vpop.xlane.xlu0 %990
        %v992 = vsel %vm907, %v903, 0.0
        %993 = vadd.xlane.f32.xlu0 %v992
        %v994 = vpop.xlane.xlu0 %993
        %v995 = vsel %vm907, %v904, 0.0
        %996 = vadd.xlane.f32.xlu0 %v995
        %v997 = vpop.xlane.xlu0 %996
        %v998 = vsel %vm907, %v905, 0.0
        %999 = vadd.xlane.f32.xlu0 %v998
        %v1000 = vpop.xlane.xlu0 %999
        %v1001 = vsel %vm907, %v906, 0.0
        %1002 = vadd.xlane.f32.xlu0 %v1001
        %v1003 = vpop.xlane.xlu0 %1002
        %v1004 = vadd.f32 %v910, %v353
        %v1005 = vadd.f32 %v913, %v353
        %v1006 = vadd.f32 %v916, %v353
        %v1007 = vadd.f32 %v919, %v353
        %v1008 = vadd.f32 %v922, %v353
        %v1009 = vadd.f32 %v925, %v353
        %v1010 = vadd.f32 %v928, %v353
        %v1011 = vadd.f32 %v931, %v353
        %v1012 = vadd.f32 %v934, %v358
        %v1013 = vadd.f32 %v937, %v358
        %v1014 = vadd.f32 %v940, %v358
        %v1015 = vadd.f32 %v943, %v358
        %v1016 = vadd.f32 %v946, %v358
        %v1017 = vadd.f32 %v949, %v358
        %v1018 = vadd.f32 %v952, %v358
        %v1019 = vadd.f32 %v955, %v358
        %v1020 = vadd.f32 %v958, %v363
        %v1021 = vadd.f32 %v961, %v363
        %v1022 = vadd.f32 %v964, %v363
        %v1023 = vadd.f32 %v967, %v363
        %v1024 = vadd.f32 %v970, %v363
        %v1025 = vadd.f32 %v973, %v363
        %v1026 = vadd.f32 %v976, %v363
        %v1027 = vadd.f32 %v979, %v363
        %v1028 = vadd.f32 %v982, %v368
        %v1029 = vadd.f32 %v985, %v368
        %v1030 = vadd.f32 %v988, %v368
        %v1031 = vadd.f32 %v991, %v368
        %v1032 = vadd.f32 %v994, %v368
        %v1033 = vadd.f32 %v997, %v368
        %v1034 = vadd.f32 %v1000, %v368
        %v1035 = vadd.f32 %v1003, %v368
        %v1036 = vmax.f32 %v1004, %v1012
        %v1037 = vmax.f32 %v1036, %v1020
        %v1038 = vmax.f32 %v1037, %v1028
        %v1039 = vmax.f32 %v1005, %v1013
        %v1040 = vmax.f32 %v1039, %v1021
        %v1041 = vmax.f32 %v1040, %v1029
        %v1042 = vmax.f32 %v1006, %v1014
        %v1043 = vmax.f32 %v1042, %v1022
        %v1044 = vmax.f32 %v1043, %v1030
        %v1045 = vmax.f32 %v1007, %v1015
        %v1046 = vmax.f32 %v1045, %v1023
        %v1047 = vmax.f32 %v1046, %v1031
        %v1048 = vmax.f32 %v1008, %v1016
        %v1049 = vmax.f32 %v1048, %v1024
        %v1050 = vmax.f32 %v1049, %v1032
        %v1051 = vmax.f32 %v1009, %v1017
        %v1052 = vmax.f32 %v1051, %v1025
        %v1053 = vmax.f32 %v1052, %v1033
        %v1054 = vmax.f32 %v1010, %v1018
        %v1055 = vmax.f32 %v1054, %v1026
        %v1056 = vmax.f32 %v1055, %v1034
        %v1057 = vmax.f32 %v1011, %v1019
        %v1058 = vmax.f32 %v1057, %v1027
        %v1059 = vmax.f32 %v1058, %v1035
        %v1060 = vsub.f32 %v1004, %v1038
        %v1061 = vsub.f32 %v1005, %v1041
        %v1062 = vsub.f32 %v1006, %v1044
        %v1063 = vsub.f32 %v1007, %v1047
        %v1064 = vsub.f32 %v1008, %v1050
        %v1065 = vsub.f32 %v1009, %v1053
        %v1066 = vsub.f32 %v1010, %v1056
        %v1067 = vsub.f32 %v1011, %v1059
        %v1068 = vsub.f32 %v1012, %v1038
        %v1069 = vsub.f32 %v1013, %v1041
        %v1070 = vsub.f32 %v1014, %v1044
        %v1071 = vsub.f32 %v1015, %v1047
        %v1072 = vsub.f32 %v1016, %v1050
        %v1073 = vsub.f32 %v1017, %v1053
        %v1074 = vsub.f32 %v1018, %v1056
        %v1075 = vsub.f32 %v1019, %v1059
        %v1076 = vsub.f32 %v1020, %v1038
        %v1077 = vsub.f32 %v1021, %v1041
        %v1078 = vsub.f32 %v1022, %v1044
        %v1079 = vsub.f32 %v1023, %v1047
        %v1080 = vsub.f32 %v1024, %v1050
        %v1081 = vsub.f32 %v1025, %v1053
        %v1082 = vsub.f32 %v1026, %v1056
        %v1083 = vsub.f32 %v1027, %v1059
        %v1084 = vsub.f32 %v1028, %v1038
        %v1085 = vsub.f32 %v1029, %v1041
        %v1086 = vsub.f32 %v1030, %v1044
        %v1087 = vsub.f32 %v1031, %v1047
        %v1088 = vsub.f32 %v1032, %v1050
        %v1089 = vsub.f32 %v1033, %v1053
        %v1090 = vsub.f32 %v1034, %v1056
        %v1091 = vsub.f32 %v1035, %v1059
        %v1092 = vmul.f32 %v1060, 1.442695
        %v1093 = vpow.pop %v1092
        %v1094 = vmul.f32 %v1061, 1.442695
        %v1095 = vpow.pop %v1094
        %v1096 = vmul.f32 %v1062, 1.442695
        %v1097 = vpow.pop %v1096
        %v1098 = vmul.f32 %v1063, 1.442695
        %v1099 = vpow.pop %v1098
        %v1100 = vmul.f32 %v1064, 1.442695
        %v1101 = vpow.pop %v1100
        %v1102 = vmul.f32 %v1065, 1.442695
        %v1103 = vpow.pop %v1102
        %v1104 = vmul.f32 %v1066, 1.442695
        %v1105 = vpow.pop %v1104
        %v1106 = vmul.f32 %v1067, 1.442695
        %v1107 = vpow.pop %v1106
        %v1108 = vmul.f32 %v1068, 1.442695
        %v1109 = vpow.pop %v1108
        %v1110 = vmul.f32 %v1069, 1.442695
        %v1111 = vpow.pop %v1110
        %v1112 = vmul.f32 %v1070, 1.442695
        %v1113 = vpow.pop %v1112
        %v1114 = vmul.f32 %v1071, 1.442695
        %v1115 = vpow.pop %v1114
        %v1116 = vmul.f32 %v1072, 1.442695
        %v1117 = vpow.pop %v1116
        %v1118 = vmul.f32 %v1073, 1.442695
        %v1119 = vpow.pop %v1118
        %v1120 = vmul.f32 %v1074, 1.442695
        %v1121 = vpow.pop %v1120
        %v1122 = vmul.f32 %v1075, 1.442695
        %v1123 = vpow.pop %v1122
        %v1124 = vmul.f32 %v1076, 1.442695
        %v1125 = vpow.pop %v1124
        %v1126 = vmul.f32 %v1077, 1.442695
        %v1127 = vpow.pop %v1126
        %v1128 = vmul.f32 %v1078, 1.442695
        %v1129 = vpow.pop %v1128
        %v1130 = vmul.f32 %v1079, 1.442695
        %v1131 = vpow.pop %v1130
        %v1132 = vmul.f32 %v1080, 1.442695
        %v1133 = vpow.pop %v1132
        %v1134 = vmul.f32 %v1081, 1.442695
        %v1135 = vpow.pop %v1134
        %v1136 = vmul.f32 %v1082, 1.442695
        %v1137 = vpow.pop %v1136
        %v1138 = vmul.f32 %v1083, 1.442695
        %v1139 = vpow.pop %v1138
        %v1140 = vmul.f32 %v1084, 1.442695
        %v1141 = vpow.pop %v1140
        %v1142 = vmul.f32 %v1085, 1.442695
        %v1143 = vpow.pop %v1142
        %v1144 = vmul.f32 %v1086, 1.442695
        %v1145 = vpow.pop %v1144
        %v1146 = vmul.f32 %v1087, 1.442695
        %v1147 = vpow.pop %v1146
        %v1148 = vmul.f32 %v1088, 1.442695
        %v1149 = vpow.pop %v1148
        %v1150 = vmul.f32 %v1089, 1.442695
        %v1151 = vpow.pop %v1150
        %v1152 = vmul.f32 %v1090, 1.442695
        %v1153 = vpow.pop %v1152
        %v1154 = vmul.f32 %v1091, 1.442695
        %v1155 = vpow.pop %v1154
        %v1156 = vadd.f32 %v1093, %v1109
        %v1157 = vadd.f32 %v1156, %v1125
        %v1158 = vadd.f32 %v1157, %v1141
        %v1159 = vadd.f32 %v1095, %v1111
        %v1160 = vadd.f32 %v1159, %v1127
        %v1161 = vadd.f32 %v1160, %v1143
        %v1162 = vadd.f32 %v1097, %v1113
        %v1163 = vadd.f32 %v1162, %v1129
        %v1164 = vadd.f32 %v1163, %v1145
        %v1165 = vadd.f32 %v1099, %v1115
        %v1166 = vadd.f32 %v1165, %v1131
        %v1167 = vadd.f32 %v1166, %v1147
        %v1168 = vadd.f32 %v1101, %v1117
        %v1169 = vadd.f32 %v1168, %v1133
        %v1170 = vadd.f32 %v1169, %v1149
        %v1171 = vadd.f32 %v1103, %v1119
        %v1172 = vadd.f32 %v1171, %v1135
        %v1173 = vadd.f32 %v1172, %v1151
        %v1174 = vadd.f32 %v1105, %v1121
        %v1175 = vadd.f32 %v1174, %v1137
        %v1176 = vadd.f32 %v1175, %v1153
        %v1177 = vadd.f32 %v1107, %v1123
        %v1178 = vadd.f32 %v1177, %v1139
        %v1179 = vadd.f32 %v1178, %v1155
        %v1180 = vrcp.pop %v1158
        %v1181 = vrcp.pop %v1161
        %v1182 = vrcp.pop %v1164
        %v1183 = vrcp.pop %v1167
        %v1184 = vrcp.pop %v1170
        %v1185 = vrcp.pop %v1173
        %v1186 = vrcp.pop %v1176
        %v1187 = vrcp.pop %v1179
        %v1188 = vmul.f32 %v1158, %v1180
        %v1189 = vmul.f32 %v1161, %v1181
        %v1190 = vmul.f32 %v1164, %v1182
        %v1191 = vmul.f32 %v1167, %v1183
        %v1192 = vmul.f32 %v1170, %v1184
        %v1193 = vmul.f32 %v1173, %v1185
        %v1194 = vmul.f32 %v1176, %v1186
        %v1195 = vmul.f32 %v1179, %v1187
        %v1196 = vsub.f32 2.0, %v1188
        %v1197 = vsub.f32 2.0, %v1189
        %v1198 = vsub.f32 2.0, %v1190
        %v1199 = vsub.f32 2.0, %v1191
        %v1200 = vsub.f32 2.0, %v1192
        %v1201 = vsub.f32 2.0, %v1193
        %v1202 = vsub.f32 2.0, %v1194
        %v1203 = vsub.f32 2.0, %v1195
        %v1204 = vmul.f32 %v1180, %v1196
        %v1205 = vmul.f32 %v1181, %v1197
        %v1206 = vmul.f32 %v1182, %v1198
        %v1207 = vmul.f32 %v1183, %v1199
        %v1208 = vmul.f32 %v1184, %v1200
        %v1209 = vmul.f32 %v1185, %v1201
        %v1210 = vmul.f32 %v1186, %v1202
        %v1211 = vmul.f32 %v1187, %v1203
        %v1212 = vmul.f32 %v1093, %v1204
        %v1213 = vmul.f32 %v1095, %v1205
        %v1214 = vmul.f32 %v1097, %v1206
        %v1215 = vmul.f32 %v1099, %v1207
        %v1216 = vmul.f32 %v1101, %v1208
        %v1217 = vmul.f32 %v1103, %v1209
        %v1218 = vmul.f32 %v1105, %v1210
        %v1219 = vmul.f32 %v1107, %v1211
        %v1220 = vmul.f32 %v1109, %v1204
        %v1221 = vmul.f32 %v1111, %v1205
        %v1222 = vmul.f32 %v1113, %v1206
        %v1223 = vmul.f32 %v1115, %v1207
        %v1224 = vmul.f32 %v1117, %v1208
        %v1225 = vmul.f32 %v1119, %v1209
        %v1226 = vmul.f32 %v1121, %v1210
        %v1227 = vmul.f32 %v1123, %v1211
        %v1228 = vmul.f32 %v1125, %v1204
        %v1229 = vmul.f32 %v1127, %v1205
        %v1230 = vmul.f32 %v1129, %v1206
        %v1231 = vmul.f32 %v1131, %v1207
        %v1232 = vmul.f32 %v1133, %v1208
        %v1233 = vmul.f32 %v1135, %v1209
        %v1234 = vmul.f32 %v1137, %v1210
        %v1235 = vmul.f32 %v1139, %v1211
        %v1236 = vmul.f32 %v1141, %v1204
        %v1237 = vmul.f32 %v1143, %v1205
        %v1238 = vmul.f32 %v1145, %v1206
        %v1239 = vmul.f32 %v1147, %v1207
        %v1240 = vmul.f32 %v1149, %v1208
        %v1241 = vmul.f32 %v1151, %v1209
        %v1242 = vmul.f32 %v1153, %v1210
        %v1243 = vmul.f32 %v1155, %v1211
        %v1244 = vmul.f32 %v1212, %v717
        %v1245 = vmul.f32 %v1213, %v722
        %v1246 = vmul.f32 %v1214, %v727
        %v1247 = vmul.f32 %v1215, %v732
        %v1248 = vmul.f32 %v1216, %v737
        %v1249 = vmul.f32 %v1217, %v742
        %v1250 = vmul.f32 %v1218, %v747
        %v1251 = vmul.f32 %v1219, %v752
        %v1252 = vmul.f32 %v1220, %v757
        %v1253 = vmul.f32 %v1221, %v762
        %v1254 = vmul.f32 %v1222, %v767
        %v1255 = vmul.f32 %v1223, %v772
        %v1256 = vmul.f32 %v1224, %v777
        %v1257 = vmul.f32 %v1225, %v782
        %v1258 = vmul.f32 %v1226, %v787
        %v1259 = vmul.f32 %v1227, %v792
        %v1260 = vmul.f32 %v1228, %v797
        %v1261 = vmul.f32 %v1229, %v802
        %v1262 = vmul.f32 %v1230, %v807
        %v1263 = vmul.f32 %v1231, %v812
        %v1264 = vmul.f32 %v1232, %v817
        %v1265 = vmul.f32 %v1233, %v822
        %v1266 = vmul.f32 %v1234, %v827
        %v1267 = vmul.f32 %v1235, %v832
        %v1268 = vmul.f32 %v1236, %v837
        %v1269 = vmul.f32 %v1237, %v842
        %v1270 = vmul.f32 %v1238, %v847
        %v1271 = vmul.f32 %v1239, %v852
        %v1272 = vmul.f32 %v1240, %v857
        %v1273 = vmul.f32 %v1241, %v862
        %v1274 = vmul.f32 %v1242, %v867
        %v1275 = vmul.f32 %v1243, %v872
        %vm1276 = vcmask 97344
        %v1277 = vsel %vm1276, %v1244, 0.0
        %v1278 = vsel %vm1276, %v1252, 0.0
        %v1279 = vadd.f32 %v1277, %v1278
        %v1280 = vsel %vm1276, %v1260, 0.0
        %v1281 = vadd.f32 %v1279, %v1280
        %v1282 = vsel %vm1276, %v1268, 0.0
        %v1283 = vadd.f32 %v1281, %v1282
        %v1284 = vsel %vm1276, %v1245, 0.0
        %v1285 = vsel %vm1276, %v1253, 0.0
        %v1286 = vadd.f32 %v1284, %v1285
        %v1287 = vsel %vm1276, %v1261, 0.0
        %v1288 = vadd.f32 %v1286, %v1287
        %v1289 = vsel %vm1276, %v1269, 0.0
        %v1290 = vadd.f32 %v1288, %v1289
        %v1291 = vsel %vm1276, %v1246, 0.0
        %v1292 = vsel %vm1276, %v1254, 0.0
        %v1293 = vadd.f32 %v1291, %v1292
        %v1294 = vsel %vm1276, %v1262, 0.0
        %v1295 = vadd.f32 %v1293, %v1294
        %v1296 = vsel %vm1276, %v1270, 0.0
        %v1297 = vadd.f32 %v1295, %v1296
        %v1298 = vsel %vm1276, %v1247, 0.0
        %v1299 = vsel %vm1276, %v1255, 0.0
        %v1300 = vadd.f32 %v1298, %v1299
        %v1301 = vsel %vm1276, %v1263, 0.0
        %v1302 = vadd.f32 %v1300, %v1301
        %v1303 = vsel %vm1276, %v1271, 0.0
        %v1304 = vadd.f32 %v1302, %v1303
        %v1305 = vsel %vm1276, %v1248, 0.0
        %v1306 = vsel %vm1276, %v1256, 0.0
        %v1307 = vadd.f32 %v1305, %v1306
        %v1308 = vsel %vm1276, %v1264, 0.0
        %v1309 = vadd.f32 %v1307, %v1308
        %v1310 = vsel %vm1276, %v1272, 0.0
        %v1311 = vadd.f32 %v1309, %v1310
        %v1312 = vsel %vm1276, %v1249, 0.0
        %v1313 = vsel %vm1276, %v1257, 0.0
        %v1314 = vadd.f32 %v1312, %v1313
        %v1315 = vsel %vm1276, %v1265, 0.0
        %v1316 = vadd.f32 %v1314, %v1315
        %v1317 = vsel %vm1276, %v1273, 0.0
        %v1318 = vadd.f32 %v1316, %v1317
        %v1319 = vsel %vm1276, %v1250, 0.0
        %v1320 = vsel %vm1276, %v1258, 0.0
        %v1321 = vadd.f32 %v1319, %v1320
        %v1322 = vsel %vm1276, %v1266, 0.0
        %v1323 = vadd.f32 %v1321, %v1322
        %v1324 = vsel %vm1276, %v1274, 0.0
        %v1325 = vadd.f32 %v1323, %v1324
        %v1326 = vsel %vm1276, %v1251, 0.0
        %v1327 = vsel %vm1276, %v1259, 0.0
        %v1328 = vadd.f32 %v1326, %v1327
        %v1329 = vsel %vm1276, %v1267, 0.0
        %v1330 = vadd.f32 %v1328, %v1329
        %v1331 = vsel %vm1276, %v1275, 0.0
        %v1332 = vadd.f32 %v1330, %v1331
        %1341 = vrot.lane.b32.xlu0 %v1283, 120
        %v1342 = vpop.permute.xlu0 %1341
        %1343 = vrot.lane.b32.xlu0 %v1290, 120
        %v1344 = vpop.permute.xlu0 %1343
        %1345 = vrot.lane.b32.xlu0 %v1297, 120
        %v1346 = vpop.permute.xlu0 %1345
        %1347 = vrot.lane.b32.xlu0 %v1304, 120
        %v1348 = vpop.permute.xlu0 %1347
        %1349 = vrot.lane.b32.xlu0 %v1311, 120
        %v1350 = vpop.permute.xlu0 %1349
        %1351 = vrot.lane.b32.xlu0 %v1318, 120
        %v1352 = vpop.permute.xlu0 %1351
        %1353 = vrot.lane.b32.xlu0 %v1325, 120
        %v1354 = vpop.permute.xlu0 %1353
        %1355 = vrot.lane.b32.xlu0 %v1332, 120
        %v1356 = vpop.permute.xlu0 %1355
        %vm1365 = vcmask 31744
        %1366 = vst.msk [vmem:[#allocation2] sm:$0xff] %vm1365, %v1342
        %1367 = vst.msk [vmem:[#allocation2 + $0x8] sm:$0xff] %vm1365, %v1344
        %1368 = vst.msk [vmem:[#allocation2 + $0x10] sm:$0xff] %vm1365, %v1346
        %1369 = vst.msk [vmem:[#allocation2 + $0x18] sm:$0xff] %vm1365, %v1348
        %1370 = vst.msk [vmem:[#allocation2 + $0x20] sm:$0xff] %vm1365, %v1350
        %1371 = vst.msk [vmem:[#allocation2 + $0x28] sm:$0xff] %vm1365, %v1352
        %1372 = vst.msk [vmem:[#allocation2 + $0x30] sm:$0xff] %vm1365, %v1354
        %1373 = vst.msk [vmem:[#allocation2 + $0x38] sm:$0xff] %vm1365, %v1356
        %1406 = vrot.lane.b32.xlu0 %v717, 124
        %v1407 = vpop.permute.xlu0 %1406
        %1408 = vrot.lane.b32.xlu0 %v722, 124
        %v1409 = vpop.permute.xlu0 %1408
        %1410 = vrot.lane.b32.xlu0 %v727, 124
        %v1411 = vpop.permute.xlu0 %1410
        %1412 = vrot.lane.b32.xlu0 %v732, 124
        %v1413 = vpop.permute.xlu0 %1412
        %1414 = vrot.lane.b32.xlu0 %v737, 124
        %v1415 = vpop.permute.xlu0 %1414
        %1416 = vrot.lane.b32.xlu0 %v742, 124
        %v1417 = vpop.permute.xlu0 %1416
        %1418 = vrot.lane.b32.xlu0 %v747, 124
        %v1419 = vpop.permute.xlu0 %1418
        %1420 = vrot.lane.b32.xlu0 %v752, 124
        %v1421 = vpop.permute.xlu0 %1420
        %1422 = vrot.lane.b32.xlu0 %v757, 124
        %v1423 = vpop.permute.xlu0 %1422
        %1424 = vrot.lane.b32.xlu0 %v762, 124
        %v1425 = vpop.permute.xlu0 %1424
        %1426 = vrot.lane.b32.xlu0 %v767, 124
        %v1427 = vpop.permute.xlu0 %1426
        %1428 = vrot.lane.b32.xlu0 %v772, 124
        %v1429 = vpop.permute.xlu0 %1428
        %1430 = vrot.lane.b32.xlu0 %v777, 124
        %v1431 = vpop.permute.xlu0 %1430
        %1432 = vrot.lane.b32.xlu0 %v782, 124
        %v1433 = vpop.permute.xlu0 %1432
        %1434 = vrot.lane.b32.xlu0 %v787, 124
        %v1435 = vpop.permute.xlu0 %1434
        %1436 = vrot.lane.b32.xlu0 %v792, 124
        %v1437 = vpop.permute.xlu0 %1436
        %1438 = vrot.lane.b32.xlu0 %v797, 124
        %v1439 = vpop.permute.xlu0 %1438
        %1440 = vrot.lane.b32.xlu0 %v802, 124
        %v1441 = vpop.permute.xlu0 %1440
        %1442 = vrot.lane.b32.xlu0 %v807, 124
        %v1443 = vpop.permute.xlu0 %1442
        %1444 = vrot.lane.b32.xlu0 %v812, 124
        %v1445 = vpop.permute.xlu0 %1444
        %1446 = vrot.lane.b32.xlu0 %v817, 124
        %v1447 = vpop.permute.xlu0 %1446
        %1448 = vrot.lane.b32.xlu0 %v822, 124
        %v1449 = vpop.permute.xlu0 %1448
        %1450 = vrot.lane.b32.xlu0 %v827, 124
        %v1451 = vpop.permute.xlu0 %1450
        %1452 = vrot.lane.b32.xlu0 %v832, 124
        %v1453 = vpop.permute.xlu0 %1452
        %1454 = vrot.lane.b32.xlu0 %v837, 124
        %v1455 = vpop.permute.xlu0 %1454
        %1456 = vrot.lane.b32.xlu0 %v842, 124
        %v1457 = vpop.permute.xlu0 %1456
        %1458 = vrot.lane.b32.xlu0 %v847, 124
        %v1459 = vpop.permute.xlu0 %1458
        %1460 = vrot.lane.b32.xlu0 %v852, 124
        %v1461 = vpop.permute.xlu0 %1460
        %1462 = vrot.lane.b32.xlu0 %v857, 124
        %v1463 = vpop.permute.xlu0 %1462
        %1464 = vrot.lane.b32.xlu0 %v862, 124
        %v1465 = vpop.permute.xlu0 %1464
        %1466 = vrot.lane.b32.xlu0 %v867, 124
        %v1467 = vpop.permute.xlu0 %1466
        %1468 = vrot.lane.b32.xlu0 %v872, 124
        %v1469 = vpop.permute.xlu0 %1468
        %v1502 = vmul.f32 %v543, %v1407
        %v1503 = vmul.f32 %v544, %v1409
        %v1504 = vmul.f32 %v545, %v1411
        %v1505 = vmul.f32 %v546, %v1413
        %v1506 = vmul.f32 %v547, %v1415
        %v1507 = vmul.f32 %v548, %v1417
        %v1508 = vmul.f32 %v549, %v1419
        %v1509 = vmul.f32 %v550, %v1421
        %v1510 = vmul.f32 %v543, %v1423
        %v1511 = vmul.f32 %v544, %v1425
        %v1512 = vmul.f32 %v545, %v1427
        %v1513 = vmul.f32 %v546, %v1429
        %v1514 = vmul.f32 %v547, %v1431
        %v1515 = vmul.f32 %v548, %v1433
        %v1516 = vmul.f32 %v549, %v1435
        %v1517 = vmul.f32 %v550, %v1437
        %v1518 = vmul.f32 %v543, %v1439
        %v1519 = vmul.f32 %v544, %v1441
        %v1520 = vmul.f32 %v545, %v1443
        %v1521 = vmul.f32 %v546, %v1445
        %v1522 = vmul.f32 %v547, %v1447
        %v1523 = vmul.f32 %v548, %v1449
        %v1524 = vmul.f32 %v549, %v1451
        %v1525 = vmul.f32 %v550, %v1453
        %v1526 = vmul.f32 %v543, %v1455
        %v1527 = vmul.f32 %v544, %v1457
        %v1528 = vmul.f32 %v545, %v1459
        %v1529 = vmul.f32 %v546, %v1461
        %v1530 = vmul.f32 %v547, %v1463
        %v1531 = vmul.f32 %v548, %v1465
        %v1532 = vmul.f32 %v549, %v1467
        %v1533 = vmul.f32 %v550, %v1469
        %1566 = vrot.lane.b32.xlu0 %v1502, 120
        %v1567 = vpop.permute.xlu0 %1566
        %1568 = vrot.lane.b32.xlu0 %v1503, 120
        %v1569 = vpop.permute.xlu0 %1568
        %1570 = vrot.lane.b32.xlu0 %v1504, 120
        %v1571 = vpop.permute.xlu0 %1570
        %1572 = vrot.lane.b32.xlu0 %v1505, 120
        %v1573 = vpop.permute.xlu0 %1572
        %1574 = vrot.lane.b32.xlu0 %v1506, 120
        %v1575 = vpop.permute.xlu0 %1574
        %1576 = vrot.lane.b32.xlu0 %v1507, 120
        %v1577 = vpop.permute.xlu0 %1576
        %1578 = vrot.lane.b32.xlu0 %v1508, 120
        %v1579 = vpop.permute.xlu0 %1578
        %1580 = vrot.lane.b32.xlu0 %v1509, 120
        %v1581 = vpop.permute.xlu0 %1580
        %1582 = vrot.lane.b32.xlu0 %v1510, 120
        %v1583 = vpop.permute.xlu0 %1582
        %1584 = vrot.lane.b32.xlu0 %v1511, 120
        %v1585 = vpop.permute.xlu0 %1584
        %1586 = vrot.lane.b32.xlu0 %v1512, 120
        %v1587 = vpop.permute.xlu0 %1586
        %1588 = vrot.lane.b32.xlu0 %v1513, 120
        %v1589 = vpop.permute.xlu0 %1588
        %1590 = vrot.lane.b32.xlu0 %v1514, 120
        %v1591 = vpop.permute.xlu0 %1590
        %1592 = vrot.lane.b32.xlu0 %v1515, 120
        %v1593 = vpop.permute.xlu0 %1592
        %1594 = vrot.lane.b32.xlu0 %v1516, 120
        %v1595 = vpop.permute.xlu0 %1594
        %1596 = vrot.lane.b32.xlu0 %v1517, 120
        %v1597 = vpop.permute.xlu0 %1596
        %1598 = vrot.lane.b32.xlu0 %v1518, 120
        %v1599 = vpop.permute.xlu0 %1598
        %1600 = vrot.lane.b32.xlu0 %v1519, 120
        %v1601 = vpop.permute.xlu0 %1600
        %1602 = vrot.lane.b32.xlu0 %v1520, 120
        %v1603 = vpop.permute.xlu0 %1602
        %1604 = vrot.lane.b32.xlu0 %v1521, 120
        %v1605 = vpop.permute.xlu0 %1604
        %1606 = vrot.lane.b32.xlu0 %v1522, 120
        %v1607 = vpop.permute.xlu0 %1606
        %1608 = vrot.lane.b32.xlu0 %v1523, 120
        %v1609 = vpop.permute.xlu0 %1608
        %1610 = vrot.lane.b32.xlu0 %v1524, 120
        %v1611 = vpop.permute.xlu0 %1610
        %1612 = vrot.lane.b32.xlu0 %v1525, 120
        %v1613 = vpop.permute.xlu0 %1612
        %1614 = vrot.lane.b32.xlu0 %v1526, 120
        %v1615 = vpop.permute.xlu0 %1614
        %1616 = vrot.lane.b32.xlu0 %v1527, 120
        %v1617 = vpop.permute.xlu0 %1616
        %1618 = vrot.lane.b32.xlu0 %v1528, 120
        %v1619 = vpop.permute.xlu0 %1618
        %1620 = vrot.lane.b32.xlu0 %v1529, 120
        %v1621 = vpop.permute.xlu0 %1620
        %1622 = vrot.lane.b32.xlu0 %v1530, 120
        %v1623 = vpop.permute.xlu0 %1622
        %1624 = vrot.lane.b32.xlu0 %v1531, 120
        %v1625 = vpop.permute.xlu0 %1624
        %1626 = vrot.lane.b32.xlu0 %v1532, 120
        %v1627 = vpop.permute.xlu0 %1626
        %1628 = vrot.lane.b32.xlu0 %v1533, 120
        %v1629 = vpop.permute.xlu0 %1628
        %v1662 = vsel %vm907, %v1567, 0.0
        %1663 = vadd.xlane.f32.xlu0 %v1662
        %v1664 = vpop.xlane.xlu0 %1663
        %v1665 = vsel %vm907, %v1569, 0.0
        %1666 = vadd.xlane.f32.xlu0 %v1665
        %v1667 = vpop.xlane.xlu0 %1666
        %v1668 = vsel %vm907, %v1571, 0.0
        %1669 = vadd.xlane.f32.xlu0 %v1668
        %v1670 = vpop.xlane.xlu0 %1669
        %v1671 = vsel %vm907, %v1573, 0.0
        %1672 = vadd.xlane.f32.xlu0 %v1671
        %v1673 = vpop.xlane.xlu0 %1672
        %v1674 = vsel %vm907, %v1575, 0.0
        %1675 = vadd.xlane.f32.xlu0 %v1674
        %v1676 = vpop.xlane.xlu0 %1675
        %v1677 = vsel %vm907, %v1577, 0.0
        %1678 = vadd.xlane.f32.xlu0 %v1677
        %v1679 = vpop.xlane.xlu0 %1678
        %v1680 = vsel %vm907, %v1579, 0.0
        %1681 = vadd.xlane.f32.xlu0 %v1680
        %v1682 = vpop.xlane.xlu0 %1681
        %v1683 = vsel %vm907, %v1581, 0.0
        %1684 = vadd.xlane.f32.xlu0 %v1683
        %v1685 = vpop.xlane.xlu0 %1684
        %v1686 = vsel %vm907, %v1583, 0.0
        %1687 = vadd.xlane.f32.xlu0 %v1686
        %v1688 = vpop.xlane.xlu0 %1687
        %v1689 = vsel %vm907, %v1585, 0.0
        %1690 = vadd.xlane.f32.xlu0 %v1689
        %v1691 = vpop.xlane.xlu0 %1690
        %v1692 = vsel %vm907, %v1587, 0.0
        %1693 = vadd.xlane.f32.xlu0 %v1692
        %v1694 = vpop.xlane.xlu0 %1693
        %v1695 = vsel %vm907, %v1589, 0.0
        %1696 = vadd.xlane.f32.xlu0 %v1695
        %v1697 = vpop.xlane.xlu0 %1696
        %v1698 = vsel %vm907, %v1591, 0.0
        %1699 = vadd.xlane.f32.xlu0 %v1698
        %v1700 = vpop.xlane.xlu0 %1699
        %v1701 = vsel %vm907, %v1593, 0.0
        %1702 = vadd.xlane.f32.xlu0 %v1701
        %v1703 = vpop.xlane.xlu0 %1702
        %v1704 = vsel %vm907, %v1595, 0.0
        %1705 = vadd.xlane.f32.xlu0 %v1704
        %v1706 = vpop.xlane.xlu0 %1705
        %v1707 = vsel %vm907, %v1597, 0.0
        %1708 = vadd.xlane.f32.xlu0 %v1707
        %v1709 = vpop.xlane.xlu0 %1708
        %v1710 = vsel %vm907, %v1599, 0.0
        %1711 = vadd.xlane.f32.xlu0 %v1710
        %v1712 = vpop.xlane.xlu0 %1711
        %v1713 = vsel %vm907, %v1601, 0.0
        %1714 = vadd.xlane.f32.xlu0 %v1713
        %v1715 = vpop.xlane.xlu0 %1714
        %v1716 = vsel %vm907, %v1603, 0.0
        %1717 = vadd.xlane.f32.xlu0 %v1716
        %v1718 = vpop.xlane.xlu0 %1717
        %v1719 = vsel %vm907, %v1605, 0.0
        %1720 = vadd.xlane.f32.xlu0 %v1719
        %v1721 = vpop.xlane.xlu0 %1720
        %v1722 = vsel %vm907, %v1607, 0.0
        %1723 = vadd.xlane.f32.xlu0 %v1722
        %v1724 = vpop.xlane.xlu0 %1723
        %v1725 = vsel %vm907, %v1609, 0.0
        %1726 = vadd.xlane.f32.xlu0 %v1725
        %v1727 = vpop.xlane.xlu0 %1726
        %v1728 = vsel %vm907, %v1611, 0.0
        %1729 = vadd.xlane.f32.xlu0 %v1728
        %v1730 = vpop.xlane.xlu0 %1729
        %v1731 = vsel %vm907, %v1613, 0.0
        %1732 = vadd.xlane.f32.xlu0 %v1731
        %v1733 = vpop.xlane.xlu0 %1732
        %v1734 = vsel %vm907, %v1615, 0.0
        %1735 = vadd.xlane.f32.xlu0 %v1734
        %v1736 = vpop.xlane.xlu0 %1735
        %v1737 = vsel %vm907, %v1617, 0.0
        %1738 = vadd.xlane.f32.xlu0 %v1737
        %v1739 = vpop.xlane.xlu0 %1738
        %v1740 = vsel %vm907, %v1619, 0.0
        %1741 = vadd.xlane.f32.xlu0 %v1740
        %v1742 = vpop.xlane.xlu0 %1741
        %v1743 = vsel %vm907, %v1621, 0.0
        %1744 = vadd.xlane.f32.xlu0 %v1743
        %v1745 = vpop.xlane.xlu0 %1744
        %v1746 = vsel %vm907, %v1623, 0.0
        %1747 = vadd.xlane.f32.xlu0 %v1746
        %v1748 = vpop.xlane.xlu0 %1747
        %v1749 = vsel %vm907, %v1625, 0.0
        %1750 = vadd.xlane.f32.xlu0 %v1749
        %v1751 = vpop.xlane.xlu0 %1750
        %v1752 = vsel %vm907, %v1627, 0.0
        %1753 = vadd.xlane.f32.xlu0 %v1752
        %v1754 = vpop.xlane.xlu0 %1753
        %v1755 = vsel %vm907, %v1629, 0.0
        %1756 = vadd.xlane.f32.xlu0 %v1755
        %v1757 = vpop.xlane.xlu0 %1756
        %v1758 = vadd.f32 %v1664, %v353
        %v1759 = vadd.f32 %v1667, %v353
        %v1760 = vadd.f32 %v1670, %v353
        %v1761 = vadd.f32 %v1673, %v353
        %v1762 = vadd.f32 %v1676, %v353
        %v1763 = vadd.f32 %v1679, %v353
        %v1764 = vadd.f32 %v1682, %v353
        %v1765 = vadd.f32 %v1685, %v353
        %v1766 = vadd.f32 %v1688, %v358
        %v1767 = vadd.f32 %v1691, %v358
        %v1768 = vadd.f32 %v1694, %v358
        %v1769 = vadd.f32 %v1697, %v358
        %v1770 = vadd.f32 %v1700, %v358
        %v1771 = vadd.f32 %v1703, %v358
        %v1772 = vadd.f32 %v1706, %v358
        %v1773 = vadd.f32 %v1709, %v358
        %v1774 = vadd.f32 %v1712, %v363
        %v1775 = vadd.f32 %v1715, %v363
        %v1776 = vadd.f32 %v1718, %v363
        %v1777 = vadd.f32 %v1721, %v363
        %v1778 = vadd.f32 %v1724, %v363
        %v1779 = vadd.f32 %v1727, %v363
        %v1780 = vadd.f32 %v1730, %v363
        %v1781 = vadd.f32 %v1733, %v363
        %v1782 = vadd.f32 %v1736, %v368
        %v1783 = vadd.f32 %v1739, %v368
        %v1784 = vadd.f32 %v1742, %v368
        %v1785 = vadd.f32 %v1745, %v368
        %v1786 = vadd.f32 %v1748, %v368
        %v1787 = vadd.f32 %v1751, %v368
        %v1788 = vadd.f32 %v1754, %v368
        %v1789 = vadd.f32 %v1757, %v368
        %v1790 = vmax.f32 %v1758, %v1766
        %v1791 = vmax.f32 %v1790, %v1774
        %v1792 = vmax.f32 %v1791, %v1782
        %v1793 = vmax.f32 %v1759, %v1767
        %v1794 = vmax.f32 %v1793, %v1775
        %v1795 = vmax.f32 %v1794, %v1783
        %v1796 = vmax.f32 %v1760, %v1768
        %v1797 = vmax.f32 %v1796, %v1776
        %v1798 = vmax.f32 %v1797, %v1784
        %v1799 = vmax.f32 %v1761, %v1769
        %v1800 = vmax.f32 %v1799, %v1777
        %v1801 = vmax.f32 %v1800, %v1785
        %v1802 = vmax.f32 %v1762, %v1770
        %v1803 = vmax.f32 %v1802, %v1778
        %v1804 = vmax.f32 %v1803, %v1786
        %v1805 = vmax.f32 %v1763, %v1771
        %v1806 = vmax.f32 %v1805, %v1779
        %v1807 = vmax.f32 %v1806, %v1787
        %v1808 = vmax.f32 %v1764, %v1772
        %v1809 = vmax.f32 %v1808, %v1780
        %v1810 = vmax.f32 %v1809, %v1788
        %v1811 = vmax.f32 %v1765, %v1773
        %v1812 = vmax.f32 %v1811, %v1781
        %v1813 = vmax.f32 %v1812, %v1789
        %v1814 = vsub.f32 %v1758, %v1792
        %v1815 = vsub.f32 %v1759, %v1795
        %v1816 = vsub.f32 %v1760, %v1798
        %v1817 = vsub.f32 %v1761, %v1801
        %v1818 = vsub.f32 %v1762, %v1804
        %v1819 = vsub.f32 %v1763, %v1807
        %v1820 = vsub.f32 %v1764, %v1810
        %v1821 = vsub.f32 %v1765, %v1813
        %v1822 = vsub.f32 %v1766, %v1792
        %v1823 = vsub.f32 %v1767, %v1795
        %v1824 = vsub.f32 %v1768, %v1798
        %v1825 = vsub.f32 %v1769, %v1801
        %v1826 = vsub.f32 %v1770, %v1804
        %v1827 = vsub.f32 %v1771, %v1807
        %v1828 = vsub.f32 %v1772, %v1810
        %v1829 = vsub.f32 %v1773, %v1813
        %v1830 = vsub.f32 %v1774, %v1792
        %v1831 = vsub.f32 %v1775, %v1795
        %v1832 = vsub.f32 %v1776, %v1798
        %v1833 = vsub.f32 %v1777, %v1801
        %v1834 = vsub.f32 %v1778, %v1804
        %v1835 = vsub.f32 %v1779, %v1807
        %v1836 = vsub.f32 %v1780, %v1810
        %v1837 = vsub.f32 %v1781, %v1813
        %v1838 = vsub.f32 %v1782, %v1792
        %v1839 = vsub.f32 %v1783, %v1795
        %v1840 = vsub.f32 %v1784, %v1798
        %v1841 = vsub.f32 %v1785, %v1801
        %v1842 = vsub.f32 %v1786, %v1804
        %v1843 = vsub.f32 %v1787, %v1807
        %v1844 = vsub.f32 %v1788, %v1810
        %v1845 = vsub.f32 %v1789, %v1813
        %v1846 = vmul.f32 %v1814, 1.442695
        %v1847 = vpow.pop %v1846
        %v1848 = vmul.f32 %v1815, 1.442695
        %v1849 = vpow.pop %v1848
        %v1850 = vmul.f32 %v1816, 1.442695
        %v1851 = vpow.pop %v1850
        %v1852 = vmul.f32 %v1817, 1.442695
        %v1853 = vpow.pop %v1852
        %v1854 = vmul.f32 %v1818, 1.442695
        %v1855 = vpow.pop %v1854
        %v1856 = vmul.f32 %v1819, 1.442695
        %v1857 = vpow.pop %v1856
        %v1858 = vmul.f32 %v1820, 1.442695
        %v1859 = vpow.pop %v1858
        %v1860 = vmul.f32 %v1821, 1.442695
        %v1861 = vpow.pop %v1860
        %v1862 = vmul.f32 %v1822, 1.442695
        %v1863 = vpow.pop %v1862
        %v1864 = vmul.f32 %v1823, 1.442695
        %v1865 = vpow.pop %v1864
        %v1866 = vmul.f32 %v1824, 1.442695
        %v1867 = vpow.pop %v1866
        %v1868 = vmul.f32 %v1825, 1.442695
        %v1869 = vpow.pop %v1868
        %v1870 = vmul.f32 %v1826, 1.442695
        %v1871 = vpow.pop %v1870
        %v1872 = vmul.f32 %v1827, 1.442695
        %v1873 = vpow.pop %v1872
        %v1874 = vmul.f32 %v1828, 1.442695
        %v1875 = vpow.pop %v1874
        %v1876 = vmul.f32 %v1829, 1.442695
        %v1877 = vpow.pop %v1876
        %v1878 = vmul.f32 %v1830, 1.442695
        %v1879 = vpow.pop %v1878
        %v1880 = vmul.f32 %v1831, 1.442695
        %v1881 = vpow.pop %v1880
        %v1882 = vmul.f32 %v1832, 1.442695
        %v1883 = vpow.pop %v1882
        %v1884 = vmul.f32 %v1833, 1.442695
        %v1885 = vpow.pop %v1884
        %v1886 = vmul.f32 %v1834, 1.442695
        %v1887 = vpow.pop %v1886
        %v1888 = vmul.f32 %v1835, 1.442695
        %v1889 = vpow.pop %v1888
        %v1890 = vmul.f32 %v1836, 1.442695
        %v1891 = vpow.pop %v1890
        %v1892 = vmul.f32 %v1837, 1.442695
        %v1893 = vpow.pop %v1892
        %v1894 = vmul.f32 %v1838, 1.442695
        %v1895 = vpow.pop %v1894
        %v1896 = vmul.f32 %v1839, 1.442695
        %v1897 = vpow.pop %v1896
        %v1898 = vmul.f32 %v1840, 1.442695
        %v1899 = vpow.pop %v1898
        %v1900 = vmul.f32 %v1841, 1.442695
        %v1901 = vpow.pop %v1900
        %v1902 = vmul.f32 %v1842, 1.442695
        %v1903 = vpow.pop %v1902
        %v1904 = vmul.f32 %v1843, 1.442695
        %v1905 = vpow.pop %v1904
        %v1906 = vmul.f32 %v1844, 1.442695
        %v1907 = vpow.pop %v1906
        %v1908 = vmul.f32 %v1845, 1.442695
        %v1909 = vpow.pop %v1908
        %v1910 = vadd.f32 %v1847, %v1863
        %v1911 = vadd.f32 %v1910, %v1879
        %v1912 = vadd.f32 %v1911, %v1895
        %v1913 = vadd.f32 %v1849, %v1865
        %v1914 = vadd.f32 %v1913, %v1881
        %v1915 = vadd.f32 %v1914, %v1897
        %v1916 = vadd.f32 %v1851, %v1867
        %v1917 = vadd.f32 %v1916, %v1883
        %v1918 = vadd.f32 %v1917, %v1899
        %v1919 = vadd.f32 %v1853, %v1869
        %v1920 = vadd.f32 %v1919, %v1885
        %v1921 = vadd.f32 %v1920, %v1901
        %v1922 = vadd.f32 %v1855, %v1871
        %v1923 = vadd.f32 %v1922, %v1887
        %v1924 = vadd.f32 %v1923, %v1903
        %v1925 = vadd.f32 %v1857, %v1873
        %v1926 = vadd.f32 %v1925, %v1889
        %v1927 = vadd.f32 %v1926, %v1905
        %v1928 = vadd.f32 %v1859, %v1875
        %v1929 = vadd.f32 %v1928, %v1891
        %v1930 = vadd.f32 %v1929, %v1907
        %v1931 = vadd.f32 %v1861, %v1877
        %v1932 = vadd.f32 %v1931, %v1893
        %v1933 = vadd.f32 %v1932, %v1909
        %v1934 = vrcp.pop %v1912
        %v1935 = vrcp.pop %v1915
        %v1936 = vrcp.pop %v1918
        %v1937 = vrcp.pop %v1921
        %v1938 = vrcp.pop %v1924
        %v1939 = vrcp.pop %v1927
        %v1940 = vrcp.pop %v1930
        %v1941 = vrcp.pop %v1933
        %v1942 = vmul.f32 %v1912, %v1934
        %v1943 = vmul.f32 %v1915, %v1935
        %v1944 = vmul.f32 %v1918, %v1936
        %v1945 = vmul.f32 %v1921, %v1937
        %v1946 = vmul.f32 %v1924, %v1938
        %v1947 = vmul.f32 %v1927, %v1939
        %v1948 = vmul.f32 %v1930, %v1940
        %v1949 = vmul.f32 %v1933, %v1941
        %v1950 = vsub.f32 2.0, %v1942
        %v1951 = vsub.f32 2.0, %v1943
        %v1952 = vsub.f32 2.0, %v1944
        %v1953 = vsub.f32 2.0, %v1945
        %v1954 = vsub.f32 2.0, %v1946
        %v1955 = vsub.f32 2.0, %v1947
        %v1956 = vsub.f32 2.0, %v1948
        %v1957 = vsub.f32 2.0, %v1949
        %v1958 = vmul.f32 %v1934, %v1950
        %v1959 = vmul.f32 %v1935, %v1951
        %v1960 = vmul.f32 %v1936, %v1952
        %v1961 = vmul.f32 %v1937, %v1953
        %v1962 = vmul.f32 %v1938, %v1954
        %v1963 = vmul.f32 %v1939, %v1955
        %v1964 = vmul.f32 %v1940, %v1956
        %v1965 = vmul.f32 %v1941, %v1957
        %v1966 = vmul.f32 %v1847, %v1958
        %v1967 = vmul.f32 %v1849, %v1959
        %v1968 = vmul.f32 %v1851, %v1960
        %v1969 = vmul.f32 %v1853, %v1961
        %v1970 = vmul.f32 %v1855, %v1962
        %v1971 = vmul.f32 %v1857, %v1963
        %v1972 = vmul.f32 %v1859, %v1964
        %v1973 = vmul.f32 %v1861, %v1965
        %v1974 = vmul.f32 %v1863, %v1958
        %v1975 = vmul.f32 %v1865, %v1959
        %v1976 = vmul.f32 %v1867, %v1960
        %v1977 = vmul.f32 %v1869, %v1961
        %v1978 = vmul.f32 %v1871, %v1962
        %v1979 = vmul.f32 %v1873, %v1963
        %v1980 = vmul.f32 %v1875, %v1964
        %v1981 = vmul.f32 %v1877, %v1965
        %v1982 = vmul.f32 %v1879, %v1958
        %v1983 = vmul.f32 %v1881, %v1959
        %v1984 = vmul.f32 %v1883, %v1960
        %v1985 = vmul.f32 %v1885, %v1961
        %v1986 = vmul.f32 %v1887, %v1962
        %v1987 = vmul.f32 %v1889, %v1963
        %v1988 = vmul.f32 %v1891, %v1964
        %v1989 = vmul.f32 %v1893, %v1965
        %v1990 = vmul.f32 %v1895, %v1958
        %v1991 = vmul.f32 %v1897, %v1959
        %v1992 = vmul.f32 %v1899, %v1960
        %v1993 = vmul.f32 %v1901, %v1961
        %v1994 = vmul.f32 %v1903, %v1962
        %v1995 = vmul.f32 %v1905, %v1963
        %v1996 = vmul.f32 %v1907, %v1964
        %v1997 = vmul.f32 %v1909, %v1965
        %v1998 = vmul.f32 %v1966, %v717
        %v1999 = vmul.f32 %v1967, %v722
        %v2000 = vmul.f32 %v1968, %v727
        %v2001 = vmul.f32 %v1969, %v732
        %v2002 = vmul.f32 %v1970, %v737
        %v2003 = vmul.f32 %v1971, %v742
        %v2004 = vmul.f32 %v1972, %v747
        %v2005 = vmul.f32 %v1973, %v752
        %v2006 = vmul.f32 %v1974, %v757
        %v2007 = vmul.f32 %v1975, %v762
        %v2008 = vmul.f32 %v1976, %v767
        %v2009 = vmul.f32 %v1977, %v772
        %v2010 = vmul.f32 %v1978, %v777
        %v2011 = vmul.f32 %v1979, %v782
        %v2012 = vmul.f32 %v1980, %v787
        %v2013 = vmul.f32 %v1981, %v792
        %v2014 = vmul.f32 %v1982, %v797
        %v2015 = vmul.f32 %v1983, %v802
        %v2016 = vmul.f32 %v1984, %v807
        %v2017 = vmul.f32 %v1985, %v812
        %v2018 = vmul.f32 %v1986, %v817
        %v2019 = vmul.f32 %v1987, %v822
        %v2020 = vmul.f32 %v1988, %v827
        %v2021 = vmul.f32 %v1989, %v832
        %v2022 = vmul.f32 %v1990, %v837
        %v2023 = vmul.f32 %v1991, %v842
        %v2024 = vmul.f32 %v1992, %v847
        %v2025 = vmul.f32 %v1993, %v852
        %v2026 = vmul.f32 %v1994, %v857
        %v2027 = vmul.f32 %v1995, %v862
        %v2028 = vmul.f32 %v1996, %v867
        %v2029 = vmul.f32 %v1997, %v872
        %vm2030 = vcmask 195744
        %v2031 = vsel %vm2030, %v1998, 0.0
        %v2032 = vsel %vm2030, %v2006, 0.0
        %v2033 = vadd.f32 %v2031, %v2032
        %v2034 = vsel %vm2030, %v2014, 0.0
        %v2035 = vadd.f32 %v2033, %v2034
        %v2036 = vsel %vm2030, %v2022, 0.0
        %v2037 = vadd.f32 %v2035, %v2036
        %v2038 = vsel %vm2030, %v1999, 0.0
        %v2039 = vsel %vm2030, %v2007, 0.0
        %v2040 = vadd.f32 %v2038, %v2039
        %v2041 = vsel %vm2030, %v2015, 0.0
        %v2042 = vadd.f32 %v2040, %v2041
        %v2043 = vsel %vm2030, %v2023, 0.0
        %v2044 = vadd.f32 %v2042, %v2043
        %v2045 = vsel %vm2030, %v2000, 0.0
        %v2046 = vsel %vm2030, %v2008, 0.0
        %v2047 = vadd.f32 %v2045, %v2046
        %v2048 = vsel %vm2030, %v2016, 0.0
        %v2049 = vadd.f32 %v2047, %v2048
        %v2050 = vsel %vm2030, %v2024, 0.0
        %v2051 = vadd.f32 %v2049, %v2050
        %v2052 = vsel %vm2030, %v2001, 0.0
        %v2053 = vsel %vm2030, %v2009, 0.0
        %v2054 = vadd.f32 %v2052, %v2053
        %v2055 = vsel %vm2030, %v2017, 0.0
        %v2056 = vadd.f32 %v2054, %v2055
        %v2057 = vsel %vm2030, %v2025, 0.0
        %v2058 = vadd.f32 %v2056, %v2057
        %v2059 = vsel %vm2030, %v2002, 0.0
        %v2060 = vsel %vm2030, %v2010, 0.0
        %v2061 = vadd.f32 %v2059, %v2060
        %v2062 = vsel %vm2030, %v2018, 0.0
        %v2063 = vadd.f32 %v2061, %v2062
        %v2064 = vsel %vm2030, %v2026, 0.0
        %v2065 = vadd.f32 %v2063, %v2064
        %v2066 = vsel %vm2030, %v2003, 0.0
        %v2067 = vsel %vm2030, %v2011, 0.0
        %v2068 = vadd.f32 %v2066, %v2067
        %v2069 = vsel %vm2030, %v2019, 0.0
        %v2070 = vadd.f32 %v2068, %v2069
        %v2071 = vsel %vm2030, %v2027, 0.0
        %v2072 = vadd.f32 %v2070, %v2071
        %v2073 = vsel %vm2030, %v2004, 0.0
        %v2074 = vsel %vm2030, %v2012, 0.0
        %v2075 = vadd.f32 %v2073, %v2074
        %v2076 = vsel %vm2030, %v2020, 0.0
        %v2077 = vadd.f32 %v2075, %v2076
        %v2078 = vsel %vm2030, %v2028, 0.0
        %v2079 = vadd.f32 %v2077, %v2078
        %v2080 = vsel %vm2030, %v2005, 0.0
        %v2081 = vsel %vm2030, %v2013, 0.0
        %v2082 = vadd.f32 %v2080, %v2081
        %v2083 = vsel %vm2030, %v2021, 0.0
        %v2084 = vadd.f32 %v2082, %v2083
        %v2085 = vsel %vm2030, %v2029, 0.0
        %v2086 = vadd.f32 %v2084, %v2085
        %2095 = vrot.lane.b32.xlu0 %v2037, 112
        %v2096 = vpop.permute.xlu0 %2095
        %2097 = vrot.lane.b32.xlu0 %v2044, 112
        %v2098 = vpop.permute.xlu0 %2097
        %2099 = vrot.lane.b32.xlu0 %v2051, 112
        %v2100 = vpop.permute.xlu0 %2099
        %2101 = vrot.lane.b32.xlu0 %v2058, 112
        %v2102 = vpop.permute.xlu0 %2101
        %2103 = vrot.lane.b32.xlu0 %v2065, 112
        %v2104 = vpop.permute.xlu0 %2103
        %2105 = vrot.lane.b32.xlu0 %v2072, 112
        %v2106 = vpop.permute.xlu0 %2105
        %2107 = vrot.lane.b32.xlu0 %v2079, 112
        %v2108 = vpop.permute.xlu0 %2107
        %2109 = vrot.lane.b32.xlu0 %v2086, 112
        %v2110 = vpop.permute.xlu0 %2109
        %vm2119 = vcmask 64544
        %2120 = vst.msk [vmem:[#allocation2] sm:$0xff] %vm2119, %v2096
        %2121 = vst.msk [vmem:[#allocation2 + $0x8] sm:$0xff] %vm2119, %v2098
        %2122 = vst.msk [vmem:[#allocation2 + $0x10] sm:$0xff] %vm2119, %v2100
        %2123 = vst.msk [vmem:[#allocation2 + $0x18] sm:$0xff] %vm2119, %v2102
        %2124 = vst.msk [vmem:[#allocation2 + $0x20] sm:$0xff] %vm2119, %v2104
        %2125 = vst.msk [vmem:[#allocation2 + $0x28] sm:$0xff] %vm2119, %v2106
        %2126 = vst.msk [vmem:[#allocation2 + $0x30] sm:$0xff] %vm2119, %v2108
        %2127 = vst.msk [vmem:[#allocation2 + $0x38] sm:$0xff] %vm2119, %v2110
        %2128 = vrot.lane.b32.xlu0 %v717, 120
        %v2129 = vpop.permute.xlu0 %2128
        %2130 = vrot.lane.b32.xlu0 %v722, 120
        %v2131 = vpop.permute.xlu0 %2130
        %2132 = vrot.lane.b32.xlu0 %v727, 120
        %v2133 = vpop.permute.xlu0 %2132
        %2134 = vrot.lane.b32.xlu0 %v732, 120
        %v2135 = vpop.permute.xlu0 %2134
        %2136 = vrot.lane.b32.xlu0 %v737, 120
        %v2137 = vpop.permute.xlu0 %2136
        %2138 = vrot.lane.b32.xlu0 %v742, 120
        %v2139 = vpop.permute.xlu0 %2138
        %2140 = vrot.lane.b32.xlu0 %v747, 120
        %v2141 = vpop.permute.xlu0 %2140
        %2142 = vrot.lane.b32.xlu0 %v752, 120
        %v2143 = vpop.permute.xlu0 %2142
        %2144 = vrot.lane.b32.xlu0 %v757, 120
        %v2145 = vpop.permute.xlu0 %2144
        %2146 = vrot.lane.b32.xlu0 %v762, 120
        %v2147 = vpop.permute.xlu0 %2146
        %2148 = vrot.lane.b32.xlu0 %v767, 120
        %v2149 = vpop.permute.xlu0 %2148
        %2150 = vrot.lane.b32.xlu0 %v772, 120
        %v2151 = vpop.permute.xlu0 %2150
        %2152 = vrot.lane.b32.xlu0 %v777, 120
        %v2153 = vpop.permute.xlu0 %2152
        %2154 = vrot.lane.b32.xlu0 %v782, 120
        %v2155 = vpop.permute.xlu0 %2154
        %2156 = vrot.lane.b32.xlu0 %v787, 120
        %v2157 = vpop.permute.xlu0 %2156
        %2158 = vrot.lane.b32.xlu0 %v792, 120
        %v2159 = vpop.permute.xlu0 %2158
        %2160 = vrot.lane.b32.xlu0 %v797, 120
        %v2161 = vpop.permute.xlu0 %2160
        %2162 = vrot.lane.b32.xlu0 %v802, 120
        %v2163 = vpop.permute.xlu0 %2162
        %2164 = vrot.lane.b32.xlu0 %v807, 120
        %v2165 = vpop.permute.xlu0 %2164
        %2166 = vrot.lane.b32.xlu0 %v812, 120
        %v2167 = vpop.permute.xlu0 %2166
        %2168 = vrot.lane.b32.xlu0 %v817, 120
        %v2169 = vpop.permute.xlu0 %2168
        %2170 = vrot.lane.b32.xlu0 %v822, 120
        %v2171 = vpop.permute.xlu0 %2170
        %2172 = vrot.lane.b32.xlu0 %v827, 120
        %v2173 = vpop.permute.xlu0 %2172
        %2174 = vrot.lane.b32.xlu0 %v832, 120
        %v2175 = vpop.permute.xlu0 %2174
        %2176 = vrot.lane.b32.xlu0 %v837, 120
        %v2177 = vpop.permute.xlu0 %2176
        %2178 = vrot.lane.b32.xlu0 %v842, 120
        %v2179 = vpop.permute.xlu0 %2178
        %2180 = vrot.lane.b32.xlu0 %v847, 120
        %v2181 = vpop.permute.xlu0 %2180
        %2182 = vrot.lane.b32.xlu0 %v852, 120
        %v2183 = vpop.permute.xlu0 %2182
        %2184 = vrot.lane.b32.xlu0 %v857, 120
        %v2185 = vpop.permute.xlu0 %2184
        %2186 = vrot.lane.b32.xlu0 %v862, 120
        %v2187 = vpop.permute.xlu0 %2186
        %2188 = vrot.lane.b32.xlu0 %v867, 120
        %v2189 = vpop.permute.xlu0 %2188
        %2190 = vrot.lane.b32.xlu0 %v872, 120
        %v2191 = vpop.permute.xlu0 %2190
        %v2224 = vmul.f32 %v543, %v2129
        %v2225 = vmul.f32 %v544, %v2131
        %v2226 = vmul.f32 %v545, %v2133
        %v2227 = vmul.f32 %v546, %v2135
        %v2228 = vmul.f32 %v547, %v2137
        %v2229 = vmul.f32 %v548, %v2139
        %v2230 = vmul.f32 %v549, %v2141
        %v2231 = vmul.f32 %v550, %v2143
        %v2232 = vmul.f32 %v543, %v2145
        %v2233 = vmul.f32 %v544, %v2147
        %v2234 = vmul.f32 %v545, %v2149
        %v2235 = vmul.f32 %v546, %v2151
        %v2236 = vmul.f32 %v547, %v2153
        %v2237 = vmul.f32 %v548, %v2155
        %v2238 = vmul.f32 %v549, %v2157
        %v2239 = vmul.f32 %v550, %v2159
        %v2240 = vmul.f32 %v543, %v2161
        %v2241 = vmul.f32 %v544, %v2163
        %v2242 = vmul.f32 %v545, %v2165
        %v2243 = vmul.f32 %v546, %v2167
        %v2244 = vmul.f32 %v547, %v2169
        %v2245 = vmul.f32 %v548, %v2171
        %v2246 = vmul.f32 %v549, %v2173
        %v2247 = vmul.f32 %v550, %v2175
        %v2248 = vmul.f32 %v543, %v2177
        %v2249 = vmul.f32 %v544, %v2179
        %v2250 = vmul.f32 %v545, %v2181
        %v2251 = vmul.f32 %v546, %v2183
        %v2252 = vmul.f32 %v547, %v2185
        %v2253 = vmul.f32 %v548, %v2187
        %v2254 = vmul.f32 %v549, %v2189
        %v2255 = vmul.f32 %v550, %v2191
        %2288 = vrot.lane.b32.xlu0 %v2224, 112
        %v2289 = vpop.permute.xlu0 %2288
        %2290 = vrot.lane.b32.xlu0 %v2225, 112
        %v2291 = vpop.permute.xlu0 %2290
        %2292 = vrot.lane.b32.xlu0 %v2226, 112
        %v2293 = vpop.permute.xlu0 %2292
        %2294 = vrot.lane.b32.xlu0 %v2227, 112
        %v2295 = vpop.permute.xlu0 %2294
        %2296 = vrot.lane.b32.xlu0 %v2228, 112
        %v2297 = vpop.permute.xlu0 %2296
        %2298 = vrot.lane.b32.xlu0 %v2229, 112
        %v2299 = vpop.permute.xlu0 %2298
        %2300 = vrot.lane.b32.xlu0 %v2230, 112
        %v2301 = vpop.permute.xlu0 %2300
        %2302 = vrot.lane.b32.xlu0 %v2231, 112
        %v2303 = vpop.permute.xlu0 %2302
        %2304 = vrot.lane.b32.xlu0 %v2232, 112
        %v2305 = vpop.permute.xlu0 %2304
        %2306 = vrot.lane.b32.xlu0 %v2233, 112
        %v2307 = vpop.permute.xlu0 %2306
        %2308 = vrot.lane.b32.xlu0 %v2234, 112
        %v2309 = vpop.permute.xlu0 %2308
        %2310 = vrot.lane.b32.xlu0 %v2235, 112
        %v2311 = vpop.permute.xlu0 %2310
        %2312 = vrot.lane.b32.xlu0 %v2236, 112
        %v2313 = vpop.permute.xlu0 %2312
        %2314 = vrot.lane.b32.xlu0 %v2237, 112
        %v2315 = vpop.permute.xlu0 %2314
        %2316 = vrot.lane.b32.xlu0 %v2238, 112
        %v2317 = vpop.permute.xlu0 %2316
        %2318 = vrot.lane.b32.xlu0 %v2239, 112
        %v2319 = vpop.permute.xlu0 %2318
        %2320 = vrot.lane.b32.xlu0 %v2240, 112
        %v2321 = vpop.permute.xlu0 %2320
        %2322 = vrot.lane.b32.xlu0 %v2241, 112
        %v2323 = vpop.permute.xlu0 %2322
        %2324 = vrot.lane.b32.xlu0 %v2242, 112
        %v2325 = vpop.permute.xlu0 %2324
        %2326 = vrot.lane.b32.xlu0 %v2243, 112
        %v2327 = vpop.permute.xlu0 %2326
        %2328 = vrot.lane.b32.xlu0 %v2244, 112
        %v2329 = vpop.permute.xlu0 %2328
        %2330 = vrot.lane.b32.xlu0 %v2245, 112
        %v2331 = vpop.permute.xlu0 %2330
        %2332 = vrot.lane.b32.xlu0 %v2246, 112
        %v2333 = vpop.permute.xlu0 %2332
        %2334 = vrot.lane.b32.xlu0 %v2247, 112
        %v2335 = vpop.permute.xlu0 %2334
        %2336 = vrot.lane.b32.xlu0 %v2248, 112
        %v2337 = vpop.permute.xlu0 %2336
        %2338 = vrot.lane.b32.xlu0 %v2249, 112
        %v2339 = vpop.permute.xlu0 %2338
        %2340 = vrot.lane.b32.xlu0 %v2250, 112
        %v2341 = vpop.permute.xlu0 %2340
        %2342 = vrot.lane.b32.xlu0 %v2251, 112
        %v2343 = vpop.permute.xlu0 %2342
        %2344 = vrot.lane.b32.xlu0 %v2252, 112
        %v2345 = vpop.permute.xlu0 %2344
        %2346 = vrot.lane.b32.xlu0 %v2253, 112
        %v2347 = vpop.permute.xlu0 %2346
        %2348 = vrot.lane.b32.xlu0 %v2254, 112
        %v2349 = vpop.permute.xlu0 %2348
        %2350 = vrot.lane.b32.xlu0 %v2255, 112
        %v2351 = vpop.permute.xlu0 %2350
        %v2384 = vsel %vm907, %v2289, 0.0
        %2385 = vadd.xlane.f32.xlu0 %v2384
        %v2386 = vpop.xlane.xlu0 %2385
        %v2387 = vsel %vm907, %v2291, 0.0
        %2388 = vadd.xlane.f32.xlu0 %v2387
        %v2389 = vpop.xlane.xlu0 %2388
        %v2390 = vsel %vm907, %v2293, 0.0
        %2391 = vadd.xlane.f32.xlu0 %v2390
        %v2392 = vpop.xlane.xlu0 %2391
        %v2393 = vsel %vm907, %v2295, 0.0
        %2394 = vadd.xlane.f32.xlu0 %v2393
        %v2395 = vpop.xlane.xlu0 %2394
        %v2396 = vsel %vm907, %v2297, 0.0
        %2397 = vadd.xlane.f32.xlu0 %v2396
        %v2398 = vpop.xlane.xlu0 %2397
        %v2399 = vsel %vm907, %v2299, 0.0
        %2400 = vadd.xlane.f32.xlu0 %v2399
        %v2401 = vpop.xlane.xlu0 %2400
        %v2402 = vsel %vm907, %v2301, 0.0
        %2403 = vadd.xlane.f32.xlu0 %v2402
        %v2404 = vpop.xlane.xlu0 %2403
        %v2405 = vsel %vm907, %v2303, 0.0
        %2406 = vadd.xlane.f32.xlu0 %v2405
        %v2407 = vpop.xlane.xlu0 %2406
        %v2408 = vsel %vm907, %v2305, 0.0
        %2409 = vadd.xlane.f32.xlu0 %v2408
        %v2410 = vpop.xlane.xlu0 %2409
        %v2411 = vsel %vm907, %v2307, 0.0
        %2412 = vadd.xlane.f32.xlu0 %v2411
        %v2413 = vpop.xlane.xlu0 %2412
        %v2414 = vsel %vm907, %v2309, 0.0
        %2415 = vadd.xlane.f32.xlu0 %v2414
        %v2416 = vpop.xlane.xlu0 %2415
        %v2417 = vsel %vm907, %v2311, 0.0
        %2418 = vadd.xlane.f32.xlu0 %v2417
        %v2419 = vpop.xlane.xlu0 %2418
        %v2420 = vsel %vm907, %v2313, 0.0
        %2421 = vadd.xlane.f32.xlu0 %v2420
        %v2422 = vpop.xlane.xlu0 %2421
        %v2423 = vsel %vm907, %v2315, 0.0
        %2424 = vadd.xlane.f32.xlu0 %v2423
        %v2425 = vpop.xlane.xlu0 %2424
        %v2426 = vsel %vm907, %v2317, 0.0
        %2427 = vadd.xlane.f32.xlu0 %v2426
        %v2428 = vpop.xlane.xlu0 %2427
        %v2429 = vsel %vm907, %v2319, 0.0
        %2430 = vadd.xlane.f32.xlu0 %v2429
        %v2431 = vpop.xlane.xlu0 %2430
        %v2432 = vsel %vm907, %v2321, 0.0
        %2433 = vadd.xlane.f32.xlu0 %v2432
        %v2434 = vpop.xlane.xlu0 %2433
        %v2435 = vsel %vm907, %v2323, 0.0
        %2436 = vadd.xlane.f32.xlu0 %v2435
        %v2437 = vpop.xlane.xlu0 %2436
        %v2438 = vsel %vm907, %v2325, 0.0
        %2439 = vadd.xlane.f32.xlu0 %v2438
        %v2440 = vpop.xlane.xlu0 %2439
        %v2441 = vsel %vm907, %v2327, 0.0
        %2442 = vadd.xlane.f32.xlu0 %v2441
        %v2443 = vpop.xlane.xlu0 %2442
        %v2444 = vsel %vm907, %v2329, 0.0
        %2445 = vadd.xlane.f32.xlu0 %v2444
        %v2446 = vpop.xlane.xlu0 %2445
        %v2447 = vsel %vm907, %v2331, 0.0
        %2448 = vadd.xlane.f32.xlu0 %v2447
        %v2449 = vpop.xlane.xlu0 %2448
        %v2450 = vsel %vm907, %v2333, 0.0
        %2451 = vadd.xlane.f32.xlu0 %v2450
        %v2452 = vpop.xlane.xlu0 %2451
        %v2453 = vsel %vm907, %v2335, 0.0
        %2454 = vadd.xlane.f32.xlu0 %v2453
        %v2455 = vpop.xlane.xlu0 %2454
        %v2456 = vsel %vm907, %v2337, 0.0
        %2457 = vadd.xlane.f32.xlu0 %v2456
        %v2458 = vpop.xlane.xlu0 %2457
        %v2459 = vsel %vm907, %v2339, 0.0
        %2460 = vadd.xlane.f32.xlu0 %v2459
        %v2461 = vpop.xlane.xlu0 %2460
        %v2462 = vsel %vm907, %v2341, 0.0
        %2463 = vadd.xlane.f32.xlu0 %v2462
        %v2464 = vpop.xlane.xlu0 %2463
        %v2465 = vsel %vm907, %v2343, 0.0
        %2466 = vadd.xlane.f32.xlu0 %v2465
        %v2467 = vpop.xlane.xlu0 %2466
        %v2468 = vsel %vm907, %v2345, 0.0
        %2469 = vadd.xlane.f32.xlu0 %v2468
        %v2470 = vpop.xlane.xlu0 %2469
        %v2471 = vsel %vm907, %v2347, 0.0
        %2472 = vadd.xlane.f32.xlu0 %v2471
        %v2473 = vpop.xlane.xlu0 %2472
        %v2474 = vsel %vm907, %v2349, 0.0
        %2475 = vadd.xlane.f32.xlu0 %v2474
        %v2476 = vpop.xlane.xlu0 %2475
        %v2477 = vsel %vm907, %v2351, 0.0
        %2478 = vadd.xlane.f32.xlu0 %v2477
        %v2479 = vpop.xlane.xlu0 %2478
        %v2480 = vadd.f32 %v2386, %v353
        %v2481 = vadd.f32 %v2389, %v353
        %v2482 = vadd.f32 %v2392, %v353
        %v2483 = vadd.f32 %v2395, %v353
        %v2484 = vadd.f32 %v2398, %v353
        %v2485 = vadd.f32 %v2401, %v353
        %v2486 = vadd.f32 %v2404, %v353
        %v2487 = vadd.f32 %v2407, %v353
        %v2488 = vadd.f32 %v2410, %v358
        %v2489 = vadd.f32 %v2413, %v358
        %v2490 = vadd.f32 %v2416, %v358
        %v2491 = vadd.f32 %v2419, %v358
        %v2492 = vadd.f32 %v2422, %v358
        %v2493 = vadd.f32 %v2425, %v358
        %v2494 = vadd.f32 %v2428, %v358
        %v2495 = vadd.f32 %v2431, %v358
        %v2496 = vadd.f32 %v2434, %v363
        %v2497 = vadd.f32 %v2437, %v363
        %v2498 = vadd.f32 %v2440, %v363
        %v2499 = vadd.f32 %v2443, %v363
        %v2500 = vadd.f32 %v2446, %v363
        %v2501 = vadd.f32 %v2449, %v363
        %v2502 = vadd.f32 %v2452, %v363
        %v2503 = vadd.f32 %v2455, %v363
        %v2504 = vadd.f32 %v2458, %v368
        %v2505 = vadd.f32 %v2461, %v368
        %v2506 = vadd.f32 %v2464, %v368
        %v2507 = vadd.f32 %v2467, %v368
        %v2508 = vadd.f32 %v2470, %v368
        %v2509 = vadd.f32 %v2473, %v368
        %v2510 = vadd.f32 %v2476, %v368
        %v2511 = vadd.f32 %v2479, %v368
        %v2512 = vmax.f32 %v2480, %v2488
        %v2513 = vmax.f32 %v2512, %v2496
        %v2514 = vmax.f32 %v2513, %v2504
        %v2515 = vmax.f32 %v2481, %v2489
        %v2516 = vmax.f32 %v2515, %v2497
        %v2517 = vmax.f32 %v2516, %v2505
        %v2518 = vmax.f32 %v2482, %v2490
        %v2519 = vmax.f32 %v2518, %v2498
        %v2520 = vmax.f32 %v2519, %v2506
        %v2521 = vmax.f32 %v2483, %v2491
        %v2522 = vmax.f32 %v2521, %v2499
        %v2523 = vmax.f32 %v2522, %v2507
        %v2524 = vmax.f32 %v2484, %v2492
        %v2525 = vmax.f32 %v2524, %v2500
        %v2526 = vmax.f32 %v2525, %v2508
        %v2527 = vmax.f32 %v2485, %v2493
        %v2528 = vmax.f32 %v2527, %v2501
        %v2529 = vmax.f32 %v2528, %v2509
        %v2530 = vmax.f32 %v2486, %v2494
        %v2531 = vmax.f32 %v2530, %v2502
        %v2532 = vmax.f32 %v2531, %v2510
        %v2533 = vmax.f32 %v2487, %v2495
        %v2534 = vmax.f32 %v2533, %v2503
        %v2535 = vmax.f32 %v2534, %v2511
        %v2536 = vsub.f32 %v2480, %v2514
        %v2537 = vsub.f32 %v2481, %v2517
        %v2538 = vsub.f32 %v2482, %v2520
        %v2539 = vsub.f32 %v2483, %v2523
        %v2540 = vsub.f32 %v2484, %v2526
        %v2541 = vsub.f32 %v2485, %v2529
        %v2542 = vsub.f32 %v2486, %v2532
        %v2543 = vsub.f32 %v2487, %v2535
        %v2544 = vsub.f32 %v2488, %v2514
        %v2545 = vsub.f32 %v2489, %v2517
        %v2546 = vsub.f32 %v2490, %v2520
        %v2547 = vsub.f32 %v2491, %v2523
        %v2548 = vsub.f32 %v2492, %v2526
        %v2549 = vsub.f32 %v2493, %v2529
        %v2550 = vsub.f32 %v2494, %v2532
        %v2551 = vsub.f32 %v2495, %v2535
        %v2552 = vsub.f32 %v2496, %v2514
        %v2553 = vsub.f32 %v2497, %v2517
        %v2554 = vsub.f32 %v2498, %v2520
        %v2555 = vsub.f32 %v2499, %v2523
        %v2556 = vsub.f32 %v2500, %v2526
        %v2557 = vsub.f32 %v2501, %v2529
        %v2558 = vsub.f32 %v2502, %v2532
        %v2559 = vsub.f32 %v2503, %v2535
        %v2560 = vsub.f32 %v2504, %v2514
        %v2561 = vsub.f32 %v2505, %v2517
        %v2562 = vsub.f32 %v2506, %v2520
        %v2563 = vsub.f32 %v2507, %v2523
        %v2564 = vsub.f32 %v2508, %v2526
        %v2565 = vsub.f32 %v2509, %v2529
        %v2566 = vsub.f32 %v2510, %v2532
        %v2567 = vsub.f32 %v2511, %v2535
        %v2568 = vmul.f32 %v2536, 1.442695
        %v2569 = vpow.pop %v2568
        %v2570 = vmul.f32 %v2537, 1.442695
        %v2571 = vpow.pop %v2570
        %v2572 = vmul.f32 %v2538, 1.442695
        %v2573 = vpow.pop %v2572
        %v2574 = vmul.f32 %v2539, 1.442695
        %v2575 = vpow.pop %v2574
        %v2576 = vmul.f32 %v2540, 1.442695
        %v2577 = vpow.pop %v2576
        %v2578 = vmul.f32 %v2541, 1.442695
        %v2579 = vpow.pop %v2578
        %v2580 = vmul.f32 %v2542, 1.442695
        %v2581 = vpow.pop %v2580
        %v2582 = vmul.f32 %v2543, 1.442695
        %v2583 = vpow.pop %v2582
        %v2584 = vmul.f32 %v2544, 1.442695
        %v2585 = vpow.pop %v2584
        %v2586 = vmul.f32 %v2545, 1.442695
        %v2587 = vpow.pop %v2586
        %v2588 = vmul.f32 %v2546, 1.442695
        %v2589 = vpow.pop %v2588
        %v2590 = vmul.f32 %v2547, 1.442695
        %v2591 = vpow.pop %v2590
        %v2592 = vmul.f32 %v2548, 1.442695
        %v2593 = vpow.pop %v2592
        %v2594 = vmul.f32 %v2549, 1.442695
        %v2595 = vpow.pop %v2594
        %v2596 = vmul.f32 %v2550, 1.442695
        %v2597 = vpow.pop %v2596
        %v2598 = vmul.f32 %v2551, 1.442695
        %v2599 = vpow.pop %v2598
        %v2600 = vmul.f32 %v2552, 1.442695
        %v2601 = vpow.pop %v2600
        %v2602 = vmul.f32 %v2553, 1.442695
        %v2603 = vpow.pop %v2602
        %v2604 = vmul.f32 %v2554, 1.442695
        %v2605 = vpow.pop %v2604
        %v2606 = vmul.f32 %v2555, 1.442695
        %v2607 = vpow.pop %v2606
        %v2608 = vmul.f32 %v2556, 1.442695
        %v2609 = vpow.pop %v2608
        %v2610 = vmul.f32 %v2557, 1.442695
        %v2611 = vpow.pop %v2610
        %v2612 = vmul.f32 %v2558, 1.442695
        %v2613 = vpow.pop %v2612
        %v2614 = vmul.f32 %v2559, 1.442695
        %v2615 = vpow.pop %v2614
        %v2616 = vmul.f32 %v2560, 1.442695
        %v2617 = vpow.pop %v2616
        %v2618 = vmul.f32 %v2561, 1.442695
        %v2619 = vpow.pop %v2618
        %v2620 = vmul.f32 %v2562, 1.442695
        %v2621 = vpow.pop %v2620
        %v2622 = vmul.f32 %v2563, 1.442695
        %v2623 = vpow.pop %v2622
        %v2624 = vmul.f32 %v2564, 1.442695
        %v2625 = vpow.pop %v2624
        %v2626 = vmul.f32 %v2565, 1.442695
        %v2627 = vpow.pop %v2626
        %v2628 = vmul.f32 %v2566, 1.442695
        %v2629 = vpow.pop %v2628
        %v2630 = vmul.f32 %v2567, 1.442695
        %v2631 = vpow.pop %v2630
        %v2632 = vadd.f32 %v2569, %v2585
        %v2633 = vadd.f32 %v2632, %v2601
        %v2634 = vadd.f32 %v2633, %v2617
        %v2635 = vadd.f32 %v2571, %v2587
        %v2636 = vadd.f32 %v2635, %v2603
        %v2637 = vadd.f32 %v2636, %v2619
        %v2638 = vadd.f32 %v2573, %v2589
        %v2639 = vadd.f32 %v2638, %v2605
        %v2640 = vadd.f32 %v2639, %v2621
        %v2641 = vadd.f32 %v2575, %v2591
        %v2642 = vadd.f32 %v2641, %v2607
        %v2643 = vadd.f32 %v2642, %v2623
        %v2644 = vadd.f32 %v2577, %v2593
        %v2645 = vadd.f32 %v2644, %v2609
        %v2646 = vadd.f32 %v2645, %v2625
        %v2647 = vadd.f32 %v2579, %v2595
        %v2648 = vadd.f32 %v2647, %v2611
        %v2649 = vadd.f32 %v2648, %v2627
        %v2650 = vadd.f32 %v2581, %v2597
        %v2651 = vadd.f32 %v2650, %v2613
        %v2652 = vadd.f32 %v2651, %v2629
        %v2653 = vadd.f32 %v2583, %v2599
        %v2654 = vadd.f32 %v2653, %v2615
        %v2655 = vadd.f32 %v2654, %v2631
        %v2656 = vrcp.pop %v2634
        %v2657 = vrcp.pop %v2637
        %v2658 = vrcp.pop %v2640
        %v2659 = vrcp.pop %v2643
        %v2660 = vrcp.pop %v2646
        %v2661 = vrcp.pop %v2649
        %v2662 = vrcp.pop %v2652
        %v2663 = vrcp.pop %v2655
        %v2664 = vmul.f32 %v2634, %v2656
        %v2665 = vmul.f32 %v2637, %v2657
        %v2666 = vmul.f32 %v2640, %v2658
        %v2667 = vmul.f32 %v2643, %v2659
        %v2668 = vmul.f32 %v2646, %v2660
        %v2669 = vmul.f32 %v2649, %v2661
        %v2670 = vmul.f32 %v2652, %v2662
        %v2671 = vmul.f32 %v2655, %v2663
        %v2672 = vsub.f32 2.0, %v2664
        %v2673 = vsub.f32 2.0, %v2665
        %v2674 = vsub.f32 2.0, %v2666
        %v2675 = vsub.f32 2.0, %v2667
        %v2676 = vsub.f32 2.0, %v2668
        %v2677 = vsub.f32 2.0, %v2669
        %v2678 = vsub.f32 2.0, %v2670
        %v2679 = vsub.f32 2.0, %v2671
        %v2680 = vmul.f32 %v2656, %v2672
        %v2681 = vmul.f32 %v2657, %v2673
        %v2682 = vmul.f32 %v2658, %v2674
        %v2683 = vmul.f32 %v2659, %v2675
        %v2684 = vmul.f32 %v2660, %v2676
        %v2685 = vmul.f32 %v2661, %v2677
        %v2686 = vmul.f32 %v2662, %v2678
        %v2687 = vmul.f32 %v2663, %v2679
        %v2688 = vmul.f32 %v2569, %v2680
        %v2689 = vmul.f32 %v2571, %v2681
        %v2690 = vmul.f32 %v2573, %v2682
        %v2691 = vmul.f32 %v2575, %v2683
        %v2692 = vmul.f32 %v2577, %v2684
        %v2693 = vmul.f32 %v2579, %v2685
        %v2694 = vmul.f32 %v2581, %v2686
        %v2695 = vmul.f32 %v2583, %v2687
        %v2696 = vmul.f32 %v2585, %v2680
        %v2697 = vmul.f32 %v2587, %v2681
        %v2698 = vmul.f32 %v2589, %v2682
        %v2699 = vmul.f32 %v2591, %v2683
        %v2700 = vmul.f32 %v2593, %v2684
        %v2701 = vmul.f32 %v2595, %v2685
        %v2702 = vmul.f32 %v2597, %v2686
        %v2703 = vmul.f32 %v2599, %v2687
        %v2704 = vmul.f32 %v2601, %v2680
        %v2705 = vmul.f32 %v2603, %v2681
        %v2706 = vmul.f32 %v2605, %v2682
        %v2707 = vmul.f32 %v2607, %v2683
        %v2708 = vmul.f32 %v2609, %v2684
        %v2709 = vmul.f32 %v2611, %v2685
        %v2710 = vmul.f32 %v2613, %v2686
        %v2711 = vmul.f32 %v2615, %v2687
        %v2712 = vmul.f32 %v2617, %v2680
        %v2713 = vmul.f32 %v2619, %v2681
        %v2714 = vmul.f32 %v2621, %v2682
        %v2715 = vmul.f32 %v2623, %v2683
        %v2716 = vmul.f32 %v2625, %v2684
        %v2717 = vmul.f32 %v2627, %v2685
        %v2718 = vmul.f32 %v2629, %v2686
        %v2719 = vmul.f32 %v2631, %v2687
        %v2720 = vmul.f32 %v2688, %v717
        %v2721 = vmul.f32 %v2689, %v722
        %v2722 = vmul.f32 %v2690, %v727
        %v2723 = vmul.f32 %v2691, %v732
        %v2724 = vmul.f32 %v2692, %v737
        %v2725 = vmul.f32 %v2693, %v742
        %v2726 = vmul.f32 %v2694, %v747
        %v2727 = vmul.f32 %v2695, %v752
        %v2728 = vmul.f32 %v2696, %v757
        %v2729 = vmul.f32 %v2697, %v762
        %v2730 = vmul.f32 %v2698, %v767
        %v2731 = vmul.f32 %v2699, %v772
        %v2732 = vmul.f32 %v2700, %v777
        %v2733 = vmul.f32 %v2701, %v782
        %v2734 = vmul.f32 %v2702, %v787
        %v2735 = vmul.f32 %v2703, %v792
        %v2736 = vmul.f32 %v2704, %v797
        %v2737 = vmul.f32 %v2705, %v802
        %v2738 = vmul.f32 %v2706, %v807
        %v2739 = vmul.f32 %v2707, %v812
        %v2740 = vmul.f32 %v2708, %v817
        %v2741 = vmul.f32 %v2709, %v822
        %v2742 = vmul.f32 %v2710, %v827
        %v2743 = vmul.f32 %v2711, %v832
        %v2744 = vmul.f32 %v2712, %v837
        %v2745 = vmul.f32 %v2713, %v842
        %v2746 = vmul.f32 %v2714, %v847
        %v2747 = vmul.f32 %v2715, %v852
        %v2748 = vmul.f32 %v2716, %v857
        %v2749 = vmul.f32 %v2717, %v862
        %v2750 = vmul.f32 %v2718, %v867
        %v2751 = vmul.f32 %v2719, %v872
        %vm2752 = vcmask 294144
        %v2753 = vsel %vm2752, %v2720, 0.0
        %v2754 = vsel %vm2752, %v2728, 0.0
        %v2755 = vadd.f32 %v2753, %v2754
        %v2756 = vsel %vm2752, %v2736, 0.0
        %v2757 = vadd.f32 %v2755, %v2756
        %v2758 = vsel %vm2752, %v2744, 0.0
        %v2759 = vadd.f32 %v2757, %v2758
        %v2760 = vsel %vm2752, %v2721, 0.0
        %v2761 = vsel %vm2752, %v2729, 0.0
        %v2762 = vadd.f32 %v2760, %v2761
        %v2763 = vsel %vm2752, %v2737, 0.0
        %v2764 = vadd.f32 %v2762, %v2763
        %v2765 = vsel %vm2752, %v2745, 0.0
        %v2766 = vadd.f32 %v2764, %v2765
        %v2767 = vsel %vm2752, %v2722, 0.0
        %v2768 = vsel %vm2752, %v2730, 0.0
        %v2769 = vadd.f32 %v2767, %v2768
        %v2770 = vsel %vm2752, %v2738, 0.0
        %v2771 = vadd.f32 %v2769, %v2770
        %v2772 = vsel %vm2752, %v2746, 0.0
        %v2773 = vadd.f32 %v2771, %v2772
        %v2774 = vsel %vm2752, %v2723, 0.0
        %v2775 = vsel %vm2752, %v2731, 0.0
        %v2776 = vadd.f32 %v2774, %v2775
        %v2777 = vsel %vm2752, %v2739, 0.0
        %v2778 = vadd.f32 %v2776, %v2777
        %v2779 = vsel %vm2752, %v2747, 0.0
        %v2780 = vadd.f32 %v2778, %v2779
        %v2781 = vsel %vm2752, %v2724, 0.0
        %v2782 = vsel %vm2752, %v2732, 0.0
        %v2783 = vadd.f32 %v2781, %v2782
        %v2784 = vsel %vm2752, %v2740, 0.0
        %v2785 = vadd.f32 %v2783, %v2784
        %v2786 = vsel %vm2752, %v2748, 0.0
        %v2787 = vadd.f32 %v2785, %v2786
        %v2788 = vsel %vm2752, %v2725, 0.0
        %v2789 = vsel %vm2752, %v2733, 0.0
        %v2790 = vadd.f32 %v2788, %v2789
        %v2791 = vsel %vm2752, %v2741, 0.0
        %v2792 = vadd.f32 %v2790, %v2791
        %v2793 = vsel %vm2752, %v2749, 0.0
        %v2794 = vadd.f32 %v2792, %v2793
        %v2795 = vsel %vm2752, %v2726, 0.0
        %v2796 = vsel %vm2752, %v2734, 0.0
        %v2797 = vadd.f32 %v2795, %v2796
        %v2798 = vsel %vm2752, %v2742, 0.0
        %v2799 = vadd.f32 %v2797, %v2798
        %v2800 = vsel %vm2752, %v2750, 0.0
        %v2801 = vadd.f32 %v2799, %v2800
        %v2802 = vsel %vm2752, %v2727, 0.0
        %v2803 = vsel %vm2752, %v2735, 0.0
        %v2804 = vadd.f32 %v2802, %v2803
        %v2805 = vsel %vm2752, %v2743, 0.0
        %v2806 = vadd.f32 %v2804, %v2805
        %v2807 = vsel %vm2752, %v2751, 0.0
        %v2808 = vadd.f32 %v2806, %v2807
        %2817 = vrot.lane.b32.xlu0 %v2759, 104
        %v2818 = vpop.permute.xlu0 %2817
        %2819 = vrot.lane.b32.xlu0 %v2766, 104
        %v2820 = vpop.permute.xlu0 %2819
        %2821 = vrot.lane.b32.xlu0 %v2773, 104
        %v2822 = vpop.permute.xlu0 %2821
        %2823 = vrot.lane.b32.xlu0 %v2780, 104
        %v2824 = vpop.permute.xlu0 %2823
        %2825 = vrot.lane.b32.xlu0 %v2787, 104
        %v2826 = vpop.permute.xlu0 %2825
        %2827 = vrot.lane.b32.xlu0 %v2794, 104
        %v2828 = vpop.permute.xlu0 %2827
        %2829 = vrot.lane.b32.xlu0 %v2801, 104
        %v2830 = vpop.permute.xlu0 %2829
        %2831 = vrot.lane.b32.xlu0 %v2808, 104
        %v2832 = vpop.permute.xlu0 %2831
        %2841 = vst.msk [vmem:[#allocation2] sm:$0xff] %vm1276, %v2818
        %2842 = vst.msk [vmem:[#allocation2 + $0x8] sm:$0xff] %vm1276, %v2820
        %2843 = vst.msk [vmem:[#allocation2 + $0x10] sm:$0xff] %vm1276, %v2822
        %2844 = vst.msk [vmem:[#allocation2 + $0x18] sm:$0xff] %vm1276, %v2824
        %2845 = vst.msk [vmem:[#allocation2 + $0x20] sm:$0xff] %vm1276, %v2826
        %2846 = vst.msk [vmem:[#allocation2 + $0x28] sm:$0xff] %vm1276, %v2828
        %2847 = vst.msk [vmem:[#allocation2 + $0x30] sm:$0xff] %vm1276, %v2830
        %2848 = vst.msk [vmem:[#allocation2 + $0x38] sm:$0xff] %vm1276, %v2832
        %2849 = vrot.lane.b32.xlu0 %v717, 116
        %v2850 = vpop.permute.xlu0 %2849
        %2851 = vrot.lane.b32.xlu0 %v722, 116
        %v2852 = vpop.permute.xlu0 %2851
        %2853 = vrot.lane.b32.xlu0 %v727, 116
        %v2854 = vpop.permute.xlu0 %2853
        %2855 = vrot.lane.b32.xlu0 %v732, 116
        %v2856 = vpop.permute.xlu0 %2855
        %2857 = vrot.lane.b32.xlu0 %v737, 116
        %v2858 = vpop.permute.xlu0 %2857
        %2859 = vrot.lane.b32.xlu0 %v742, 116
        %v2860 = vpop.permute.xlu0 %2859
        %2861 = vrot.lane.b32.xlu0 %v747, 116
        %v2862 = vpop.permute.xlu0 %2861
        %2863 = vrot.lane.b32.xlu0 %v752, 116
        %v2864 = vpop.permute.xlu0 %2863
        %2865 = vrot.lane.b32.xlu0 %v757, 116
        %v2866 = vpop.permute.xlu0 %2865
        %2867 = vrot.lane.b32.xlu0 %v762, 116
        %v2868 = vpop.permute.xlu0 %2867
        %2869 = vrot.lane.b32.xlu0 %v767, 116
        %v2870 = vpop.permute.xlu0 %2869
        %2871 = vrot.lane.b32.xlu0 %v772, 116
        %v2872 = vpop.permute.xlu0 %2871
        %2873 = vrot.lane.b32.xlu0 %v777, 116
        %v2874 = vpop.permute.xlu0 %2873
        %2875 = vrot.lane.b32.xlu0 %v782, 116
        %v2876 = vpop.permute.xlu0 %2875
        %2877 = vrot.lane.b32.xlu0 %v787, 116
        %v2878 = vpop.permute.xlu0 %2877
        %2879 = vrot.lane.b32.xlu0 %v792, 116
        %v2880 = vpop.permute.xlu0 %2879
        %2881 = vrot.lane.b32.xlu0 %v797, 116
        %v2882 = vpop.permute.xlu0 %2881
        %2883 = vrot.lane.b32.xlu0 %v802, 116
        %v2884 = vpop.permute.xlu0 %2883
        %2885 = vrot.lane.b32.xlu0 %v807, 116
        %v2886 = vpop.permute.xlu0 %2885
        %2887 = vrot.lane.b32.xlu0 %v812, 116
        %v2888 = vpop.permute.xlu0 %2887
        %2889 = vrot.lane.b32.xlu0 %v817, 116
        %v2890 = vpop.permute.xlu0 %2889
        %2891 = vrot.lane.b32.xlu0 %v822, 116
        %v2892 = vpop.permute.xlu0 %2891
        %2893 = vrot.lane.b32.xlu0 %v827, 116
        %v2894 = vpop.permute.xlu0 %2893
        %2895 = vrot.lane.b32.xlu0 %v832, 116
        %v2896 = vpop.permute.xlu0 %2895
        %2897 = vrot.lane.b32.xlu0 %v837, 116
        %v2898 = vpop.permute.xlu0 %2897
        %2899 = vrot.lane.b32.xlu0 %v842, 116
        %v2900 = vpop.permute.xlu0 %2899
        %2901 = vrot.lane.b32.xlu0 %v847, 116
        %v2902 = vpop.permute.xlu0 %2901
        %2903 = vrot.lane.b32.xlu0 %v852, 116
        %v2904 = vpop.permute.xlu0 %2903
        %2905 = vrot.lane.b32.xlu0 %v857, 116
        %v2906 = vpop.permute.xlu0 %2905
        %2907 = vrot.lane.b32.xlu0 %v862, 116
        %v2908 = vpop.permute.xlu0 %2907
        %2909 = vrot.lane.b32.xlu0 %v867, 116
        %v2910 = vpop.permute.xlu0 %2909
        %2911 = vrot.lane.b32.xlu0 %v872, 116
        %v2912 = vpop.permute.xlu0 %2911
        %v2945 = vmul.f32 %v543, %v2850
        %v2946 = vmul.f32 %v544, %v2852
        %v2947 = vmul.f32 %v545, %v2854
        %v2948 = vmul.f32 %v546, %v2856
        %v2949 = vmul.f32 %v547, %v2858
        %v2950 = vmul.f32 %v548, %v2860
        %v2951 = vmul.f32 %v549, %v2862
        %v2952 = vmul.f32 %v550, %v2864
        %v2953 = vmul.f32 %v543, %v2866
        %v2954 = vmul.f32 %v544, %v2868
        %v2955 = vmul.f32 %v545, %v2870
        %v2956 = vmul.f32 %v546, %v2872
        %v2957 = vmul.f32 %v547, %v2874
        %v2958 = vmul.f32 %v548, %v2876
        %v2959 = vmul.f32 %v549, %v2878
        %v2960 = vmul.f32 %v550, %v2880
        %v2961 = vmul.f32 %v543, %v2882
        %v2962 = vmul.f32 %v544, %v2884
        %v2963 = vmul.f32 %v545, %v2886
        %v2964 = vmul.f32 %v546, %v2888
        %v2965 = vmul.f32 %v547, %v2890
        %v2966 = vmul.f32 %v548, %v2892
        %v2967 = vmul.f32 %v549, %v2894
        %v2968 = vmul.f32 %v550, %v2896
        %v2969 = vmul.f32 %v543, %v2898
        %v2970 = vmul.f32 %v544, %v2900
        %v2971 = vmul.f32 %v545, %v2902
        %v2972 = vmul.f32 %v546, %v2904
        %v2973 = vmul.f32 %v547, %v2906
        %v2974 = vmul.f32 %v548, %v2908
        %v2975 = vmul.f32 %v549, %v2910
        %v2976 = vmul.f32 %v550, %v2912
        %3009 = vrot.lane.b32.xlu0 %v2945, 104
        %v3010 = vpop.permute.xlu0 %3009
        %3011 = vrot.lane.b32.xlu0 %v2946, 104
        %v3012 = vpop.permute.xlu0 %3011
        %3013 = vrot.lane.b32.xlu0 %v2947, 104
        %v3014 = vpop.permute.xlu0 %3013
        %3015 = vrot.lane.b32.xlu0 %v2948, 104
        %v3016 = vpop.permute.xlu0 %3015
        %3017 = vrot.lane.b32.xlu0 %v2949, 104
        %v3018 = vpop.permute.xlu0 %3017
        %3019 = vrot.lane.b32.xlu0 %v2950, 104
        %v3020 = vpop.permute.xlu0 %3019
        %3021 = vrot.lane.b32.xlu0 %v2951, 104
        %v3022 = vpop.permute.xlu0 %3021
        %3023 = vrot.lane.b32.xlu0 %v2952, 104
        %v3024 = vpop.permute.xlu0 %3023
        %3025 = vrot.lane.b32.xlu0 %v2953, 104
        %v3026 = vpop.permute.xlu0 %3025
        %3027 = vrot.lane.b32.xlu0 %v2954, 104
        %v3028 = vpop.permute.xlu0 %3027
        %3029 = vrot.lane.b32.xlu0 %v2955, 104
        %v3030 = vpop.permute.xlu0 %3029
        %3031 = vrot.lane.b32.xlu0 %v2956, 104
        %v3032 = vpop.permute.xlu0 %3031
        %3033 = vrot.lane.b32.xlu0 %v2957, 104
        %v3034 = vpop.permute.xlu0 %3033
        %3035 = vrot.lane.b32.xlu0 %v2958, 104
        %v3036 = vpop.permute.xlu0 %3035
        %3037 = vrot.lane.b32.xlu0 %v2959, 104
        %v3038 = vpop.permute.xlu0 %3037
        %3039 = vrot.lane.b32.xlu0 %v2960, 104
        %v3040 = vpop.permute.xlu0 %3039
        %3041 = vrot.lane.b32.xlu0 %v2961, 104
        %v3042 = vpop.permute.xlu0 %3041
        %3043 = vrot.lane.b32.xlu0 %v2962, 104
        %v3044 = vpop.permute.xlu0 %3043
        %3045 = vrot.lane.b32.xlu0 %v2963, 104
        %v3046 = vpop.permute.xlu0 %3045
        %3047 = vrot.lane.b32.xlu0 %v2964, 104
        %v3048 = vpop.permute.xlu0 %3047
        %3049 = vrot.lane.b32.xlu0 %v2965, 104
        %v3050 = vpop.permute.xlu0 %3049
        %3051 = vrot.lane.b32.xlu0 %v2966, 104
        %v3052 = vpop.permute.xlu0 %3051
        %3053 = vrot.lane.b32.xlu0 %v2967, 104
        %v3054 = vpop.permute.xlu0 %3053
        %3055 = vrot.lane.b32.xlu0 %v2968, 104
        %v3056 = vpop.permute.xlu0 %3055
        %3057 = vrot.lane.b32.xlu0 %v2969, 104
        %v3058 = vpop.permute.xlu0 %3057
        %3059 = vrot.lane.b32.xlu0 %v2970, 104
        %v3060 = vpop.permute.xlu0 %3059
        %3061 = vrot.lane.b32.xlu0 %v2971, 104
        %v3062 = vpop.permute.xlu0 %3061
        %3063 = vrot.lane.b32.xlu0 %v2972, 104
        %v3064 = vpop.permute.xlu0 %3063
        %3065 = vrot.lane.b32.xlu0 %v2973, 104
        %v3066 = vpop.permute.xlu0 %3065
        %3067 = vrot.lane.b32.xlu0 %v2974, 104
        %v3068 = vpop.permute.xlu0 %3067
        %3069 = vrot.lane.b32.xlu0 %v2975, 104
        %v3070 = vpop.permute.xlu0 %3069
        %3071 = vrot.lane.b32.xlu0 %v2976, 104
        %v3072 = vpop.permute.xlu0 %3071
        %v3105 = vsel %vm907, %v3010, 0.0
        %3106 = vadd.xlane.f32.xlu0 %v3105
        %v3107 = vpop.xlane.xlu0 %3106
        %v3108 = vsel %vm907, %v3012, 0.0
        %3109 = vadd.xlane.f32.xlu0 %v3108
        %v3110 = vpop.xlane.xlu0 %3109
        %v3111 = vsel %vm907, %v3014, 0.0
        %3112 = vadd.xlane.f32.xlu0 %v3111
        %v3113 = vpop.xlane.xlu0 %3112
        %v3114 = vsel %vm907, %v3016, 0.0
        %3115 = vadd.xlane.f32.xlu0 %v3114
        %v3116 = vpop.xlane.xlu0 %3115
        %v3117 = vsel %vm907, %v3018, 0.0
        %3118 = vadd.xlane.f32.xlu0 %v3117
        %v3119 = vpop.xlane.xlu0 %3118
        %v3120 = vsel %vm907, %v3020, 0.0
        %3121 = vadd.xlane.f32.xlu0 %v3120
        %v3122 = vpop.xlane.xlu0 %3121
        %v3123 = vsel %vm907, %v3022, 0.0
        %3124 = vadd.xlane.f32.xlu0 %v3123
        %v3125 = vpop.xlane.xlu0 %3124
        %v3126 = vsel %vm907, %v3024, 0.0
        %3127 = vadd.xlane.f32.xlu0 %v3126
        %v3128 = vpop.xlane.xlu0 %3127
        %v3129 = vsel %vm907, %v3026, 0.0
        %3130 = vadd.xlane.f32.xlu0 %v3129
        %v3131 = vpop.xlane.xlu0 %3130
        %v3132 = vsel %vm907, %v3028, 0.0
        %3133 = vadd.xlane.f32.xlu0 %v3132
        %v3134 = vpop.xlane.xlu0 %3133
        %v3135 = vsel %vm907, %v3030, 0.0
        %3136 = vadd.xlane.f32.xlu0 %v3135
        %v3137 = vpop.xlane.xlu0 %3136
        %v3138 = vsel %vm907, %v3032, 0.0
        %3139 = vadd.xlane.f32.xlu0 %v3138
        %v3140 = vpop.xlane.xlu0 %3139
        %v3141 = vsel %vm907, %v3034, 0.0
        %3142 = vadd.xlane.f32.xlu0 %v3141
        %v3143 = vpop.xlane.xlu0 %3142
        %v3144 = vsel %vm907, %v3036, 0.0
        %3145 = vadd.xlane.f32.xlu0 %v3144
        %v3146 = vpop.xlane.xlu0 %3145
        %v3147 = vsel %vm907, %v3038, 0.0
        %3148 = vadd.xlane.f32.xlu0 %v3147
        %v3149 = vpop.xlane.xlu0 %3148
        %v3150 = vsel %vm907, %v3040, 0.0
        %3151 = vadd.xlane.f32.xlu0 %v3150
        %v3152 = vpop.xlane.xlu0 %3151
        %v3153 = vsel %vm907, %v3042, 0.0
        %3154 = vadd.xlane.f32.xlu0 %v3153
        %v3155 = vpop.xlane.xlu0 %3154
        %v3156 = vsel %vm907, %v3044, 0.0
        %3157 = vadd.xlane.f32.xlu0 %v3156
        %v3158 = vpop.xlane.xlu0 %3157
        %v3159 = vsel %vm907, %v3046, 0.0
        %3160 = vadd.xlane.f32.xlu0 %v3159
        %v3161 = vpop.xlane.xlu0 %3160
        %v3162 = vsel %vm907, %v3048, 0.0
        %3163 = vadd.xlane.f32.xlu0 %v3162
        %v3164 = vpop.xlane.xlu0 %3163
        %v3165 = vsel %vm907, %v3050, 0.0
        %3166 = vadd.xlane.f32.xlu0 %v3165
        %v3167 = vpop.xlane.xlu0 %3166
        %v3168 = vsel %vm907, %v3052, 0.0
        %3169 = vadd.xlane.f32.xlu0 %v3168
        %v3170 = vpop.xlane.xlu0 %3169
        %v3171 = vsel %vm907, %v3054, 0.0
        %3172 = vadd.xlane.f32.xlu0 %v3171
        %v3173 = vpop.xlane.xlu0 %3172
        %v3174 = vsel %vm907, %v3056, 0.0
        %3175 = vadd.xlane.f32.xlu0 %v3174
        %v3176 = vpop.xlane.xlu0 %3175
        %v3177 = vsel %vm907, %v3058, 0.0
        %3178 = vadd.xlane.f32.xlu0 %v3177
        %v3179 = vpop.xlane.xlu0 %3178
        %v3180 = vsel %vm907, %v3060, 0.0
        %3181 = vadd.xlane.f32.xlu0 %v3180
        %v3182 = vpop.xlane.xlu0 %3181
        %v3183 = vsel %vm907, %v3062, 0.0
        %3184 = vadd.xlane.f32.xlu0 %v3183
        %v3185 = vpop.xlane.xlu0 %3184
        %v3186 = vsel %vm907, %v3064, 0.0
        %3187 = vadd.xlane.f32.xlu0 %v3186
        %v3188 = vpop.xlane.xlu0 %3187
        %v3189 = vsel %vm907, %v3066, 0.0
        %3190 = vadd.xlane.f32.xlu0 %v3189
        %v3191 = vpop.xlane.xlu0 %3190
        %v3192 = vsel %vm907, %v3068, 0.0
        %3193 = vadd.xlane.f32.xlu0 %v3192
        %v3194 = vpop.xlane.xlu0 %3193
        %v3195 = vsel %vm907, %v3070, 0.0
        %3196 = vadd.xlane.f32.xlu0 %v3195
        %v3197 = vpop.xlane.xlu0 %3196
        %v3198 = vsel %vm907, %v3072, 0.0
        %3199 = vadd.xlane.f32.xlu0 %v3198
        %v3200 = vpop.xlane.xlu0 %3199
        %v3201 = vadd.f32 %v3107, %v353
        %v3202 = vadd.f32 %v3110, %v353
        %v3203 = vadd.f32 %v3113, %v353
        %v3204 = vadd.f32 %v3116, %v353
        %v3205 = vadd.f32 %v3119, %v353
        %v3206 = vadd.f32 %v3122, %v353
        %v3207 = vadd.f32 %v3125, %v353
        %v3208 = vadd.f32 %v3128, %v353
        %v3209 = vadd.f32 %v3131, %v358
        %v3210 = vadd.f32 %v3134, %v358
        %v3211 = vadd.f32 %v3137, %v358
        %v3212 = vadd.f32 %v3140, %v358
        %v3213 = vadd.f32 %v3143, %v358
        %v3214 = vadd.f32 %v3146, %v358
        %v3215 = vadd.f32 %v3149, %v358
        %v3216 = vadd.f32 %v3152, %v358
        %v3217 = vadd.f32 %v3155, %v363
        %v3218 = vadd.f32 %v3158, %v363
        %v3219 = vadd.f32 %v3161, %v363
        %v3220 = vadd.f32 %v3164, %v363
        %v3221 = vadd.f32 %v3167, %v363
        %v3222 = vadd.f32 %v3170, %v363
        %v3223 = vadd.f32 %v3173, %v363
        %v3224 = vadd.f32 %v3176, %v363
        %v3225 = vadd.f32 %v3179, %v368
        %v3226 = vadd.f32 %v3182, %v368
        %v3227 = vadd.f32 %v3185, %v368
        %v3228 = vadd.f32 %v3188, %v368
        %v3229 = vadd.f32 %v3191, %v368
        %v3230 = vadd.f32 %v3194, %v368
        %v3231 = vadd.f32 %v3197, %v368
        %v3232 = vadd.f32 %v3200, %v368
        %v3233 = vmax.f32 %v3201, %v3209
        %v3234 = vmax.f32 %v3233, %v3217
        %v3235 = vmax.f32 %v3234, %v3225
        %v3236 = vmax.f32 %v3202, %v3210
        %v3237 = vmax.f32 %v3236, %v3218
        %v3238 = vmax.f32 %v3237, %v3226
        %v3239 = vmax.f32 %v3203, %v3211
        %v3240 = vmax.f32 %v3239, %v3219
        %v3241 = vmax.f32 %v3240, %v3227
        %v3242 = vmax.f32 %v3204, %v3212
        %v3243 = vmax.f32 %v3242, %v3220
        %v3244 = vmax.f32 %v3243, %v3228
        %v3245 = vmax.f32 %v3205, %v3213
        %v3246 = vmax.f32 %v3245, %v3221
        %v3247 = vmax.f32 %v3246, %v3229
        %v3248 = vmax.f32 %v3206, %v3214
        %v3249 = vmax.f32 %v3248, %v3222
        %v3250 = vmax.f32 %v3249, %v3230
        %v3251 = vmax.f32 %v3207, %v3215
        %v3252 = vmax.f32 %v3251, %v3223
        %v3253 = vmax.f32 %v3252, %v3231
        %v3254 = vmax.f32 %v3208, %v3216
        %v3255 = vmax.f32 %v3254, %v3224
        %v3256 = vmax.f32 %v3255, %v3232
        %v3257 = vsub.f32 %v3201, %v3235
        %v3258 = vsub.f32 %v3202, %v3238
        %v3259 = vsub.f32 %v3203, %v3241
        %v3260 = vsub.f32 %v3204, %v3244
        %v3261 = vsub.f32 %v3205, %v3247
        %v3262 = vsub.f32 %v3206, %v3250
        %v3263 = vsub.f32 %v3207, %v3253
        %v3264 = vsub.f32 %v3208, %v3256
        %v3265 = vsub.f32 %v3209, %v3235
        %v3266 = vsub.f32 %v3210, %v3238
        %v3267 = vsub.f32 %v3211, %v3241
        %v3268 = vsub.f32 %v3212, %v3244
        %v3269 = vsub.f32 %v3213, %v3247
        %v3270 = vsub.f32 %v3214, %v3250
        %v3271 = vsub.f32 %v3215, %v3253
        %v3272 = vsub.f32 %v3216, %v3256
        %v3273 = vsub.f32 %v3217, %v3235
        %v3274 = vsub.f32 %v3218, %v3238
        %v3275 = vsub.f32 %v3219, %v3241
        %v3276 = vsub.f32 %v3220, %v3244
        %v3277 = vsub.f32 %v3221, %v3247
        %v3278 = vsub.f32 %v3222, %v3250
        %v3279 = vsub.f32 %v3223, %v3253
        %v3280 = vsub.f32 %v3224, %v3256
        %v3281 = vsub.f32 %v3225, %v3235
        %v3282 = vsub.f32 %v3226, %v3238
        %v3283 = vsub.f32 %v3227, %v3241
        %v3284 = vsub.f32 %v3228, %v3244
        %v3285 = vsub.f32 %v3229, %v3247
        %v3286 = vsub.f32 %v3230, %v3250
        %v3287 = vsub.f32 %v3231, %v3253
        %v3288 = vsub.f32 %v3232, %v3256
        %v3289 = vmul.f32 %v3257, 1.442695
        %v3290 = vpow.pop %v3289
        %v3291 = vmul.f32 %v3258, 1.442695
        %v3292 = vpow.pop %v3291
        %v3293 = vmul.f32 %v3259, 1.442695
        %v3294 = vpow.pop %v3293
        %v3295 = vmul.f32 %v3260, 1.442695
        %v3296 = vpow.pop %v3295
        %v3297 = vmul.f32 %v3261, 1.442695
        %v3298 = vpow.pop %v3297
        %v3299 = vmul.f32 %v3262, 1.442695
        %v3300 = vpow.pop %v3299
        %v3301 = vmul.f32 %v3263, 1.442695
        %v3302 = vpow.pop %v3301
        %v3303 = vmul.f32 %v3264, 1.442695
        %v3304 = vpow.pop %v3303
        %v3305 = vmul.f32 %v3265, 1.442695
        %v3306 = vpow.pop %v3305
        %v3307 = vmul.f32 %v3266, 1.442695
        %v3308 = vpow.pop %v3307
        %v3309 = vmul.f32 %v3267, 1.442695
        %v3310 = vpow.pop %v3309
        %v3311 = vmul.f32 %v3268, 1.442695
        %v3312 = vpow.pop %v3311
        %v3313 = vmul.f32 %v3269, 1.442695
        %v3314 = vpow.pop %v3313
        %v3315 = vmul.f32 %v3270, 1.442695
        %v3316 = vpow.pop %v3315
        %v3317 = vmul.f32 %v3271, 1.442695
        %v3318 = vpow.pop %v3317
        %v3319 = vmul.f32 %v3272, 1.442695
        %v3320 = vpow.pop %v3319
        %v3321 = vmul.f32 %v3273, 1.442695
        %v3322 = vpow.pop %v3321
        %v3323 = vmul.f32 %v3274, 1.442695
        %v3324 = vpow.pop %v3323
        %v3325 = vmul.f32 %v3275, 1.442695
        %v3326 = vpow.pop %v3325
        %v3327 = vmul.f32 %v3276, 1.442695
        %v3328 = vpow.pop %v3327
        %v3329 = vmul.f32 %v3277, 1.442695
        %v3330 = vpow.pop %v3329
        %v3331 = vmul.f32 %v3278, 1.442695
        %v3332 = vpow.pop %v3331
        %v3333 = vmul.f32 %v3279, 1.442695
        %v3334 = vpow.pop %v3333
        %v3335 = vmul.f32 %v3280, 1.442695
        %v3336 = vpow.pop %v3335
        %v3337 = vmul.f32 %v3281, 1.442695
        %v3338 = vpow.pop %v3337
        %v3339 = vmul.f32 %v3282, 1.442695
        %v3340 = vpow.pop %v3339
        %v3341 = vmul.f32 %v3283, 1.442695
        %v3342 = vpow.pop %v3341
        %v3343 = vmul.f32 %v3284, 1.442695
        %v3344 = vpow.pop %v3343
        %v3345 = vmul.f32 %v3285, 1.442695
        %v3346 = vpow.pop %v3345
        %v3347 = vmul.f32 %v3286, 1.442695
        %v3348 = vpow.pop %v3347
        %v3349 = vmul.f32 %v3287, 1.442695
        %v3350 = vpow.pop %v3349
        %v3351 = vmul.f32 %v3288, 1.442695
        %v3352 = vpow.pop %v3351
        %v3353 = vadd.f32 %v3290, %v3306
        %v3354 = vadd.f32 %v3353, %v3322
        %v3355 = vadd.f32 %v3354, %v3338
        %v3356 = vadd.f32 %v3292, %v3308
        %v3357 = vadd.f32 %v3356, %v3324
        %v3358 = vadd.f32 %v3357, %v3340
        %v3359 = vadd.f32 %v3294, %v3310
        %v3360 = vadd.f32 %v3359, %v3326
        %v3361 = vadd.f32 %v3360, %v3342
        %v3362 = vadd.f32 %v3296, %v3312
        %v3363 = vadd.f32 %v3362, %v3328
        %v3364 = vadd.f32 %v3363, %v3344
        %v3365 = vadd.f32 %v3298, %v3314
        %v3366 = vadd.f32 %v3365, %v3330
        %v3367 = vadd.f32 %v3366, %v3346
        %v3368 = vadd.f32 %v3300, %v3316
        %v3369 = vadd.f32 %v3368, %v3332
        %v3370 = vadd.f32 %v3369, %v3348
        %v3371 = vadd.f32 %v3302, %v3318
        %v3372 = vadd.f32 %v3371, %v3334
        %v3373 = vadd.f32 %v3372, %v3350
        %v3374 = vadd.f32 %v3304, %v3320
        %v3375 = vadd.f32 %v3374, %v3336
        %v3376 = vadd.f32 %v3375, %v3352
        %v3377 = vrcp.pop %v3355
        %v3378 = vrcp.pop %v3358
        %v3379 = vrcp.pop %v3361
        %v3380 = vrcp.pop %v3364
        %v3381 = vrcp.pop %v3367
        %v3382 = vrcp.pop %v3370
        %v3383 = vrcp.pop %v3373
        %v3384 = vrcp.pop %v3376
        %v3385 = vmul.f32 %v3355, %v3377
        %v3386 = vmul.f32 %v3358, %v3378
        %v3387 = vmul.f32 %v3361, %v3379
        %v3388 = vmul.f32 %v3364, %v3380
        %v3389 = vmul.f32 %v3367, %v3381
        %v3390 = vmul.f32 %v3370, %v3382
        %v3391 = vmul.f32 %v3373, %v3383
        %v3392 = vmul.f32 %v3376, %v3384
        %v3393 = vsub.f32 2.0, %v3385
        %v3394 = vsub.f32 2.0, %v3386
        %v3395 = vsub.f32 2.0, %v3387
        %v3396 = vsub.f32 2.0, %v3388
        %v3397 = vsub.f32 2.0, %v3389
        %v3398 = vsub.f32 2.0, %v3390
        %v3399 = vsub.f32 2.0, %v3391
        %v3400 = vsub.f32 2.0, %v3392
        %v3401 = vmul.f32 %v3377, %v3393
        %v3402 = vmul.f32 %v3378, %v3394
        %v3403 = vmul.f32 %v3379, %v3395
        %v3404 = vmul.f32 %v3380, %v3396
        %v3405 = vmul.f32 %v3381, %v3397
        %v3406 = vmul.f32 %v3382, %v3398
        %v3407 = vmul.f32 %v3383, %v3399
        %v3408 = vmul.f32 %v3384, %v3400
        %v3409 = vmul.f32 %v3290, %v3401
        %v3410 = vmul.f32 %v3292, %v3402
        %v3411 = vmul.f32 %v3294, %v3403
        %v3412 = vmul.f32 %v3296, %v3404
        %v3413 = vmul.f32 %v3298, %v3405
        %v3414 = vmul.f32 %v3300, %v3406
        %v3415 = vmul.f32 %v3302, %v3407
        %v3416 = vmul.f32 %v3304, %v3408
        %v3417 = vmul.f32 %v3306, %v3401
        %v3418 = vmul.f32 %v3308, %v3402
        %v3419 = vmul.f32 %v3310, %v3403
        %v3420 = vmul.f32 %v3312, %v3404
        %v3421 = vmul.f32 %v3314, %v3405
        %v3422 = vmul.f32 %v3316, %v3406
        %v3423 = vmul.f32 %v3318, %v3407
        %v3424 = vmul.f32 %v3320, %v3408
        %v3425 = vmul.f32 %v3322, %v3401
        %v3426 = vmul.f32 %v3324, %v3402
        %v3427 = vmul.f32 %v3326, %v3403
        %v3428 = vmul.f32 %v3328, %v3404
        %v3429 = vmul.f32 %v3330, %v3405
        %v3430 = vmul.f32 %v3332, %v3406
        %v3431 = vmul.f32 %v3334, %v3407
        %v3432 = vmul.f32 %v3336, %v3408
        %v3433 = vmul.f32 %v3338, %v3401
        %v3434 = vmul.f32 %v3340, %v3402
        %v3435 = vmul.f32 %v3342, %v3403
        %v3436 = vmul.f32 %v3344, %v3404
        %v3437 = vmul.f32 %v3346, %v3405
        %v3438 = vmul.f32 %v3348, %v3406
        %v3439 = vmul.f32 %v3350, %v3407
        %v3440 = vmul.f32 %v3352, %v3408
        %v3441 = vmul.f32 %v3409, %v717
        %v3442 = vmul.f32 %v3410, %v722
        %v3443 = vmul.f32 %v3411, %v727
        %v3444 = vmul.f32 %v3412, %v732
        %v3445 = vmul.f32 %v3413, %v737
        %v3446 = vmul.f32 %v3414, %v742
        %v3447 = vmul.f32 %v3415, %v747
        %v3448 = vmul.f32 %v3416, %v752
        %v3449 = vmul.f32 %v3417, %v757
        %v3450 = vmul.f32 %v3418, %v762
        %v3451 = vmul.f32 %v3419, %v767
        %v3452 = vmul.f32 %v3420, %v772
        %v3453 = vmul.f32 %v3421, %v777
        %v3454 = vmul.f32 %v3422, %v782
        %v3455 = vmul.f32 %v3423, %v787
        %v3456 = vmul.f32 %v3424, %v792
        %v3457 = vmul.f32 %v3425, %v797
        %v3458 = vmul.f32 %v3426, %v802
        %v3459 = vmul.f32 %v3427, %v807
        %v3460 = vmul.f32 %v3428, %v812
        %v3461 = vmul.f32 %v3429, %v817
        %v3462 = vmul.f32 %v3430, %v822
        %v3463 = vmul.f32 %v3431, %v827
        %v3464 = vmul.f32 %v3432, %v832
        %v3465 = vmul.f32 %v3433, %v837
        %v3466 = vmul.f32 %v3434, %v842
        %v3467 = vmul.f32 %v3435, %v847
        %v3468 = vmul.f32 %v3436, %v852
        %v3469 = vmul.f32 %v3437, %v857
        %v3470 = vmul.f32 %v3438, %v862
        %v3471 = vmul.f32 %v3439, %v867
        %v3472 = vmul.f32 %v3440, %v872
        %vm3473 = vcmask 392544
        %v3474 = vsel %vm3473, %v3441, 0.0
        %v3475 = vsel %vm3473, %v3449, 0.0
        %v3476 = vadd.f32 %v3474, %v3475
        %v3477 = vsel %vm3473, %v3457, 0.0
        %v3478 = vadd.f32 %v3476, %v3477
        %v3479 = vsel %vm3473, %v3465, 0.0
        %v3480 = vadd.f32 %v3478, %v3479
        %v3481 = vsel %vm3473, %v3442, 0.0
        %v3482 = vsel %vm3473, %v3450, 0.0
        %v3483 = vadd.f32 %v3481, %v3482
        %v3484 = vsel %vm3473, %v3458, 0.0
        %v3485 = vadd.f32 %v3483, %v3484
        %v3486 = vsel %vm3473, %v3466, 0.0
        %v3487 = vadd.f32 %v3485, %v3486
        %v3488 = vsel %vm3473, %v3443, 0.0
        %v3489 = vsel %vm3473, %v3451, 0.0
        %v3490 = vadd.f32 %v3488, %v3489
        %v3491 = vsel %vm3473, %v3459, 0.0
        %v3492 = vadd.f32 %v3490, %v3491
        %v3493 = vsel %vm3473, %v3467, 0.0
        %v3494 = vadd.f32 %v3492, %v3493
        %v3495 = vsel %vm3473, %v3444, 0.0
        %v3496 = vsel %vm3473, %v3452, 0.0
        %v3497 = vadd.f32 %v3495, %v3496
        %v3498 = vsel %vm3473, %v3460, 0.0
        %v3499 = vadd.f32 %v3497, %v3498
        %v3500 = vsel %vm3473, %v3468, 0.0
        %v3501 = vadd.f32 %v3499, %v3500
        %v3502 = vsel %vm3473, %v3445, 0.0
        %v3503 = vsel %vm3473, %v3453, 0.0
        %v3504 = vadd.f32 %v3502, %v3503
        %v3505 = vsel %vm3473, %v3461, 0.0
        %v3506 = vadd.f32 %v3504, %v3505
        %v3507 = vsel %vm3473, %v3469, 0.0
        %v3508 = vadd.f32 %v3506, %v3507
        %v3509 = vsel %vm3473, %v3446, 0.0
        %v3510 = vsel %vm3473, %v3454, 0.0
        %v3511 = vadd.f32 %v3509, %v3510
        %v3512 = vsel %vm3473, %v3462, 0.0
        %v3513 = vadd.f32 %v3511, %v3512
        %v3514 = vsel %vm3473, %v3470, 0.0
        %v3515 = vadd.f32 %v3513, %v3514
        %v3516 = vsel %vm3473, %v3447, 0.0
        %v3517 = vsel %vm3473, %v3455, 0.0
        %v3518 = vadd.f32 %v3516, %v3517
        %v3519 = vsel %vm3473, %v3463, 0.0
        %v3520 = vadd.f32 %v3518, %v3519
        %v3521 = vsel %vm3473, %v3471, 0.0
        %v3522 = vadd.f32 %v3520, %v3521
        %v3523 = vsel %vm3473, %v3448, 0.0
        %v3524 = vsel %vm3473, %v3456, 0.0
        %v3525 = vadd.f32 %v3523, %v3524
        %v3526 = vsel %vm3473, %v3464, 0.0
        %v3527 = vadd.f32 %v3525, %v3526
        %v3528 = vsel %vm3473, %v3472, 0.0
        %v3529 = vadd.f32 %v3527, %v3528
        %3538 = vrot.lane.b32.xlu0 %v3480, 96
        %v3539 = vpop.permute.xlu0 %3538
        %3540 = vrot.lane.b32.xlu0 %v3487, 96
        %v3541 = vpop.permute.xlu0 %3540
        %3542 = vrot.lane.b32.xlu0 %v3494, 96
        %v3543 = vpop.permute.xlu0 %3542
        %3544 = vrot.lane.b32.xlu0 %v3501, 96
        %v3545 = vpop.permute.xlu0 %3544
        %3546 = vrot.lane.b32.xlu0 %v3508, 96
        %v3547 = vpop.permute.xlu0 %3546
        %3548 = vrot.lane.b32.xlu0 %v3515, 96
        %v3549 = vpop.permute.xlu0 %3548
        %3550 = vrot.lane.b32.xlu0 %v3522, 96
        %v3551 = vpop.permute.xlu0 %3550
        %3552 = vrot.lane.b32.xlu0 %v3529, 96
        %v3553 = vpop.permute.xlu0 %3552
        %vm3562 = vcmask 130144
        %3563 = vst.msk [vmem:[#allocation2] sm:$0xff] %vm3562, %v3539
        %3564 = vst.msk [vmem:[#allocation2 + $0x8] sm:$0xff] %vm3562, %v3541
        %3565 = vst.msk [vmem:[#allocation2 + $0x10] sm:$0xff] %vm3562, %v3543
        %3566 = vst.msk [vmem:[#allocation2 + $0x18] sm:$0xff] %vm3562, %v3545
        %3567 = vst.msk [vmem:[#allocation2 + $0x20] sm:$0xff] %vm3562, %v3547
        %3568 = vst.msk [vmem:[#allocation2 + $0x28] sm:$0xff] %vm3562, %v3549
        %3569 = vst.msk [vmem:[#allocation2 + $0x30] sm:$0xff] %vm3562, %v3551
        %3570 = vst.msk [vmem:[#allocation2 + $0x38] sm:$0xff] %vm3562, %v3553
        %v3571 = vld [vmem:[#allocation2] sm:$0xff]
        %v3572 = vld [vmem:[#allocation2 + $0x8] sm:$0xff]
        %v3573 = vld [vmem:[#allocation2 + $0x10] sm:$0xff]
        %v3574 = vld [vmem:[#allocation2 + $0x18] sm:$0xff]
        %v3575 = vld [vmem:[#allocation2 + $0x20] sm:$0xff]
        %v3576 = vld [vmem:[#allocation2 + $0x28] sm:$0xff]
        %v3577 = vld [vmem:[#allocation2 + $0x30] sm:$0xff]
        %v3578 = vld [vmem:[#allocation2 + $0x38] sm:$0xff]
        %v3579 = vld [vmem:[%s5] sm:$0xff]
        %v3580 = vld [vmem:[%s5 + $0x8] sm:$0xff]
        %v3581 = vld [vmem:[%s6] sm:$0x1]
        %v3583 = vlaneseq
        %v3584 = vshrl.u32 %v3583, 7
        %v3585 = vsub.s32 0, %v3584
        %v3586 = vrot.slane %v3581, %v3585
        %v3589 = vsel %vm553, %v3571, 0
        %v3592 = vsel %vm553, %v3572, 0
        %v3595 = vsel %vm553, %v3573, 0
        %v3598 = vsel %vm553, %v3574, 0
        %v3601 = vsel %vm553, %v3575, 0
        %v3604 = vsel %vm553, %v3576, 0
        %v3607 = vsel %vm553, %v3577, 0
        %v3610 = vsel %vm553, %v3578, 0
        %3612 = vmatprep.subr.mxu0 0.0
        %3613 = vmatpush1.msra.mxu0 %v3579
        %3614 = vmatprep.subr.mxu0 0.0
        %3615 = vmatpush1.msra.mxu0 %v3580
        %3616 = vmatprep.subr.mxu0 0.0
        %3617 = vmatpush1.msra.mxu0 0.0
        %3618 = vmatprep.subr.mxu0 0.0
        %3619 = vmatpush1.msra.mxu0 0.0
        %3620 = vmatprep.subr.mxu0 0.0
        %3621 = vmatpush1.msra.mxu0 0.0
        %3622 = vmatprep.subr.mxu0 0.0
        %3623 = vmatpush1.msra.mxu0 0.0
        %3624 = vmatprep.subr.mxu0 0.0
        %3625 = vmatpush1.msra.mxu0 0.0
        %3626 = vmatprep.subr.mxu0 0.0
        %3627 = vmatpush1.msra.mxu0 0.0
        %3628 = vmatprep.subr.mxu0 0.0
        %3629 = vmatpush1.msra.mxu0 0.0
        %3630 = vmatprep.subr.mxu0 0.0
        %3631 = vmatpush1.msra.mxu0 0.0
        %3632 = vmatprep.subr.mxu0 0.0
        %3633 = vmatpush1.msra.mxu0 0.0
        %3634 = vmatprep.subr.mxu0 0.0
        %3635 = vmatpush1.msra.mxu0 0.0
        %3636 = vmatprep.subr.mxu0 0.0
        %3637 = vmatpush1.msra.mxu0 0.0
        %3638 = vmatprep.subr.mxu0 0.0
        %3639 = vmatpush1.msra.mxu0 0.0
        %3640 = vmatprep.subr.mxu0 0.0
        %3641 = vmatpush1.msra.mxu0 0.0
        %3642 = vmatprep.subr.mxu0 0.0
        %3643 = vmatpush1.msra.mxu0 0.0
        %3644 = vmatprep.subr.mxu0 0.0
        %3645 = vmatpush1.msra.mxu0 0.0
        %3646 = vmatprep.subr.mxu0 0.0
        %3647 = vmatpush1.msra.mxu0 0.0
        %3648 = vmatprep.subr.mxu0 0.0
        %3649 = vmatpush1.msra.mxu0 0.0
        %3650 = vmatprep.subr.mxu0 0.0
        %3651 = vmatpush1.msra.mxu0 0.0
        %3652 = vmatprep.subr.mxu0 0.0
        %3653 = vmatpush1.msra.mxu0 0.0
        %3654 = vmatprep.subr.mxu0 0.0
        %3655 = vmatpush1.msra.mxu0 0.0
        %3656 = vmatprep.subr.mxu0 0.0
        %3657 = vmatpush1.msra.mxu0 0.0
        %3658 = vmatprep.subr.mxu0 0.0
        %3659 = vmatpush1.msra.mxu0 0.0
        %3660 = vmatprep.subr.mxu0 0.0
        %3661 = vmatpush1.msra.mxu0 0.0
        %3662 = vmatprep.subr.mxu0 0.0
        %3663 = vmatpush1.msra.mxu0 0.0
        %3664 = vmatprep.subr.mxu0 0.0
        %3665 = vmatpush1.msra.mxu0 0.0
        %3666 = vmatprep.subr.mxu0 0.0
        %3667 = vmatpush1.msra.mxu0 0.0
        %3668 = vmatprep.subr.mxu0 0.0
        %3669 = vmatpush1.msra.mxu0 0.0
        %3670 = vmatprep.subr.mxu0 0.0
        %3671 = vmatpush1.msra.mxu0 0.0
        %3672 = vmatprep.subr.mxu0 0.0
        %3673 = vmatpush1.msra.mxu0 0.0
        %3674 = vmatprep.subr.mxu0 0.0
        %3675 = vmatpush1.msra.mxu0 0.0
        %3676 = vmatprep.mubr.f32.mxu0 0.0
        %3677 = vmatmul.mubr.f32.gmra.mrb[0].mxu0 %v3589
        %v3678 = vpop.f32.mrb[0].mxu0
        %v3679 = vadd.f32 %v3586, %v3678
        %v3680 = vpop.f32.mrb[0].mxu0
        %3681 = vmatprep.mubr.f32.mxu0 0.0
        %3682 = vmatmul.mubr.f32.gmra.mrb[0].mxu0 %v3592
        %v3683 = vpop.f32.mrb[0].mxu0
        %v3684 = vadd.f32 %v3586, %v3683
        %v3685 = vpop.f32.mrb[0].mxu0
        %3686 = vmatprep.mubr.f32.mxu0 0.0
        %3687 = vmatmul.mubr.f32.gmra.mrb[0].mxu0 %v3595
        %v3688 = vpop.f32.mrb[0].mxu0
        %v3689 = vadd.f32 %v3586, %v3688
        %v3690 = vpop.f32.mrb[0].mxu0
        %3691 = vmatprep.mubr.f32.mxu0 0.0
        %3692 = vmatmul.mubr.f32.gmra.mrb[0].mxu0 %v3598
        %v3693 = vpop.f32.mrb[0].mxu0
        %v3694 = vadd.f32 %v3586, %v3693
        %v3695 = vpop.f32.mrb[0].mxu0
        %3696 = vmatprep.mubr.f32.mxu0 0.0
        %3697 = vmatmul.mubr.f32.gmra.mrb[0].mxu0 %v3601
        %v3698 = vpop.f32.mrb[0].mxu0
        %v3699 = vadd.f32 %v3586, %v3698
        %v3700 = vpop.f32.mrb[0].mxu0
        %3701 = vmatprep.mubr.f32.mxu0 0.0
        %3702 = vmatmul.mubr.f32.gmra.mrb[0].mxu0 %v3604
        %v3703 = vpop.f32.mrb[0].mxu0
        %v3704 = vadd.f32 %v3586, %v3703
        %v3705 = vpop.f32.mrb[0].mxu0
        %3706 = vmatprep.mubr.f32.mxu0 0.0
        %3707 = vmatmul.mubr.f32.gmra.mrb[0].mxu0 %v3607
        %v3708 = vpop.f32.mrb[0].mxu0
        %v3709 = vadd.f32 %v3586, %v3708
        %v3710 = vpop.f32.mrb[0].mxu0
        %3711 = vmatprep.mubr.f32.mxu0 0.0
        %3712 = vmatmul.mubr.f32.gmra.mrb[0].mxu0 %v3610
        %v3713 = vpop.f32.mrb[0].mxu0
        %v3714 = vadd.f32 %v3586, %v3713
        %v3715 = vpop.f32.mrb[0].mxu0
        %3716 = vdwg.mxu0
        %3717 = vst.msk [vmem:[%s332] sm:$0xff] %vm413, %v3679
        %3718 = vst.msk [vmem:[%s332 + $0x8] sm:$0xff] %vm413, %v3684
        %3719 = vst.msk [vmem:[%s332 + $0x10] sm:$0xff] %vm413, %v3689
        %3720 = vst.msk [vmem:[%s332 + $0x18] sm:$0xff] %vm413, %v3694
        %3721 = vst.msk [vmem:[%s332 + $0x20] sm:$0xff] %vm413, %v3699
        %3722 = vst.msk [vmem:[%s332 + $0x28] sm:$0xff] %vm413, %v3704
        %3723 = vst.msk [vmem:[%s332 + $0x30] sm:$0xff] %vm413, %v3709
        %3724 = vst.msk [vmem:[%s332 + $0x38] sm:$0xff] %vm413, %v3714
      $region48: #{tpu_custom_call.1} parent=43 // pred_fallthru
        _
      %p3725 = scmp.le.s32.totalorder %s344, 0
      // Predicated region
      $region49: #{tpu_custom_call.1} parent=43 // pred_check
        %p3726 = pneg %p3725
      $region50: #{tpu_custom_call.1} parent=43 // pred_check_branch
        %3728 = sbr.rel (%p3726) target = $region52
      $region51: #{tpu_custom_call.1} parent=43 // pred_region
        %vm3729 = vcmask 261120
        %3730 = vst.msk [vmem:[%s332] sm:$0xff] %vm3729, 0.0
        %3731 = vst.msk [vmem:[%s332 + $0x8] sm:$0xff] %vm3729, 0.0
        %3732 = vst.msk [vmem:[%s332 + $0x10] sm:$0xff] %vm3729, 0.0
        %3733 = vst.msk [vmem:[%s332 + $0x18] sm:$0xff] %vm3729, 0.0
        %3734 = vst.msk [vmem:[%s332 + $0x20] sm:$0xff] %vm3729, 0.0
        %3735 = vst.msk [vmem:[%s332 + $0x28] sm:$0xff] %vm3729, 0.0
        %3736 = vst.msk [vmem:[%s332 + $0x30] sm:$0xff] %vm3729, 0.0
        %3737 = vst.msk [vmem:[%s332 + $0x38] sm:$0xff] %vm3729, 0.0
      $region52: #{tpu_custom_call.1} parent=43 // pred_fallthru
        _
      %s3738 = smul.u32 8, %s29
      %p3739 = scmp.lt.s32.totalorder %s28, 1
      %s3740 = scalar_select %p3739, %s28, 1
      %p3741 = scmp.lt.s32.totalorder %s3738, 7
      %s3742 = scalar_select %p3741, %s3738, 7
      %s3743 = smul.addr %s3740, 8
      %s3744 = sadd.s32 %s3742, %s3743
      %s3745 = smul.addr %s3744, 8
      %s3746 = scalar_lea.vmem %s7, %s3745
      // Predicated region
      $region53: #{tpu_custom_call.1} parent=43 // pred_check
        %p3747 = pneg %p196
      $region54: #{tpu_custom_call.1} parent=43 // pred_check_branch
        %3749 = sbr.rel (%p3747) target = $region56
      $region55: #{tpu_custom_call.1} parent=43 // pred_region
        %s3750 = smul.u32 8, %s29
      $region56: #{tpu_custom_call.1} parent=43 // pred_fallthru
        _
    $region44: #{tpu_custom_call.1} parent=5 // pred_fallthru
      _
    %p3751 = scmp.le.s32.totalorder 2, %s19
    // Predicated region
    $region57: #{tpu_custom_call.1} parent=5 // pred_check
      %p3752 = pneg %p3751
    $region58: #{tpu_custom_call.1} parent=5 // pred_check_branch
      %3754 = sbr.rel (%p3752) target = $region60
    $region59: #{tpu_custom_call.1} parent=5 // pred_region
      %s3755 = ssub.s32 %s19, 2
      // Predicated region
      $region61: #{tpu_custom_call.1} parent=59 // pred_check
        %p3756 = pneg %p202
      $region62: #{tpu_custom_call.1} parent=59 // pred_check_branch
        %3758 = sbr.rel (%p3756) target = $region64
      $region63: #{tpu_custom_call.1} parent=59 // pred_region
        %s3759 = smul.u32 8, %s31
        %p3760 = scmp.lt.s32.totalorder %s30, 1
        %s3761 = scalar_select %p3760, %s30, 1
        %p3762 = scmp.lt.s32.totalorder %s3759, 7
        %s3763 = scalar_select %p3762, %s3759, 7
        %s3764 = smul.addr %s3761, 8
        %s3765 = sadd.s32 %s3763, %s3764
        %s3766 = smul.addr %s3765, 8
        %s3767 = scalar_lea.vmem %s7, %s3766
      $region64: #{tpu_custom_call.1} parent=59 // pred_fallthru
        _
    $region60: #{tpu_custom_call.1} parent=5 // pred_fallthru
      _
  $region6: #{tpu_custom_call.1} parent=0 // loop_footer
    %s23 = sadd.s32 1, %s19
  $region7: #{tpu_custom_call.1} parent=0 // loop_footer_branch
    %18 = sbr.rel target = $region3
  $region8: #{tpu_custom_call.1} parent=0 // loop_exit
    _

</llo_original>
